<compile_context>
chip_gen: v7x
topology: tpu7x:2x2x1
jax: 0.10.0
libtpu: 0.0.40
codegen_flags: <defaults>
</compile_context>

<pallas_src>
import functools
import numpy as np
import jax
import jax.numpy as jnp
from jax import lax
from jax.experimental import pallas as pl
from jax.experimental.pallas import tpu as pltpu


def _dysample_kernel(x_all_ref, x_grp_ref, w_ref, b_ref, base_ref, o_ref,
                     mxw_s, vpw_s, *, s2, gpb, ct, Dm, Dv, mm_dtype):
    """One (batch, group-block, channel-tile) step of DySample-lp.

    Dm = spatial axis contracted on the MXU, Dv = spatial axis reduced on the VPU.
    Rows [0:s2] of w/b/base are the Dm-axis offset rows, rows [s2:2*s2] the Dv-axis rows.
    """
    Q = s2 * Dm * Dv
    C = x_all_ref.shape[1]
    ct_idx = pl.program_id(2)

    # ---- per-(batch, group-block): offsets + separable hat-function bilinear weights ----
    @pl.when(ct_idx == 0)
    def _build_weights():
        x_all = x_all_ref[0]                                  # (C, HW)
        base = base_ref[...]                                  # (2*s2, HW) integer pixel bases
        iom = lax.broadcasted_iota(jnp.int32, (Dm, Q), 0).astype(jnp.float32)
        iov = lax.broadcasted_iota(jnp.int32, (Dv, Q), 0).astype(jnp.float32)
        for g in range(gpb):
            wg = w_ref[g]                                     # (2*s2, C), pre-scaled by 0.25
            if C <= 8:                                        # tiny C: VPU FMAs beat an MXU K=C matmul
                off = wg[:, 0:1] * x_all[0:1, :]
                for c in range(1, C):
                    off = off + wg[:, c:c + 1] * x_all[c:c + 1, :]
            else:
                off = jnp.dot(wg, x_all, preferred_element_type=jnp.float32)
            # continuous (border-clamped) sample coordinates; all constants folded in wrapper
            sc = off + b_ref[g] + base                        # (2*s2, HW)
            cm = jnp.clip(sc[0:s2, :], 0.0, float(Dm - 1))    # (s2, HW) coord along Dm
            cv = jnp.clip(sc[s2:, :], 0.0, float(Dv - 1))     # (s2, HW) coord along Dv
            cm = jnp.concatenate([cm[u:u + 1, :] for u in range(s2)], axis=1)   # (1, Q)
            cv = jnp.concatenate([cv[u:u + 1, :] for u in range(s2)], axis=1)   # (1, Q)
            # hat-function bilinear taps (== one-hot (1-t)/t since coords are clamped)
            mxw_s[g] = jnp.maximum(0.0, 1.0 - jnp.abs(iom - cm))                # (Dm, Q)
            vpw_s[g] = jnp.maximum(0.0, 1.0 - jnp.abs(iov - cv))                # (Dv, Q)

    # ---- gather: MXU pass over Dm, VPU-weighted reduce over Dv, per group --------------
    for g in range(gpb):
        xm = x_grp_ref[0, 0, g]                               # (ct*Dv, Dm)
        tmp = jnp.dot(xm.astype(mm_dtype), mxw_s[g].astype(mm_dtype),
                      preferred_element_type=jnp.float32)     # (ct*Dv, Q)
        vw = vpw_s[g]                                         # (Dv, Q)
        if ct == 1:
            out = jnp.sum(tmp * vw, axis=0, keepdims=True)    # (1, Q)
        else:
            # accumulate over Dv in sublane chunks: never materializes (ct, Dv, Q)
            out = jnp.zeros((ct, Q), jnp.float32)
            t3 = tmp.reshape(ct, Dv, Q)
            step = 8 if Dv % 8 == 0 else Dv
            for v0 in range(0, Dv, step):
                out = out + jnp.sum(t3[:, v0:v0 + step, :] * vw[None, v0:v0 + step, :],
                                    axis=1)
        o_ref[0, 0, g] = out.astype(o_ref.dtype)              # lane-dense (ct, Q) store


def _pick_tiles(B, G, Cg, Dm, Dv, s2, vmem_budget=24 << 20):
    """Choose (groups-per-step, channels-per-tile).

    Small maps collapse all groups into one step (per-grid-step overhead ~0.35us dominates);
    large maps set gpb=1 and tile Cg on the innermost 'arbitrary' axis so the (ct*Dv, Q)
    intermediate plus double-buffered blocks fit the VMEM budget (sized for v7x's 64 MiB;
    v5e/v6e have 128 MiB and could take a 2-4x larger budget / fewer steps)."""
    Q = s2 * Dm * Dv

    def step_bytes(gpb, c):
        scr = gpb * (Dm + Dv) * Q * 4            # hat-weight scratch
        xin = 2 * gpb * c * Dv * Dm * 4          # x group slab (double-buffered)
        obuf = 2 * gpb * c * Q * 4               # output block (double-buffered)
        tmp = c * Dv * Q * 4 + c * Q * 4         # MXU result + row-pass accumulator
        return scr + xin + obuf + tmp

    gpb = G if (Q <= 8192 and step_bytes(G, Cg) <= vmem_budget) else 1
    if B == 1 and gpb == G and G % 2 == 0:
        gpb = G // 2                             # keep >= 2 parallel steps for v7x megacore
    ct = Cg
    if step_bytes(gpb, ct) > vmem_budget:
        for c in range(Cg, 0, -1):               # divisors of Cg, 8-sublane aligned
            if Cg % c == 0 and c % 8 == 0:
                ct = c
                if step_bytes(gpb, ct) <= vmem_budget:
                    break
    return gpb, ct


def _make_init_pos(scale, groups):
    # replicates DySample._init_pos
    h = (np.arange(scale, dtype=np.float32) - (scale - 1) / 2.0) / scale
    g0, g1 = np.meshgrid(h, h, indexing="ij")
    t = np.stack([g0, g1]).transpose(0, 2, 1)         # (2, s, s)
    r = np.tile(t, (1, groups, 1))                    # (2, s*groups, s)
    return r.reshape(-1).astype(np.float32)           # (2*groups*s*s,)


def dysample_lp(x, w, b, init_pos, *, scale=2, groups=4, mm_dtype=jnp.float32):
    B, C, H, W = x.shape
    G = groups
    s2 = scale * scale
    Cg = C // G
    HW = H * W
    Q = s2 * HW

    # contract the larger spatial axis on the MXU (better systolic fill for H != W)
    contract_w = W >= H
    Dm, Dv = (W, H) if contract_w else (H, W)

    gpb, ct = _pick_tiles(B, G, Cg, Dm, Dv, s2)
    GB = G // gpb
    CT = Cg // ct

    x = x.astype(jnp.float32)
    x_flat = x.reshape(B, C, HW)                      # 1x1-conv input (positions on lanes)
    x5 = x.reshape(B, G, Cg, H, W)
    if not contract_w:
        x5 = x5.transpose(0, 1, 2, 4, 3)              # (B, G, Cg, W, H)
    x_gs = x5.reshape(B, GB, gpb, Cg * Dv, Dm)        # per-group MXU LHS layout

    # fold constants: w_eff = 0.25*w ; b_eff = 0.25*b + init_pos.
    # original conv channel o = d*G*s2 + g*s2 + sub ; row order inside a group = [Dm rows, Dv rows]
    w4 = w.reshape(2, G, s2, C).astype(jnp.float32)
    b4 = b.reshape(2, G, s2).astype(jnp.float32)
    ip4 = init_pos.reshape(2, G, s2).astype(jnp.float32)
    if not contract_w:                                # swap x/y halves so Dm rows come first
        w4, b4, ip4 = w4[::-1], b4[::-1], ip4[::-1]
    w_eff = (0.25 * w4).transpose(1, 0, 2, 3).reshape(G, 2 * s2, C)
    b_eff = (0.25 * b4 + ip4).transpose(1, 0, 2).reshape(G, 2 * s2, 1)

    # exact integer-derived base grid (grid_sample -0.5 and pixel-center +0.5 cancel)
    p = jnp.arange(HW, dtype=jnp.int32)
    base_x = (p % W).astype(jnp.float32)
    base_y = (p // W).astype(jnp.float32)
    bm, bv = (base_x, base_y) if contract_w else (base_y, base_x)
    base = jnp.concatenate([jnp.broadcast_to(bm[None, :], (s2, HW)),
                            jnp.broadcast_to(bv[None, :], (s2, HW))], axis=0)   # (2*s2, HW)

    kernel = functools.partial(_dysample_kernel, s2=s2, gpb=gpb, ct=ct,
                               Dm=Dm, Dv=Dv, mm_dtype=mm_dtype)

    out = pl.pallas_call(
        kernel,
        out_shape=jax.ShapeDtypeStruct((B, GB, gpb, Cg, Q), jnp.float32),
        grid_spec=pltpu.PrefetchScalarGridSpec(
            num_scalar_prefetch=0,
            grid=(B, GB, CT),
            in_specs=[
                # all channels for the offset conv (block index constant over gg/cc -> reused, no re-DMA)
                pl.BlockSpec((1, C, HW), lambda bb, gg, cc: (bb, 0, 0)),
                # this group-block's channel tile for the gather matmul
                pl.BlockSpec((1, 1, gpb, ct * Dv, Dm), lambda bb, gg, cc: (bb, gg, 0, cc, 0)),
                pl.BlockSpec((gpb, 2 * s2, C), lambda bb, gg, cc: (gg, 0, 0)),   # folded conv weight
                pl.BlockSpec((gpb, 2 * s2, 1), lambda bb, gg, cc: (gg, 0, 0)),   # folded bias+init_pos
                pl.BlockSpec((2 * s2, HW), lambda bb, gg, cc: (0, 0)),           # base grid
            ],
            out_specs=pl.BlockSpec((1, 1, gpb, ct, Q), lambda bb, gg, cc: (bb, gg, 0, cc, 0)),
            scratch_shapes=[
                pltpu.VMEM((gpb, Dm, Q), jnp.float32),    # MXU-axis hat weights (per group)
                pltpu.VMEM((gpb, Dv, Q), jnp.float32),    # VPU-axis hat weights (per group)
            ],
        ),
        compiler_params=pltpu.CompilerParams(
            dimension_semantics=("parallel", "parallel", "arbitrary"),
            vmem_limit_bytes=48 * 1024 * 1024,
        ),
    )(x_flat, x_gs, w_eff, b_eff, base)

    # pixel-shuffle back to NCHW upscaled: single XLA transpose (a full HBM round trip of the
    # 4x output) — in production this should be fused into the consumer of the upsampled map.
    # out[b, gb, gg, c, q] with q = (i*scale + j)*HW + h*W + w
    out = out.reshape(B, G, Cg, scale, scale, H, W)   # (b, g, c, i, j, h, w)
    out = out.transpose(0, 1, 2, 5, 3, 6, 4)          # (b, g, c, h, i, w, j)
    return out.reshape(B, C, scale * H, scale * W)


def dysample_lp_ref(x, w, b, init_pos, *, scale=2, groups=4):
    """Pure-JAX reference mirroring the PyTorch module."""
    B, C, H, W = x.shape
    s, s2, G = scale, scale * scale, groups
    Cg = C // G
    off = jnp.einsum("oc,bchw->bohw", w.reshape(-1, C), x, precision="highest")
    off = off + b.reshape(1, -1, 1, 1)
    off = off * 0.25 + init_pos.reshape(1, -1, 1, 1)
    off = off.reshape(B, 2, G * s2, H, W)
    cw = jnp.arange(W, dtype=x.dtype) + 0.5
    ch = jnp.arange(H, dtype=x.dtype) + 0.5
    base = jnp.stack([jnp.broadcast_to(cw[None, :], (H, W)),
                      jnp.broadcast_to(ch[:, None], (H, W))])        # (2,H,W)
    coords = base[None, :, None] + off                               # (B,2,Gs2,H,W)
    norm = jnp.array([W, H], x.dtype).reshape(1, 2, 1, 1, 1)
    coords = 2.0 * coords / norm - 1.0
    c = coords.reshape(B, 2, G, s, s, H, W)
    grid = c.transpose(0, 2, 5, 3, 6, 4, 1).reshape(B, G, s * H, s * W, 2)
    gx, gy = grid[..., 0], grid[..., 1]
    ix = jnp.clip(((gx + 1.0) * W - 1.0) / 2.0, 0.0, W - 1.0)
    iy = jnp.clip(((gy + 1.0) * H - 1.0) / 2.0, 0.0, H - 1.0)
    x0 = jnp.floor(ix); y0 = jnp.floor(iy)
    tx = ix - x0; ty = iy - y0
    x0i = x0.astype(jnp.int32); y0i = y0.astype(jnp.int32)
    x1i = jnp.minimum(x0i + 1, W - 1); y1i = jnp.minimum(y0i + 1, H - 1)
    xr = x.reshape(B, G, Cg, H * W)

    def gat(yi, xi):
        idx = (yi * W + xi).reshape(B, G, 1, -1)
        idx = jnp.broadcast_to(idx, (B, G, Cg, idx.shape[-1]))
        return jnp.take_along_axis(xr, idx, axis=3).reshape(B, G, Cg, s * H, s * W)

    out = (gat(y0i, x0i) * ((1 - tx) * (1 - ty))[:, :, None]
           + gat(y0i, x1i) * (tx * (1 - ty))[:, :, None]
           + gat(y1i, x0i) * ((1 - tx) * ty)[:, :, None]
           + gat(y1i, x1i) * (tx * ty)[:, :, None])
    return out.reshape(B, C, s * H, s * W)


if __name__ == "__main__":
    B, C, H, W = 2, 4, 16, 16
    scale, groups = 2, 4
    OC = 2 * groups * scale * scale

    key = jax.random.PRNGKey(0)
    kx, kw = jax.random.split(key)
    x = jax.random.normal(kx, (B, C, H, W), dtype=jnp.float32)
    # nn.Conv2d(C, OC, 1) with normal_init(std=0.001), bias=0
    w = 0.001 * jax.random.normal(kw, (OC, C), dtype=jnp.float32)
    b = jnp.zeros((OC,), dtype=jnp.float32)
    init_pos = jnp.asarray(_make_init_pos(scale, groups))

    out = jax.block_until_ready(dysample_lp(x, w, b, init_pos, scale=scale, groups=groups))
    ref = jax.block_until_ready(dysample_lp_ref(x, w, b, init_pos, scale=scale, groups=groups))

    assert out.shape == (B, C, scale * H, scale * W)
    np.testing.assert_allclose(np.asarray(out), np.asarray(ref), rtol=1e-3, atol=1e-3)
    print("KERNEL_OK")
</pallas_src>

<mosaic_0001>
module attributes {stable_mosaic.version = 11 : i64} {
  func.func @_dysample_kernel(%arg0: i32, %arg1: i32, %arg2: i32, %arg3: memref<1x4x256xf32, #tpu.memory_space<vmem>>, %arg4: memref<1x1x4x16x16xf32, #tpu.memory_space<vmem>>, %arg5: memref<4x8x4xf32, #tpu.memory_space<vmem>>, %arg6: memref<4x8x1xf32, #tpu.memory_space<vmem>>, %arg7: memref<8x256xf32, #tpu.memory_space<vmem>>, %arg8: memref<1x1x4x1x1024xf32, #tpu.memory_space<vmem>>, %arg9: memref<4x16x1024xf32, #tpu.memory_space<vmem>>, %arg10: memref<4x16x1024xf32, #tpu.memory_space<vmem>>) attributes {dimension_semantics = [#tpu.dimension_semantics<parallel>, #tpu.dimension_semantics<parallel>, #tpu.dimension_semantics<arbitrary>], iteration_bounds = array<i64: 2, 1, 1>, scalar_prefetch = 0 : i64, scratch_operands = 2 : i64, tpu.core_type = #tpu.core_type<tc>, window_params = [{transform_indices = @transform_0, window_bounds = array<i64: 1, 4, 256>}, {transform_indices = @transform_1, window_bounds = array<i64: 1, 1, 4, 16, 16>}, {transform_indices = @transform_2, window_bounds = array<i64: 4, 8, 4>}, {transform_indices = @transform_3, window_bounds = array<i64: 4, 8, 1>}, {pipeline_mode = #tpu.pipeline_mode<synchronous>, transform_indices = @transform_4, window_bounds = array<i64: 8, 256>}, {transform_indices = @transform_5, window_bounds = array<i64: 1, 1, 4, 1, 1024>}]} {
    %c0_i32 = arith.constant 0 : i32
    %0 = arith.cmpi eq, %arg2, %c0_i32 : i32
    %1 = arith.extui %0 : i1 to i32
    %c0_i32_0 = arith.constant 0 : i32
    %2 = arith.cmpi ne, %1, %c0_i32_0 : i32
    scf.if %2 {
      %c0_68 = arith.constant 0 : index
      %c0_69 = arith.constant 0 : index
      %c0_70 = arith.constant 0 : index
      %55 = vector.load %arg3[%c0_68, %c0_69, %c0_70] : memref<1x4x256xf32, #tpu.memory_space<vmem>>, vector<1x4x256xf32>
      %56 = vector.shape_cast %55 : vector<1x4x256xf32> to vector<4x256xf32>
      %c0_71 = arith.constant 0 : index
      %c0_72 = arith.constant 0 : index
      %57 = vector.load %arg7[%c0_71, %c0_72] : memref<8x256xf32, #tpu.memory_space<vmem>>, vector<8x256xf32>
      %58 = tpu.iota {dimensions = array<i32: 0>} : vector<16x1024xi32>
      %59 = arith.sitofp %58 : vector<16x1024xi32> to vector<16x1024xf32>
      %60 = tpu.iota {dimensions = array<i32: 0>} : vector<16x1024xi32>
      %61 = arith.sitofp %60 : vector<16x1024xi32> to vector<16x1024xf32>
      %c0_73 = arith.constant 0 : index
      %c0_74 = arith.constant 0 : index
      %c0_75 = arith.constant 0 : index
      %62 = vector.load %arg5[%c0_73, %c0_74, %c0_75] : memref<4x8x4xf32, #tpu.memory_space<vmem>>, vector<1x8x4xf32>
      %63 = vector.shape_cast %62 : vector<1x8x4xf32> to vector<8x4xf32>
      %64 = vector.extract_strided_slice %63 {offsets = [0, 0], sizes = [8, 1], strides = [1, 1]} : vector<8x4xf32> to vector<8x1xf32>
      %65 = vector.extract_strided_slice %56 {offsets = [0, 0], sizes = [1, 256], strides = [1, 1]} : vector<4x256xf32> to vector<1x256xf32>
      %66 = vector.broadcast %64 : vector<8x1xf32> to vector<8x256xf32>
      %67 = vector.broadcast %65 : vector<1x256xf32> to vector<8x256xf32>
      %68 = arith.mulf %66, %67 : vector<8x256xf32>
      %69 = vector.extract_strided_slice %63 {offsets = [0, 1], sizes = [8, 1], strides = [1, 1]} : vector<8x4xf32> to vector<8x1xf32>
      %70 = vector.extract_strided_slice %56 {offsets = [1, 0], sizes = [1, 256], strides = [1, 1]} : vector<4x256xf32> to vector<1x256xf32>
      %71 = vector.broadcast %69 : vector<8x1xf32> to vector<8x256xf32>
      %72 = vector.broadcast %70 : vector<1x256xf32> to vector<8x256xf32>
      %73 = arith.mulf %71, %72 : vector<8x256xf32>
      %74 = arith.addf %68, %73 : vector<8x256xf32>
      %75 = vector.extract_strided_slice %63 {offsets = [0, 2], sizes = [8, 1], strides = [1, 1]} : vector<8x4xf32> to vector<8x1xf32>
      %76 = vector.extract_strided_slice %56 {offsets = [2, 0], sizes = [1, 256], strides = [1, 1]} : vector<4x256xf32> to vector<1x256xf32>
      %77 = vector.broadcast %75 : vector<8x1xf32> to vector<8x256xf32>
      %78 = vector.broadcast %76 : vector<1x256xf32> to vector<8x256xf32>
      %79 = arith.mulf %77, %78 : vector<8x256xf32>
      %80 = arith.addf %74, %79 : vector<8x256xf32>
      %81 = vector.extract_strided_slice %63 {offsets = [0, 3], sizes = [8, 1], strides = [1, 1]} : vector<8x4xf32> to vector<8x1xf32>
      %82 = vector.extract_strided_slice %56 {offsets = [3, 0], sizes = [1, 256], strides = [1, 1]} : vector<4x256xf32> to vector<1x256xf32>
      %83 = vector.broadcast %81 : vector<8x1xf32> to vector<8x256xf32>
      %84 = vector.broadcast %82 : vector<1x256xf32> to vector<8x256xf32>
      %85 = arith.mulf %83, %84 : vector<8x256xf32>
      %86 = arith.addf %80, %85 : vector<8x256xf32>
      %c0_76 = arith.constant 0 : index
      %c0_77 = arith.constant 0 : index
      %c0_78 = arith.constant 0 : index
      %87 = vector.load %arg6[%c0_76, %c0_77, %c0_78] : memref<4x8x1xf32, #tpu.memory_space<vmem>>, vector<1x8x1xf32>
      %88 = vector.shape_cast %87 : vector<1x8x1xf32> to vector<8x1xf32>
      %89 = vector.broadcast %88 : vector<8x1xf32> to vector<8x256xf32>
      %90 = arith.addf %86, %89 : vector<8x256xf32>
      %91 = arith.addf %90, %57 : vector<8x256xf32>
      %92 = vector.extract_strided_slice %91 {offsets = [0, 0], sizes = [4, 256], strides = [1, 1]} : vector<8x256xf32> to vector<4x256xf32>
      %cst_79 = arith.constant 0.000000e+00 : f32
      %cst_80 = arith.constant 1.500000e+01 : f32
      %93 = vector.broadcast %cst_79 : f32 to vector<4x256xf32>
      %94 = arith.maximumf %93, %92 : vector<4x256xf32>
      %95 = vector.broadcast %cst_80 : f32 to vector<4x256xf32>
      %96 = arith.minimumf %95, %94 : vector<4x256xf32>
      %97 = vector.extract_strided_slice %91 {offsets = [4, 0], sizes = [4, 256], strides = [1, 1]} : vector<8x256xf32> to vector<4x256xf32>
      %cst_81 = arith.constant 0.000000e+00 : f32
      %cst_82 = arith.constant 1.500000e+01 : f32
      %98 = vector.broadcast %cst_81 : f32 to vector<4x256xf32>
      %99 = arith.maximumf %98, %97 : vector<4x256xf32>
      %100 = vector.broadcast %cst_82 : f32 to vector<4x256xf32>
      %101 = arith.minimumf %100, %99 : vector<4x256xf32>
      %102 = vector.extract_strided_slice %96 {offsets = [0, 0], sizes = [1, 256], strides = [1, 1]} : vector<4x256xf32> to vector<1x256xf32>
      %103 = vector.extract_strided_slice %96 {offsets = [1, 0], sizes = [1, 256], strides = [1, 1]} : vector<4x256xf32> to vector<1x256xf32>
      %104 = vector.extract_strided_slice %96 {offsets = [2, 0], sizes = [1, 256], strides = [1, 1]} : vector<4x256xf32> to vector<1x256xf32>
      %105 = vector.extract_strided_slice %96 {offsets = [3, 0], sizes = [1, 256], strides = [1, 1]} : vector<4x256xf32> to vector<1x256xf32>
      %106 = tpu.concatenate %102, %103, %104, %105 in 1 : vector<1x256xf32>, vector<1x256xf32>, vector<1x256xf32>, vector<1x256xf32> -> vector<1x1024xf32>
      %107 = vector.extract_strided_slice %101 {offsets = [0, 0], sizes = [1, 256], strides = [1, 1]} : vector<4x256xf32> to vector<1x256xf32>
      %108 = vector.extract_strided_slice %101 {offsets = [1, 0], sizes = [1, 256], strides = [1, 1]} : vector<4x256xf32> to vector<1x256xf32>
      %109 = vector.extract_strided_slice %101 {offsets = [2, 0], sizes = [1, 256], strides = [1, 1]} : vector<4x256xf32> to vector<1x256xf32>
      %110 = vector.extract_strided_slice %101 {offsets = [3, 0], sizes = [1, 256], strides = [1, 1]} : vector<4x256xf32> to vector<1x256xf32>
      %111 = tpu.concatenate %107, %108, %109, %110 in 1 : vector<1x256xf32>, vector<1x256xf32>, vector<1x256xf32>, vector<1x256xf32> -> vector<1x1024xf32>
      %112 = vector.broadcast %106 : vector<1x1024xf32> to vector<16x1024xf32>
      %113 = arith.subf %59, %112 : vector<16x1024xf32>
      %114 = math.absf %113 : vector<16x1024xf32>
      %cst_83 = arith.constant 1.000000e+00 : f32
      %115 = vector.broadcast %cst_83 : f32 to vector<16x1024xf32>
      %116 = arith.subf %115, %114 : vector<16x1024xf32>
      %cst_84 = arith.constant 0.000000e+00 : f32
      %117 = vector.broadcast %cst_84 : f32 to vector<16x1024xf32>
      %118 = arith.maximumf %117, %116 : vector<16x1024xf32>
      %c0_85 = arith.constant 0 : index
      %c0_86 = arith.constant 0 : index
      %c0_87 = arith.constant 0 : index
      %119 = vector.load %arg9[%c0_85, %c0_86, %c0_87] : memref<4x16x1024xf32, #tpu.memory_space<vmem>>, vector<1x16x1024xf32>
      %120 = vector.shape_cast %119 : vector<1x16x1024xf32> to vector<16x1024xf32>
      %121 = vector.shape_cast %118 : vector<16x1024xf32> to vector<1x16x1024xf32>
      tpu.vector_store %arg9[%c0_85, %c0_86, %c0_87], %121 {strides = array<i32>} : memref<4x16x1024xf32, #tpu.memory_space<vmem>>, vector<1x16x1024xf32>,
      %122 = vector.broadcast %111 : vector<1x1024xf32> to vector<16x1024xf32>
      %123 = arith.subf %61, %122 : vector<16x1024xf32>
      %124 = math.absf %123 : vector<16x1024xf32>
      %cst_88 = arith.constant 1.000000e+00 : f32
      %125 = vector.broadcast %cst_88 : f32 to vector<16x1024xf32>
      %126 = arith.subf %125, %124 : vector<16x1024xf32>
      %cst_89 = arith.constant 0.000000e+00 : f32
      %127 = vector.broadcast %cst_89 : f32 to vector<16x1024xf32>
      %128 = arith.maximumf %127, %126 : vector<16x1024xf32>
      %c0_90 = arith.constant 0 : index
      %c0_91 = arith.constant 0 : index
      %c0_92 = arith.constant 0 : index
      %129 = vector.load %arg10[%c0_90, %c0_91, %c0_92] : memref<4x16x1024xf32, #tpu.memory_space<vmem>>, vector<1x16x1024xf32>
      %130 = vector.shape_cast %129 : vector<1x16x1024xf32> to vector<16x1024xf32>
      %131 = vector.shape_cast %128 : vector<16x1024xf32> to vector<1x16x1024xf32>
      tpu.vector_store %arg10[%c0_90, %c0_91, %c0_92], %131 {strides = array<i32>} : memref<4x16x1024xf32, #tpu.memory_space<vmem>>, vector<1x16x1024xf32>,
      %c1_93 = arith.constant 1 : index
      %c0_94 = arith.constant 0 : index
      %c0_95 = arith.constant 0 : index
      %132 = vector.load %arg5[%c1_93, %c0_94, %c0_95] : memref<4x8x4xf32, #tpu.memory_space<vmem>>, vector<1x8x4xf32>
      %133 = vector.shape_cast %132 : vector<1x8x4xf32> to vector<8x4xf32>
      %134 = vector.extract_strided_slice %133 {offsets = [0, 0], sizes = [8, 1], strides = [1, 1]} : vector<8x4xf32> to vector<8x1xf32>
      %135 = vector.extract_strided_slice %56 {offsets = [0, 0], sizes = [1, 256], strides = [1, 1]} : vector<4x256xf32> to vector<1x256xf32>
      %136 = vector.broadcast %134 : vector<8x1xf32> to vector<8x256xf32>
      %137 = vector.broadcast %135 : vector<1x256xf32> to vector<8x256xf32>
      %138 = arith.mulf %136, %137 : vector<8x256xf32>
      %139 = vector.extract_strided_slice %133 {offsets = [0, 1], sizes = [8, 1], strides = [1, 1]} : vector<8x4xf32> to vector<8x1xf32>
      %140 = vector.extract_strided_slice %56 {offsets = [1, 0], sizes = [1, 256], strides = [1, 1]} : vector<4x256xf32> to vector<1x256xf32>
      %141 = vector.broadcast %139 : vector<8x1xf32> to vector<8x256xf32>
      %142 = vector.broadcast %140 : vector<1x256xf32> to vector<8x256xf32>
      %143 = arith.mulf %141, %142 : vector<8x256xf32>
      %144 = arith.addf %138, %143 : vector<8x256xf32>
      %145 = vector.extract_strided_slice %133 {offsets = [0, 2], sizes = [8, 1], strides = [1, 1]} : vector<8x4xf32> to vector<8x1xf32>
      %146 = vector.extract_strided_slice %56 {offsets = [2, 0], sizes = [1, 256], strides = [1, 1]} : vector<4x256xf32> to vector<1x256xf32>
      %147 = vector.broadcast %145 : vector<8x1xf32> to vector<8x256xf32>
      %148 = vector.broadcast %146 : vector<1x256xf32> to vector<8x256xf32>
      %149 = arith.mulf %147, %148 : vector<8x256xf32>
      %150 = arith.addf %144, %149 : vector<8x256xf32>
      %151 = vector.extract_strided_slice %133 {offsets = [0, 3], sizes = [8, 1], strides = [1, 1]} : vector<8x4xf32> to vector<8x1xf32>
      %152 = vector.extract_strided_slice %56 {offsets = [3, 0], sizes = [1, 256], strides = [1, 1]} : vector<4x256xf32> to vector<1x256xf32>
      %153 = vector.broadcast %151 : vector<8x1xf32> to vector<8x256xf32>
      %154 = vector.broadcast %152 : vector<1x256xf32> to vector<8x256xf32>
      %155 = arith.mulf %153, %154 : vector<8x256xf32>
      %156 = arith.addf %150, %155 : vector<8x256xf32>
      %c1_96 = arith.constant 1 : index
      %c0_97 = arith.constant 0 : index
      %c0_98 = arith.constant 0 : index
      %157 = vector.load %arg6[%c1_96, %c0_97, %c0_98] : memref<4x8x1xf32, #tpu.memory_space<vmem>>, vector<1x8x1xf32>
      %158 = vector.shape_cast %157 : vector<1x8x1xf32> to vector<8x1xf32>
      %159 = vector.broadcast %158 : vector<8x1xf32> to vector<8x256xf32>
      %160 = arith.addf %156, %159 : vector<8x256xf32>
      %161 = arith.addf %160, %57 : vector<8x256xf32>
      %162 = vector.extract_strided_slice %161 {offsets = [0, 0], sizes = [4, 256], strides = [1, 1]} : vector<8x256xf32> to vector<4x256xf32>
      %cst_99 = arith.constant 0.000000e+00 : f32
      %cst_100 = arith.constant 1.500000e+01 : f32
      %163 = vector.broadcast %cst_99 : f32 to vector<4x256xf32>
      %164 = arith.maximumf %163, %162 : vector<4x256xf32>
      %165 = vector.broadcast %cst_100 : f32 to vector<4x256xf32>
      %166 = arith.minimumf %165, %164 : vector<4x256xf32>
      %167 = vector.extract_strided_slice %161 {offsets = [4, 0], sizes = [4, 256], strides = [1, 1]} : vector<8x256xf32> to vector<4x256xf32>
      %cst_101 = arith.constant 0.000000e+00 : f32
      %cst_102 = arith.constant 1.500000e+01 : f32
      %168 = vector.broadcast %cst_101 : f32 to vector<4x256xf32>
      %169 = arith.maximumf %168, %167 : vector<4x256xf32>
      %170 = vector.broadcast %cst_102 : f32 to vector<4x256xf32>
      %171 = arith.minimumf %170, %169 : vector<4x256xf32>
      %172 = vector.extract_strided_slice %166 {offsets = [0, 0], sizes = [1, 256], strides = [1, 1]} : vector<4x256xf32> to vector<1x256xf32>
      %173 = vector.extract_strided_slice %166 {offsets = [1, 0], sizes = [1, 256], strides = [1, 1]} : vector<4x256xf32> to vector<1x256xf32>
      %174 = vector.extract_strided_slice %166 {offsets = [2, 0], sizes = [1, 256], strides = [1, 1]} : vector<4x256xf32> to vector<1x256xf32>
      %175 = vector.extract_strided_slice %166 {offsets = [3, 0], sizes = [1, 256], strides = [1, 1]} : vector<4x256xf32> to vector<1x256xf32>
      %176 = tpu.concatenate %172, %173, %174, %175 in 1 : vector<1x256xf32>, vector<1x256xf32>, vector<1x256xf32>, vector<1x256xf32> -> vector<1x1024xf32>
      %177 = vector.extract_strided_slice %171 {offsets = [0, 0], sizes = [1, 256], strides = [1, 1]} : vector<4x256xf32> to vector<1x256xf32>
      %178 = vector.extract_strided_slice %171 {offsets = [1, 0], sizes = [1, 256], strides = [1, 1]} : vector<4x256xf32> to vector<1x256xf32>
      %179 = vector.extract_strided_slice %171 {offsets = [2, 0], sizes = [1, 256], strides = [1, 1]} : vector<4x256xf32> to vector<1x256xf32>
      %180 = vector.extract_strided_slice %171 {offsets = [3, 0], sizes = [1, 256], strides = [1, 1]} : vector<4x256xf32> to vector<1x256xf32>
      %181 = tpu.concatenate %177, %178, %179, %180 in 1 : vector<1x256xf32>, vector<1x256xf32>, vector<1x256xf32>, vector<1x256xf32> -> vector<1x1024xf32>
      %182 = vector.broadcast %176 : vector<1x1024xf32> to vector<16x1024xf32>
      %183 = arith.subf %59, %182 : vector<16x1024xf32>
      %184 = math.absf %183 : vector<16x1024xf32>
      %cst_103 = arith.constant 1.000000e+00 : f32
      %185 = vector.broadcast %cst_103 : f32 to vector<16x1024xf32>
      %186 = arith.subf %185, %184 : vector<16x1024xf32>
      %cst_104 = arith.constant 0.000000e+00 : f32
      %187 = vector.broadcast %cst_104 : f32 to vector<16x1024xf32>
      %188 = arith.maximumf %187, %186 : vector<16x1024xf32>
      %c1_105 = arith.constant 1 : index
      %c0_106 = arith.constant 0 : index
      %c0_107 = arith.constant 0 : index
      %189 = vector.load %arg9[%c1_105, %c0_106, %c0_107] : memref<4x16x1024xf32, #tpu.memory_space<vmem>>, vector<1x16x1024xf32>
      %190 = vector.shape_cast %189 : vector<1x16x1024xf32> to vector<16x1024xf32>
      %191 = vector.shape_cast %188 : vector<16x1024xf32> to vector<1x16x1024xf32>
      tpu.vector_store %arg9[%c1_105, %c0_106, %c0_107], %191 {strides = array<i32>} : memref<4x16x1024xf32, #tpu.memory_space<vmem>>, vector<1x16x1024xf32>,
      %192 = vector.broadcast %181 : vector<1x1024xf32> to vector<16x1024xf32>
      %193 = arith.subf %61, %192 : vector<16x1024xf32>
      %194 = math.absf %193 : vector<16x1024xf32>
      %cst_108 = arith.constant 1.000000e+00 : f32
      %195 = vector.broadcast %cst_108 : f32 to vector<16x1024xf32>
      %196 = arith.subf %195, %194 : vector<16x1024xf32>
      %cst_109 = arith.constant 0.000000e+00 : f32
      %197 = vector.broadcast %cst_109 : f32 to vector<16x1024xf32>
      %198 = arith.maximumf %197, %196 : vector<16x1024xf32>
      %c1_110 = arith.constant 1 : index
      %c0_111 = arith.constant 0 : index
      %c0_112 = arith.constant 0 : index
      %199 = vector.load %arg10[%c1_110, %c0_111, %c0_112] : memref<4x16x1024xf32, #tpu.memory_space<vmem>>, vector<1x16x1024xf32>
      %200 = vector.shape_cast %199 : vector<1x16x1024xf32> to vector<16x1024xf32>
      %201 = vector.shape_cast %198 : vector<16x1024xf32> to vector<1x16x1024xf32>
      tpu.vector_store %arg10[%c1_110, %c0_111, %c0_112], %201 {strides = array<i32>} : memref<4x16x1024xf32, #tpu.memory_space<vmem>>, vector<1x16x1024xf32>,
      %c2_113 = arith.constant 2 : index
      %c0_114 = arith.constant 0 : index
      %c0_115 = arith.constant 0 : index
      %202 = vector.load %arg5[%c2_113, %c0_114, %c0_115] : memref<4x8x4xf32, #tpu.memory_space<vmem>>, vector<1x8x4xf32>
      %203 = vector.shape_cast %202 : vector<1x8x4xf32> to vector<8x4xf32>
      %204 = vector.extract_strided_slice %203 {offsets = [0, 0], sizes = [8, 1], strides = [1, 1]} : vector<8x4xf32> to vector<8x1xf32>
      %205 = vector.extract_strided_slice %56 {offsets = [0, 0], sizes = [1, 256], strides = [1, 1]} : vector<4x256xf32> to vector<1x256xf32>
      %206 = vector.broadcast %204 : vector<8x1xf32> to vector<8x256xf32>
      %207 = vector.broadcast %205 : vector<1x256xf32> to vector<8x256xf32>
      %208 = arith.mulf %206, %207 : vector<8x256xf32>
      %209 = vector.extract_strided_slice %203 {offsets = [0, 1], sizes = [8, 1], strides = [1, 1]} : vector<8x4xf32> to vector<8x1xf32>
      %210 = vector.extract_strided_slice %56 {offsets = [1, 0], sizes = [1, 256], strides = [1, 1]} : vector<4x256xf32> to vector<1x256xf32>
      %211 = vector.broadcast %209 : vector<8x1xf32> to vector<8x256xf32>
      %212 = vector.broadcast %210 : vector<1x256xf32> to vector<8x256xf32>
      %213 = arith.mulf %211, %212 : vector<8x256xf32>
      %214 = arith.addf %208, %213 : vector<8x256xf32>
      %215 = vector.extract_strided_slice %203 {offsets = [0, 2], sizes = [8, 1], strides = [1, 1]} : vector<8x4xf32> to vector<8x1xf32>
      %216 = vector.extract_strided_slice %56 {offsets = [2, 0], sizes = [1, 256], strides = [1, 1]} : vector<4x256xf32> to vector<1x256xf32>
      %217 = vector.broadcast %215 : vector<8x1xf32> to vector<8x256xf32>
      %218 = vector.broadcast %216 : vector<1x256xf32> to vector<8x256xf32>
      %219 = arith.mulf %217, %218 : vector<8x256xf32>
      %220 = arith.addf %214, %219 : vector<8x256xf32>
      %221 = vector.extract_strided_slice %203 {offsets = [0, 3], sizes = [8, 1], strides = [1, 1]} : vector<8x4xf32> to vector<8x1xf32>
      %222 = vector.extract_strided_slice %56 {offsets = [3, 0], sizes = [1, 256], strides = [1, 1]} : vector<4x256xf32> to vector<1x256xf32>
      %223 = vector.broadcast %221 : vector<8x1xf32> to vector<8x256xf32>
      %224 = vector.broadcast %222 : vector<1x256xf32> to vector<8x256xf32>
      %225 = arith.mulf %223, %224 : vector<8x256xf32>
      %226 = arith.addf %220, %225 : vector<8x256xf32>
      %c2_116 = arith.constant 2 : index
      %c0_117 = arith.constant 0 : index
      %c0_118 = arith.constant 0 : index
      %227 = vector.load %arg6[%c2_116, %c0_117, %c0_118] : memref<4x8x1xf32, #tpu.memory_space<vmem>>, vector<1x8x1xf32>
      %228 = vector.shape_cast %227 : vector<1x8x1xf32> to vector<8x1xf32>
      %229 = vector.broadcast %228 : vector<8x1xf32> to vector<8x256xf32>
      %230 = arith.addf %226, %229 : vector<8x256xf32>
      %231 = arith.addf %230, %57 : vector<8x256xf32>
      %232 = vector.extract_strided_slice %231 {offsets = [0, 0], sizes = [4, 256], strides = [1, 1]} : vector<8x256xf32> to vector<4x256xf32>
      %cst_119 = arith.constant 0.000000e+00 : f32
      %cst_120 = arith.constant 1.500000e+01 : f32
      %233 = vector.broadcast %cst_119 : f32 to vector<4x256xf32>
      %234 = arith.maximumf %233, %232 : vector<4x256xf32>
      %235 = vector.broadcast %cst_120 : f32 to vector<4x256xf32>
      %236 = arith.minimumf %235, %234 : vector<4x256xf32>
      %237 = vector.extract_strided_slice %231 {offsets = [4, 0], sizes = [4, 256], strides = [1, 1]} : vector<8x256xf32> to vector<4x256xf32>
      %cst_121 = arith.constant 0.000000e+00 : f32
      %cst_122 = arith.constant 1.500000e+01 : f32
      %238 = vector.broadcast %cst_121 : f32 to vector<4x256xf32>
      %239 = arith.maximumf %238, %237 : vector<4x256xf32>
      %240 = vector.broadcast %cst_122 : f32 to vector<4x256xf32>
      %241 = arith.minimumf %240, %239 : vector<4x256xf32>
      %242 = vector.extract_strided_slice %236 {offsets = [0, 0], sizes = [1, 256], strides = [1, 1]} : vector<4x256xf32> to vector<1x256xf32>
      %243 = vector.extract_strided_slice %236 {offsets = [1, 0], sizes = [1, 256], strides = [1, 1]} : vector<4x256xf32> to vector<1x256xf32>
      %244 = vector.extract_strided_slice %236 {offsets = [2, 0], sizes = [1, 256], strides = [1, 1]} : vector<4x256xf32> to vector<1x256xf32>
      %245 = vector.extract_strided_slice %236 {offsets = [3, 0], sizes = [1, 256], strides = [1, 1]} : vector<4x256xf32> to vector<1x256xf32>
      %246 = tpu.concatenate %242, %243, %244, %245 in 1 : vector<1x256xf32>, vector<1x256xf32>, vector<1x256xf32>, vector<1x256xf32> -> vector<1x1024xf32>
      %247 = vector.extract_strided_slice %241 {offsets = [0, 0], sizes = [1, 256], strides = [1, 1]} : vector<4x256xf32> to vector<1x256xf32>
      %248 = vector.extract_strided_slice %241 {offsets = [1, 0], sizes = [1, 256], strides = [1, 1]} : vector<4x256xf32> to vector<1x256xf32>
      %249 = vector.extract_strided_slice %241 {offsets = [2, 0], sizes = [1, 256], strides = [1, 1]} : vector<4x256xf32> to vector<1x256xf32>
      %250 = vector.extract_strided_slice %241 {offsets = [3, 0], sizes = [1, 256], strides = [1, 1]} : vector<4x256xf32> to vector<1x256xf32>
      %251 = tpu.concatenate %247, %248, %249, %250 in 1 : vector<1x256xf32>, vector<1x256xf32>, vector<1x256xf32>, vector<1x256xf32> -> vector<1x1024xf32>
      %252 = vector.broadcast %246 : vector<1x1024xf32> to vector<16x1024xf32>
      %253 = arith.subf %59, %252 : vector<16x1024xf32>
      %254 = math.absf %253 : vector<16x1024xf32>
      %cst_123 = arith.constant 1.000000e+00 : f32
      %255 = vector.broadcast %cst_123 : f32 to vector<16x1024xf32>
      %256 = arith.subf %255, %254 : vector<16x1024xf32>
      %cst_124 = arith.constant 0.000000e+00 : f32
      %257 = vector.broadcast %cst_124 : f32 to vector<16x1024xf32>
      %258 = arith.maximumf %257, %256 : vector<16x1024xf32>
      %c2_125 = arith.constant 2 : index
      %c0_126 = arith.constant 0 : index
      %c0_127 = arith.constant 0 : index
      %259 = vector.load %arg9[%c2_125, %c0_126, %c0_127] : memref<4x16x1024xf32, #tpu.memory_space<vmem>>, vector<1x16x1024xf32>
      %260 = vector.shape_cast %259 : vector<1x16x1024xf32> to vector<16x1024xf32>
      %261 = vector.shape_cast %258 : vector<16x1024xf32> to vector<1x16x1024xf32>
      tpu.vector_store %arg9[%c2_125, %c0_126, %c0_127], %261 {strides = array<i32>} : memref<4x16x1024xf32, #tpu.memory_space<vmem>>, vector<1x16x1024xf32>,
      %262 = vector.broadcast %251 : vector<1x1024xf32> to vector<16x1024xf32>
      %263 = arith.subf %61, %262 : vector<16x1024xf32>
      %264 = math.absf %263 : vector<16x1024xf32>
      %cst_128 = arith.constant 1.000000e+00 : f32
      %265 = vector.broadcast %cst_128 : f32 to vector<16x1024xf32>
      %266 = arith.subf %265, %264 : vector<16x1024xf32>
      %cst_129 = arith.constant 0.000000e+00 : f32
      %267 = vector.broadcast %cst_129 : f32 to vector<16x1024xf32>
      %268 = arith.maximumf %267, %266 : vector<16x1024xf32>
      %c2_130 = arith.constant 2 : index
      %c0_131 = arith.constant 0 : index
      %c0_132 = arith.constant 0 : index
      %269 = vector.load %arg10[%c2_130, %c0_131, %c0_132] : memref<4x16x1024xf32, #tpu.memory_space<vmem>>, vector<1x16x1024xf32>
      %270 = vector.shape_cast %269 : vector<1x16x1024xf32> to vector<16x1024xf32>
      %271 = vector.shape_cast %268 : vector<16x1024xf32> to vector<1x16x1024xf32>
      tpu.vector_store %arg10[%c2_130, %c0_131, %c0_132], %271 {strides = array<i32>} : memref<4x16x1024xf32, #tpu.memory_space<vmem>>, vector<1x16x1024xf32>,
      %c3_133 = arith.constant 3 : index
      %c0_134 = arith.constant 0 : index
      %c0_135 = arith.constant 0 : index
      %272 = vector.load %arg5[%c3_133, %c0_134, %c0_135] : memref<4x8x4xf32, #tpu.memory_space<vmem>>, vector<1x8x4xf32>
      %273 = vector.shape_cast %272 : vector<1x8x4xf32> to vector<8x4xf32>
      %274 = vector.extract_strided_slice %273 {offsets = [0, 0], sizes = [8, 1], strides = [1, 1]} : vector<8x4xf32> to vector<8x1xf32>
      %275 = vector.extract_strided_slice %56 {offsets = [0, 0], sizes = [1, 256], strides = [1, 1]} : vector<4x256xf32> to vector<1x256xf32>
      %276 = vector.broadcast %274 : vector<8x1xf32> to vector<8x256xf32>
      %277 = vector.broadcast %275 : vector<1x256xf32> to vector<8x256xf32>
      %278 = arith.mulf %276, %277 : vector<8x256xf32>
      %279 = vector.extract_strided_slice %273 {offsets = [0, 1], sizes = [8, 1], strides = [1, 1]} : vector<8x4xf32> to vector<8x1xf32>
      %280 = vector.extract_strided_slice %56 {offsets = [1, 0], sizes = [1, 256], strides = [1, 1]} : vector<4x256xf32> to vector<1x256xf32>
      %281 = vector.broadcast %279 : vector<8x1xf32> to vector<8x256xf32>
      %282 = vector.broadcast %280 : vector<1x256xf32> to vector<8x256xf32>
      %283 = arith.mulf %281, %282 : vector<8x256xf32>
      %284 = arith.addf %278, %283 : vector<8x256xf32>
      %285 = vector.extract_strided_slice %273 {offsets = [0, 2], sizes = [8, 1], strides = [1, 1]} : vector<8x4xf32> to vector<8x1xf32>
      %286 = vector.extract_strided_slice %56 {offsets = [2, 0], sizes = [1, 256], strides = [1, 1]} : vector<4x256xf32> to vector<1x256xf32>
      %287 = vector.broadcast %285 : vector<8x1xf32> to vector<8x256xf32>
      %288 = vector.broadcast %286 : vector<1x256xf32> to vector<8x256xf32>
      %289 = arith.mulf %287, %288 : vector<8x256xf32>
      %290 = arith.addf %284, %289 : vector<8x256xf32>
      %291 = vector.extract_strided_slice %273 {offsets = [0, 3], sizes = [8, 1], strides = [1, 1]} : vector<8x4xf32> to vector<8x1xf32>
      %292 = vector.extract_strided_slice %56 {offsets = [3, 0], sizes = [1, 256], strides = [1, 1]} : vector<4x256xf32> to vector<1x256xf32>
      %293 = vector.broadcast %291 : vector<8x1xf32> to vector<8x256xf32>
      %294 = vector.broadcast %292 : vector<1x256xf32> to vector<8x256xf32>
      %295 = arith.mulf %293, %294 : vector<8x256xf32>
      %296 = arith.addf %290, %295 : vector<8x256xf32>
      %c3_136 = arith.constant 3 : index
      %c0_137 = arith.constant 0 : index
      %c0_138 = arith.constant 0 : index
      %297 = vector.load %arg6[%c3_136, %c0_137, %c0_138] : memref<4x8x1xf32, #tpu.memory_space<vmem>>, vector<1x8x1xf32>
      %298 = vector.shape_cast %297 : vector<1x8x1xf32> to vector<8x1xf32>
      %299 = vector.broadcast %298 : vector<8x1xf32> to vector<8x256xf32>
      %300 = arith.addf %296, %299 : vector<8x256xf32>
      %301 = arith.addf %300, %57 : vector<8x256xf32>
      %302 = vector.extract_strided_slice %301 {offsets = [0, 0], sizes = [4, 256], strides = [1, 1]} : vector<8x256xf32> to vector<4x256xf32>
      %cst_139 = arith.constant 0.000000e+00 : f32
      %cst_140 = arith.constant 1.500000e+01 : f32
      %303 = vector.broadcast %cst_139 : f32 to vector<4x256xf32>
      %304 = arith.maximumf %303, %302 : vector<4x256xf32>
      %305 = vector.broadcast %cst_140 : f32 to vector<4x256xf32>
      %306 = arith.minimumf %305, %304 : vector<4x256xf32>
      %307 = vector.extract_strided_slice %301 {offsets = [4, 0], sizes = [4, 256], strides = [1, 1]} : vector<8x256xf32> to vector<4x256xf32>
      %cst_141 = arith.constant 0.000000e+00 : f32
      %cst_142 = arith.constant 1.500000e+01 : f32
      %308 = vector.broadcast %cst_141 : f32 to vector<4x256xf32>
      %309 = arith.maximumf %308, %307 : vector<4x256xf32>
      %310 = vector.broadcast %cst_142 : f32 to vector<4x256xf32>
      %311 = arith.minimumf %310, %309 : vector<4x256xf32>
      %312 = vector.extract_strided_slice %306 {offsets = [0, 0], sizes = [1, 256], strides = [1, 1]} : vector<4x256xf32> to vector<1x256xf32>
      %313 = vector.extract_strided_slice %306 {offsets = [1, 0], sizes = [1, 256], strides = [1, 1]} : vector<4x256xf32> to vector<1x256xf32>
      %314 = vector.extract_strided_slice %306 {offsets = [2, 0], sizes = [1, 256], strides = [1, 1]} : vector<4x256xf32> to vector<1x256xf32>
      %315 = vector.extract_strided_slice %306 {offsets = [3, 0], sizes = [1, 256], strides = [1, 1]} : vector<4x256xf32> to vector<1x256xf32>
      %316 = tpu.concatenate %312, %313, %314, %315 in 1 : vector<1x256xf32>, vector<1x256xf32>, vector<1x256xf32>, vector<1x256xf32> -> vector<1x1024xf32>
      %317 = vector.extract_strided_slice %311 {offsets = [0, 0], sizes = [1, 256], strides = [1, 1]} : vector<4x256xf32> to vector<1x256xf32>
      %318 = vector.extract_strided_slice %311 {offsets = [1, 0], sizes = [1, 256], strides = [1, 1]} : vector<4x256xf32> to vector<1x256xf32>
      %319 = vector.extract_strided_slice %311 {offsets = [2, 0], sizes = [1, 256], strides = [1, 1]} : vector<4x256xf32> to vector<1x256xf32>
      %320 = vector.extract_strided_slice %311 {offsets = [3, 0], sizes = [1, 256], strides = [1, 1]} : vector<4x256xf32> to vector<1x256xf32>
      %321 = tpu.concatenate %317, %318, %319, %320 in 1 : vector<1x256xf32>, vector<1x256xf32>, vector<1x256xf32>, vector<1x256xf32> -> vector<1x1024xf32>
      %322 = vector.broadcast %316 : vector<1x1024xf32> to vector<16x1024xf32>
      %323 = arith.subf %59, %322 : vector<16x1024xf32>
      %324 = math.absf %323 : vector<16x1024xf32>
      %cst_143 = arith.constant 1.000000e+00 : f32
      %325 = vector.broadcast %cst_143 : f32 to vector<16x1024xf32>
      %326 = arith.subf %325, %324 : vector<16x1024xf32>
      %cst_144 = arith.constant 0.000000e+00 : f32
      %327 = vector.broadcast %cst_144 : f32 to vector<16x1024xf32>
      %328 = arith.maximumf %327, %326 : vector<16x1024xf32>
      %c3_145 = arith.constant 3 : index
      %c0_146 = arith.constant 0 : index
      %c0_147 = arith.constant 0 : index
      %329 = vector.load %arg9[%c3_145, %c0_146, %c0_147] : memref<4x16x1024xf32, #tpu.memory_space<vmem>>, vector<1x16x1024xf32>
      %330 = vector.shape_cast %329 : vector<1x16x1024xf32> to vector<16x1024xf32>
      %331 = vector.shape_cast %328 : vector<16x1024xf32> to vector<1x16x1024xf32>
      tpu.vector_store %arg9[%c3_145, %c0_146, %c0_147], %331 {strides = array<i32>} : memref<4x16x1024xf32, #tpu.memory_space<vmem>>, vector<1x16x1024xf32>,
      %332 = vector.broadcast %321 : vector<1x1024xf32> to vector<16x1024xf32>
      %333 = arith.subf %61, %332 : vector<16x1024xf32>
      %334 = math.absf %333 : vector<16x1024xf32>
      %cst_148 = arith.constant 1.000000e+00 : f32
      %335 = vector.broadcast %cst_148 : f32 to vector<16x1024xf32>
      %336 = arith.subf %335, %334 : vector<16x1024xf32>
      %cst_149 = arith.constant 0.000000e+00 : f32
      %337 = vector.broadcast %cst_149 : f32 to vector<16x1024xf32>
      %338 = arith.maximumf %337, %336 : vector<16x1024xf32>
      %c3_150 = arith.constant 3 : index
      %c0_151 = arith.constant 0 : index
      %c0_152 = arith.constant 0 : index
      %339 = vector.load %arg10[%c3_150, %c0_151, %c0_152] : memref<4x16x1024xf32, #tpu.memory_space<vmem>>, vector<1x16x1024xf32>
      %340 = vector.shape_cast %339 : vector<1x16x1024xf32> to vector<16x1024xf32>
      %341 = vector.shape_cast %338 : vector<16x1024xf32> to vector<1x16x1024xf32>
      tpu.vector_store %arg10[%c3_150, %c0_151, %c0_152], %341 {strides = array<i32>} : memref<4x16x1024xf32, #tpu.memory_space<vmem>>, vector<1x16x1024xf32>,
    } else {
    }
    %c0 = arith.constant 0 : index
    %c0_1 = arith.constant 0 : index
    %c0_2 = arith.constant 0 : index
    %c0_3 = arith.constant 0 : index
    %c0_4 = arith.constant 0 : index
    %3 = vector.load %arg4[%c0, %c0_1, %c0_2, %c0_3, %c0_4] : memref<1x1x4x16x16xf32, #tpu.memory_space<vmem>>, vector<1x1x1x16x16xf32>
    %4 = vector.shape_cast %3 : vector<1x1x1x16x16xf32> to vector<16x16xf32>
    %c0_5 = arith.constant 0 : index
    %c0_6 = arith.constant 0 : index
    %c0_7 = arith.constant 0 : index
    %5 = vector.load %arg9[%c0_5, %c0_6, %c0_7] : memref<4x16x1024xf32, #tpu.memory_space<vmem>>, vector<1x16x1024xf32>
    %6 = vector.shape_cast %5 : vector<1x16x1024xf32> to vector<16x1024xf32>
    %cst = arith.constant dense<0.000000e+00> : vector<16x1024xf32>
    %7 = tpu.matmul %4, %6, %cst {dimension_numbers = #tpu.dot_dimension_numbers<[1], [0], [0], [1], [0, 0, 1, 1], [], []>} : vector<16x16xf32>, vector<16x1024xf32>, vector<16x1024xf32> -> vector<16x1024xf32>
    %c0_8 = arith.constant 0 : index
    %c0_9 = arith.constant 0 : index
    %c0_10 = arith.constant 0 : index
    %8 = vector.load %arg10[%c0_8, %c0_9, %c0_10] : memref<4x16x1024xf32, #tpu.memory_space<vmem>>, vector<1x16x1024xf32>
    %9 = vector.shape_cast %8 : vector<1x16x1024xf32> to vector<16x1024xf32>
    %10 = arith.mulf %7, %9 : vector<16x1024xf32>
    %cst_11 = arith.constant dense<0.000000e+00> : vector<1024xf32>
    %11 = vector.multi_reduction <add>, %10, %cst_11 [0] : vector<16x1024xf32> to vector<1024xf32>
    %12 = vector.shape_cast %11 : vector<1024xf32> to vector<1x1024xf32>
    %c0_12 = arith.constant 0 : index
    %c0_13 = arith.constant 0 : index
    %c0_14 = arith.constant 0 : index
    %c0_15 = arith.constant 0 : index
    %c0_16 = arith.constant 0 : index
    %13 = vector.load %arg8[%c0_12, %c0_13, %c0_14, %c0_15, %c0_16] : memref<1x1x4x1x1024xf32, #tpu.memory_space<vmem>>, vector<1x1x1x1x1024xf32>
    %14 = vector.shape_cast %13 : vector<1x1x1x1x1024xf32> to vector<1x1024xf32>
    %15 = vector.shape_cast %12 : vector<1x1024xf32> to vector<1x1x1x1x1024xf32>
    tpu.vector_store %arg8[%c0_12, %c0_13, %c0_14, %c0_15, %c0_16], %15 {strides = array<i32>} : memref<1x1x4x1x1024xf32, #tpu.memory_space<vmem>>, vector<1x1x1x1x1024xf32>,
    %c0_17 = arith.constant 0 : index
    %c0_18 = arith.constant 0 : index
    %c1 = arith.constant 1 : index
    %c0_19 = arith.constant 0 : index
    %c0_20 = arith.constant 0 : index
    %16 = vector.load %arg4[%c0_17, %c0_18, %c1, %c0_19, %c0_20] : memref<1x1x4x16x16xf32, #tpu.memory_space<vmem>>, vector<1x1x1x16x16xf32>
    %17 = vector.shape_cast %16 : vector<1x1x1x16x16xf32> to vector<16x16xf32>
    %c1_21 = arith.constant 1 : index
    %c0_22 = arith.constant 0 : index
    %c0_23 = arith.constant 0 : index
    %18 = vector.load %arg9[%c1_21, %c0_22, %c0_23] : memref<4x16x1024xf32, #tpu.memory_space<vmem>>, vector<1x16x1024xf32>
    %19 = vector.shape_cast %18 : vector<1x16x1024xf32> to vector<16x1024xf32>
    %cst_24 = arith.constant dense<0.000000e+00> : vector<16x1024xf32>
    %20 = tpu.matmul %17, %19, %cst_24 {dimension_numbers = #tpu.dot_dimension_numbers<[1], [0], [0], [1], [0, 0, 1, 1], [], []>} : vector<16x16xf32>, vector<16x1024xf32>, vector<16x1024xf32> -> vector<16x1024xf32>
    %c1_25 = arith.constant 1 : index
    %c0_26 = arith.constant 0 : index
    %c0_27 = arith.constant 0 : index
    %21 = vector.load %arg10[%c1_25, %c0_26, %c0_27] : memref<4x16x1024xf32, #tpu.memory_space<vmem>>, vector<1x16x1024xf32>
    %22 = vector.shape_cast %21 : vector<1x16x1024xf32> to vector<16x1024xf32>
    %23 = arith.mulf %20, %22 : vector<16x1024xf32>
    %cst_28 = arith.constant dense<0.000000e+00> : vector<1024xf32>
    %24 = vector.multi_reduction <add>, %23, %cst_28 [0] : vector<16x1024xf32> to vector<1024xf32>
    %25 = vector.shape_cast %24 : vector<1024xf32> to vector<1x1024xf32>
    %c0_29 = arith.constant 0 : index
    %c0_30 = arith.constant 0 : index
    %c1_31 = arith.constant 1 : index
    %c0_32 = arith.constant 0 : index
    %c0_33 = arith.constant 0 : index
    %26 = vector.load %arg8[%c0_29, %c0_30, %c1_31, %c0_32, %c0_33] : memref<1x1x4x1x1024xf32, #tpu.memory_space<vmem>>, vector<1x1x1x1x1024xf32>
    %27 = vector.shape_cast %26 : vector<1x1x1x1x1024xf32> to vector<1x1024xf32>
    %28 = vector.shape_cast %25 : vector<1x1024xf32> to vector<1x1x1x1x1024xf32>
    tpu.vector_store %arg8[%c0_29, %c0_30, %c1_31, %c0_32, %c0_33], %28 {strides = array<i32>} : memref<1x1x4x1x1024xf32, #tpu.memory_space<vmem>>, vector<1x1x1x1x1024xf32>,
    %c0_34 = arith.constant 0 : index
    %c0_35 = arith.constant 0 : index
    %c2 = arith.constant 2 : index
    %c0_36 = arith.constant 0 : index
    %c0_37 = arith.constant 0 : index
    %29 = vector.load %arg4[%c0_34, %c0_35, %c2, %c0_36, %c0_37] : memref<1x1x4x16x16xf32, #tpu.memory_space<vmem>>, vector<1x1x1x16x16xf32>
    %30 = vector.shape_cast %29 : vector<1x1x1x16x16xf32> to vector<16x16xf32>
    %c2_38 = arith.constant 2 : index
    %c0_39 = arith.constant 0 : index
    %c0_40 = arith.constant 0 : index
    %31 = vector.load %arg9[%c2_38, %c0_39, %c0_40] : memref<4x16x1024xf32, #tpu.memory_space<vmem>>, vector<1x16x1024xf32>
    %32 = vector.shape_cast %31 : vector<1x16x1024xf32> to vector<16x1024xf32>
    %cst_41 = arith.constant dense<0.000000e+00> : vector<16x1024xf32>
    %33 = tpu.matmul %30, %32, %cst_41 {dimension_numbers = #tpu.dot_dimension_numbers<[1], [0], [0], [1], [0, 0, 1, 1], [], []>} : vector<16x16xf32>, vector<16x1024xf32>, vector<16x1024xf32> -> vector<16x1024xf32>
    %c2_42 = arith.constant 2 : index
    %c0_43 = arith.constant 0 : index
    %c0_44 = arith.constant 0 : index
    %34 = vector.load %arg10[%c2_42, %c0_43, %c0_44] : memref<4x16x1024xf32, #tpu.memory_space<vmem>>, vector<1x16x1024xf32>
    %35 = vector.shape_cast %34 : vector<1x16x1024xf32> to vector<16x1024xf32>
    %36 = arith.mulf %33, %35 : vector<16x1024xf32>
    %cst_45 = arith.constant dense<0.000000e+00> : vector<1024xf32>
    %37 = vector.multi_reduction <add>, %36, %cst_45 [0] : vector<16x1024xf32> to vector<1024xf32>
    %38 = vector.shape_cast %37 : vector<1024xf32> to vector<1x1024xf32>
    %c0_46 = arith.constant 0 : index
    %c0_47 = arith.constant 0 : index
    %c2_48 = arith.constant 2 : index
    %c0_49 = arith.constant 0 : index
    %c0_50 = arith.constant 0 : index
    %39 = vector.load %arg8[%c0_46, %c0_47, %c2_48, %c0_49, %c0_50] : memref<1x1x4x1x1024xf32, #tpu.memory_space<vmem>>, vector<1x1x1x1x1024xf32>
    %40 = vector.shape_cast %39 : vector<1x1x1x1x1024xf32> to vector<1x1024xf32>
    %41 = vector.shape_cast %38 : vector<1x1024xf32> to vector<1x1x1x1x1024xf32>
    tpu.vector_store %arg8[%c0_46, %c0_47, %c2_48, %c0_49, %c0_50], %41 {strides = array<i32>} : memref<1x1x4x1x1024xf32, #tpu.memory_space<vmem>>, vector<1x1x1x1x1024xf32>,
    %c0_51 = arith.constant 0 : index
    %c0_52 = arith.constant 0 : index
    %c3 = arith.constant 3 : index
    %c0_53 = arith.constant 0 : index
    %c0_54 = arith.constant 0 : index
    %42 = vector.load %arg4[%c0_51, %c0_52, %c3, %c0_53, %c0_54] : memref<1x1x4x16x16xf32, #tpu.memory_space<vmem>>, vector<1x1x1x16x16xf32>
    %43 = vector.shape_cast %42 : vector<1x1x1x16x16xf32> to vector<16x16xf32>
    %c3_55 = arith.constant 3 : index
    %c0_56 = arith.constant 0 : index
    %c0_57 = arith.constant 0 : index
    %44 = vector.load %arg9[%c3_55, %c0_56, %c0_57] : memref<4x16x1024xf32, #tpu.memory_space<vmem>>, vector<1x16x1024xf32>
    %45 = vector.shape_cast %44 : vector<1x16x1024xf32> to vector<16x1024xf32>
    %cst_58 = arith.constant dense<0.000000e+00> : vector<16x1024xf32>
    %46 = tpu.matmul %43, %45, %cst_58 {dimension_numbers = #tpu.dot_dimension_numbers<[1], [0], [0], [1], [0, 0, 1, 1], [], []>} : vector<16x16xf32>, vector<16x1024xf32>, vector<16x1024xf32> -> vector<16x1024xf32>
    %c3_59 = arith.constant 3 : index
    %c0_60 = arith.constant 0 : index
    %c0_61 = arith.constant 0 : index
    %47 = vector.load %arg10[%c3_59, %c0_60, %c0_61] : memref<4x16x1024xf32, #tpu.memory_space<vmem>>, vector<1x16x1024xf32>
    %48 = vector.shape_cast %47 : vector<1x16x1024xf32> to vector<16x1024xf32>
    %49 = arith.mulf %46, %48 : vector<16x1024xf32>
    %cst_62 = arith.constant dense<0.000000e+00> : vector<1024xf32>
    %50 = vector.multi_reduction <add>, %49, %cst_62 [0] : vector<16x1024xf32> to vector<1024xf32>
    %51 = vector.shape_cast %50 : vector<1024xf32> to vector<1x1024xf32>
    %c0_63 = arith.constant 0 : index
    %c0_64 = arith.constant 0 : index
    %c3_65 = arith.constant 3 : index
    %c0_66 = arith.constant 0 : index
    %c0_67 = arith.constant 0 : index
    %52 = vector.load %arg8[%c0_63, %c0_64, %c3_65, %c0_66, %c0_67] : memref<1x1x4x1x1024xf32, #tpu.memory_space<vmem>>, vector<1x1x1x1x1024xf32>
    %53 = vector.shape_cast %52 : vector<1x1x1x1x1024xf32> to vector<1x1024xf32>
    %54 = vector.shape_cast %51 : vector<1x1024xf32> to vector<1x1x1x1x1024xf32>
    tpu.vector_store %arg8[%c0_63, %c0_64, %c3_65, %c0_66, %c0_67], %54 {strides = array<i32>} : memref<1x1x4x1x1024xf32, #tpu.memory_space<vmem>>, vector<1x1x1x1x1024xf32>,
    return
  }
  func.func @transform_0(%arg0: i32, %arg1: i32, %arg2: i32) -> (i32, i32, i32) {
    %c0_i32 = arith.constant 0 : i32
    %c0_i32_0 = arith.constant 0 : i32
    %c0_i32_1 = arith.constant 0 : i32
    return %arg0, %c0_i32, %c0_i32_0 : i32, i32, i32
  }
  func.func @transform_1(%arg0: i32, %arg1: i32, %arg2: i32) -> (i32, i32, i32, i32, i32) {
    %c0_i32 = arith.constant 0 : i32
    %c0_i32_0 = arith.constant 0 : i32
    %c0_i32_1 = arith.constant 0 : i32
    return %arg0, %arg1, %c0_i32, %arg2, %c0_i32_0 : i32, i32, i32, i32, i32
  }
  func.func @transform_2(%arg0: i32, %arg1: i32, %arg2: i32) -> (i32, i32, i32) {
    %c0_i32 = arith.constant 0 : i32
    %c0_i32_0 = arith.constant 0 : i32
    %c0_i32_1 = arith.constant 0 : i32
    return %arg1, %c0_i32, %c0_i32_0 : i32, i32, i32
  }
  func.func @transform_3(%arg0: i32, %arg1: i32, %arg2: i32) -> (i32, i32, i32) {
    %c0_i32 = arith.constant 0 : i32
    %c0_i32_0 = arith.constant 0 : i32
    %c0_i32_1 = arith.constant 0 : i32
    return %arg1, %c0_i32, %c0_i32_0 : i32, i32, i32
  }
  func.func @transform_4(%arg0: i32, %arg1: i32, %arg2: i32) -> (i32, i32) {
    %c0_i32 = arith.constant 0 : i32
    %c0_i32_0 = arith.constant 0 : i32
    %c0_i32_1 = arith.constant 0 : i32
    return %c0_i32, %c0_i32_0 : i32, i32
  }
  func.func @transform_5(%arg0: i32, %arg1: i32, %arg2: i32) -> (i32, i32, i32, i32, i32) {
    %c0_i32 = arith.constant 0 : i32
    %c0_i32_0 = arith.constant 0 : i32
    %c0_i32_1 = arith.constant 0 : i32
    return %arg0, %arg1, %c0_i32, %arg2, %c0_i32_0 : i32, i32, i32, i32, i32
  }
}

</mosaic_0001>

<llo_original>
// kernel: tpu_custom_call.1
$region0: #{tpu_custom_call.1}
  #allocation0 [shape = 'u32[]', space=smem, size = 0x4, offset = 0x4, fixed_abs, tag = 'smem constant byte address 0x4 - core index']
  #allocation1 [shape = 'u32[144,128]{1,0:T(1,128)}', space=vmem, size = 0x12000, scoped, tag = 'internal scratch']
  #allocation2 [shape = 'f32[4,16,1024]{2,1,0:T(8,128)}', space=vmem, size = 0x40000, scoped, tag = 'scratch operand']
  #allocation3 [shape = 'f32[4,16,1024]{2,1,0:T(8,128)}', space=vmem, size = 0x40000, scoped, tag = 'scratch operand']
  %s0 = inlined_call_operand.vmem [shape: f32[2,4,256], index: 0, kind: input, shape index: {}]
  %s1 = inlined_call_operand.hbm [shape: f32[2,1,4,16,16], index: 1, kind: input, shape index: {}]
  %s2 = inlined_call_operand.vmem [shape: f32[4,8,4], index: 2, kind: input, shape index: {}]
  %s3 = inlined_call_operand.vmem [shape: f32[4,8,1], index: 3, kind: input, shape index: {}]
  %s4 = inlined_call_operand.vmem [shape: f32[8,256], index: 4, kind: input, shape index: {}]
  %s5 = inlined_call_operand.hbm [shape: f32[2,1,4,1,1024], index: 5, kind: output, shape index: {}]
  %s6 = sld [smem:[#allocation0]]
  $region61: #{tpu_custom_call.1} parent=0
    _
  %s8 = ssub.s32 1, %s6
  %s9 = scalar_select 0, %s8, %s6
  $region1: #{tpu_custom_call.1} parent=0
    #allocation4 [shape = 'u8[65536]{0}', space=vmem, size = 0x10000, scoped, tag = 'input window, operand 1']
    #allocation5 [shape = 's32[2]{0}', space=sflag, size = 0x8, scoped, tag = 'scoped memory for tpu_custom_call.1']
    #allocation6 [shape = 's32[2]{0}', space=sflag, size = 0x8, scoped, tag = 'scoped memory for tpu_custom_call.1']
    #allocation7 [shape = 'u8[32768]{0}', space=vmem, size = 0x8000, scoped, tag = 'output window, operand 0']
    %10 = vsyncpa [#allocation5], 0
    %s11 = scalar_lea.sflag [#allocation5], 1
    %12 = vsyncpa %s11, 0
    %13 = vsyncpa [#allocation6], 0
    %s14 = scalar_lea.sflag [#allocation6], 1
    %15 = vsyncpa %s14, 0
    loop: start=0, step=1, limit=4
    $region2: #{tpu_custom_call.1} parent=1 // loop_pre_header
      _
    $region3: #{tpu_custom_call.1} parent=1 // loop_header
      %s17 = sphi 0, %s21
      %p18 = scmp.ge.s32.totalorder %s17, 4
      %s24 = sphi 0, %s43
      %s25 = sphi 0, %s39
      %s26 = sphi 0, %s35
      %s27 = sphi 0, %s24
      %s28 = sphi 0, %s25
      %s29 = sphi 0, %s26
      %s30 = sphi 0, %s27
      %s31 = sphi 0, %s28
      %s32 = sphi 0, %s29
      %s46 = sphi 0, %s48
      %s49 = sphi 0, %s46
      %s50 = sphi 0, %s49
      %s66 = sphi 0, %s50
      %s76 = sphi 0, %s78
      %s79 = sphi 0, %s76
      %s80 = sphi 0, %s79
      %s96 = sphi 0, %s80
      %s102 = sphi 0, %s104
      %s105 = sphi 0, %s102
      %s106 = sphi 0, %s105
      %s122 = sphi 0, %s106
      %s128 = sphi 0, %s130
      %s131 = sphi 0, %s128
      %s132 = sphi 0, %s131
      %s148 = sphi 0, %s132
      %s152 = sphi 0, %s152
      %s154 = sphi 0, %s152
      %s155 = sphi 0, %s154
      %s169 = sphi 0, %s155
      %s179 = sphi 0, %s181
      %s182 = sphi 0, %s179
      %s183 = sphi 0, %s182
      %s199 = sphi 0, %s183
    $region4: #{tpu_custom_call.1} parent=1 // loop_header_branch
      %20 = sbr.rel (%p18) target = $region8
    $region5: #{tpu_custom_call.1} parent=1 // loop_body
      %s22 = ssub.s32 %s17, 1
      %s23 = ssub.s32 %s17, 2
      %s33 = sadd.s32 1, %s26
      %p34 = scmp.ge.s32.totalorder %s33, 1
      %s35 = scalar_select %p34, 0, %s33
      %s36 = sadd.s32 1, %s25
      %s37 = scalar_select %p34, %s36, %s25
      %p38 = scmp.ge.s32.totalorder %s37, 1
      %s39 = scalar_select %p38, 0, %s37
      %s40 = sadd.s32 1, %s24
      %s41 = scalar_select %p38, %s40, %s24
      %p42 = scmp.ge.s32.totalorder %s41, 2
      %s43 = scalar_select %p42, 0, %s41
      %s44 = ssub.s32 %s24, %s43
      %p45 = scmp.eq.s32.totalorder %s44, 0
      %s47 = sadd.s32 %s46, 1
      %s48 = scalar_select %p45, %s46, %s47
      %p51 = pneg %p45
      %p52 = scmp.eq.s32.totalorder %s17, 1
      %p53 = por %p51, %p52
      %p54 = scmp.ne.s32.totalorder %s46, %s49
      %p55 = scmp.eq.s32.totalorder %s17, 0
      %p56 = por %p54, %p55
      %p57 = scmp.ne.s32.totalorder %s46, %s49
      %p58 = scmp.eq.s32.totalorder %s22, 1
      %p59 = por %p57, %p58
      %p60 = scmp.ne.s32.totalorder %s49, %s50
      %p61 = scmp.eq.s32.totalorder %s22, 0
      %p62 = por %p60, %p61
      %p63 = scmp.ne.s32.totalorder %s49, %s50
      %p64 = scmp.eq.s32.totalorder %s23, 1
      %p65 = por %p63, %p64
      %p67 = scmp.ne.s32.totalorder %s50, %s66
      %p68 = scmp.eq.s32.totalorder %s23, 0
      %p69 = por %p67, %p68
      %s70 = ssub.s32 %s24, %s43
      %s71 = ssub.s32 %s25, %s39
      %s72 = sor.u32 %s70, %s71
      %s73 = ssub.s32 %s26, %s35
      %s74 = sor.u32 %s72, %s73
      %p75 = scmp.eq.s32.totalorder %s74, 0
      %s77 = sadd.s32 %s76, 1
      %s78 = scalar_select %p75, %s76, %s77
      %p81 = pneg %p75
      %p82 = scmp.eq.s32.totalorder %s17, 1
      %p83 = por %p81, %p82
      %p84 = scmp.ne.s32.totalorder %s76, %s79
      %p85 = scmp.eq.s32.totalorder %s17, 0
      %p86 = por %p84, %p85
      %p87 = scmp.ne.s32.totalorder %s76, %s79
      %p88 = scmp.eq.s32.totalorder %s22, 1
      %p89 = por %p87, %p88
      %p90 = scmp.ne.s32.totalorder %s79, %s80
      %p91 = scmp.eq.s32.totalorder %s22, 0
      %p92 = por %p90, %p91
      %p93 = scmp.ne.s32.totalorder %s79, %s80
      %p94 = scmp.eq.s32.totalorder %s23, 1
      %p95 = por %p93, %p94
      %p97 = scmp.ne.s32.totalorder %s80, %s96
      %p98 = scmp.eq.s32.totalorder %s23, 0
      %p99 = por %p97, %p98
      %s100 = ssub.s32 %s25, %s39
      %p101 = scmp.eq.s32.totalorder %s100, 0
      %s103 = sadd.s32 %s102, 1
      %s104 = scalar_select %p101, %s102, %s103
      %p107 = pneg %p101
      %p108 = scmp.eq.s32.totalorder %s17, 1
      %p109 = por %p107, %p108
      %p110 = scmp.ne.s32.totalorder %s102, %s105
      %p111 = scmp.eq.s32.totalorder %s17, 0
      %p112 = por %p110, %p111
      %p113 = scmp.ne.s32.totalorder %s102, %s105
      %p114 = scmp.eq.s32.totalorder %s22, 1
      %p115 = por %p113, %p114
      %p116 = scmp.ne.s32.totalorder %s105, %s106
      %p117 = scmp.eq.s32.totalorder %s22, 0
      %p118 = por %p116, %p117
      %p119 = scmp.ne.s32.totalorder %s105, %s106
      %p120 = scmp.eq.s32.totalorder %s23, 1
      %p121 = por %p119, %p120
      %p123 = scmp.ne.s32.totalorder %s106, %s122
      %p124 = scmp.eq.s32.totalorder %s23, 0
      %p125 = por %p123, %p124
      %s126 = ssub.s32 %s25, %s39
      %p127 = scmp.eq.s32.totalorder %s126, 0
      %s129 = sadd.s32 %s128, 1
      %s130 = scalar_select %p127, %s128, %s129
      %p133 = pneg %p127
      %p134 = scmp.eq.s32.totalorder %s17, 1
      %p135 = por %p133, %p134
      %p136 = scmp.ne.s32.totalorder %s128, %s131
      %p137 = scmp.eq.s32.totalorder %s17, 0
      %p138 = por %p136, %p137
      %p139 = scmp.ne.s32.totalorder %s128, %s131
      %p140 = scmp.eq.s32.totalorder %s22, 1
      %p141 = por %p139, %p140
      %p142 = scmp.ne.s32.totalorder %s131, %s132
      %p143 = scmp.eq.s32.totalorder %s22, 0
      %p144 = por %p142, %p143
      %p145 = scmp.ne.s32.totalorder %s131, %s132
      %p146 = scmp.eq.s32.totalorder %s23, 1
      %p147 = por %p145, %p146
      %p149 = scmp.ne.s32.totalorder %s132, %s148
      %p150 = scmp.eq.s32.totalorder %s23, 0
      %p151 = por %p149, %p150
      %s153 = sadd.s32 %s152, 1
      %p156 = scmp.eq.s32.totalorder %s17, 1
      %p157 = scmp.ne.s32.totalorder %s152, %s154
      %p158 = scmp.eq.s32.totalorder %s17, 0
      %p159 = por %p157, %p158
      %p160 = scmp.ne.s32.totalorder %s152, %s154
      %p161 = scmp.eq.s32.totalorder %s22, 1
      %p162 = por %p160, %p161
      %p163 = scmp.ne.s32.totalorder %s154, %s155
      %p164 = scmp.eq.s32.totalorder %s22, 0
      %p165 = por %p163, %p164
      %p166 = scmp.ne.s32.totalorder %s154, %s155
      %p167 = scmp.eq.s32.totalorder %s23, 1
      %p168 = por %p166, %p167
      %p170 = scmp.ne.s32.totalorder %s155, %s169
      %p171 = scmp.eq.s32.totalorder %s23, 0
      %p172 = por %p170, %p171
      %s173 = ssub.s32 %s24, %s43
      %s174 = ssub.s32 %s25, %s39
      %s175 = sor.u32 %s173, %s174
      %s176 = ssub.s32 %s26, %s35
      %s177 = sor.u32 %s175, %s176
      %p178 = scmp.eq.s32.totalorder %s177, 0
      %s180 = sadd.s32 %s179, 1
      %s181 = scalar_select %p178, %s179, %s180
      %p184 = pneg %p178
      %p185 = scmp.eq.s32.totalorder %s17, 1
      %p186 = por %p184, %p185
      %p187 = scmp.ne.s32.totalorder %s179, %s182
      %p188 = scmp.eq.s32.totalorder %s17, 0
      %p189 = por %p187, %p188
      %p190 = scmp.ne.s32.totalorder %s179, %s182
      %p191 = scmp.eq.s32.totalorder %s22, 1
      %p192 = por %p190, %p191
      %p193 = scmp.ne.s32.totalorder %s182, %s183
      %p194 = scmp.eq.s32.totalorder %s22, 0
      %p195 = por %p193, %p194
      %p196 = scmp.ne.s32.totalorder %s182, %s183
      %p197 = scmp.eq.s32.totalorder %s23, 1
      %p198 = por %p196, %p197
      %p200 = scmp.ne.s32.totalorder %s183, %s199
      %p201 = scmp.eq.s32.totalorder %s23, 0
      %p202 = por %p200, %p201
      %p203 = scmp.le.s32.totalorder 1, %s17
      %p204 = scmp.lt.s32.totalorder %s17, 3
      %p205 = pnand %p203, %p204
      %p206 = pneg %p205
      // Predicated region
      $region9: #{tpu_custom_call.1} parent=5 // pred_check
        _
      $region10: #{tpu_custom_call.1} parent=5 // pred_check_branch
        %208 = sbr.rel (%p205) target = $region12
      $region11: #{tpu_custom_call.1} parent=5 // pred_region
        %s209 = ssub.s32 %s17, 1
        // Predicated region
        $region13: #{tpu_custom_call.1} parent=11 // pred_check
          %p210 = pneg %p118
        $region14: #{tpu_custom_call.1} parent=11 // pred_check_branch
          %212 = sbr.rel (%p210) target = $region16
        $region15: #{tpu_custom_call.1} parent=11 // pred_region
          %s213 = smul.u32 4, %s28
          %p214 = scmp.lt.s32.totalorder %s213, 3
          %s215 = scalar_select %p214, %s213, 3
          %s216 = smul.addr %s215, 8
          %s217 = scalar_lea.vmem %s2, %s216
          %s218 = smul.u32 4, %s28
        $region16: #{tpu_custom_call.1} parent=11 // pred_fallthru
          _
        // Predicated region
        $region17: #{tpu_custom_call.1} parent=11 // pred_check
          %p219 = pneg %p144
        $region18: #{tpu_custom_call.1} parent=11 // pred_check_branch
          %221 = sbr.rel (%p219) target = $region20
        $region19: #{tpu_custom_call.1} parent=11 // pred_region
          %s222 = smul.u32 4, %s28
          %p223 = scmp.lt.s32.totalorder %s222, 3
          %s224 = scalar_select %p223, %s222, 3
          %s225 = smul.addr %s224, 8
          %s226 = scalar_lea.vmem %s3, %s225
          %s227 = smul.u32 4, %s28
        $region20: #{tpu_custom_call.1} parent=11 // pred_fallthru
          _
        // Predicated region
        $region21: #{tpu_custom_call.1} parent=11 // pred_check
          %p228 = pneg %p165
        $region22: #{tpu_custom_call.1} parent=11 // pred_check_branch
          %230 = sbr.rel (%p228) target = $region24
        $region23: #{tpu_custom_call.1} parent=11 // pred_region
          _
        $region24: #{tpu_custom_call.1} parent=11 // pred_fallthru
          _
      $region12: #{tpu_custom_call.1} parent=5 // pred_fallthru
        _
      %p231 = scmp.lt.s32.totalorder %s17, 2
      // Predicated region
      $region25: #{tpu_custom_call.1} parent=5 // pred_check
        %p232 = pneg %p231
      $region26: #{tpu_custom_call.1} parent=5 // pred_check_branch
        %234 = sbr.rel (%p232) target = $region28
      $region27: #{tpu_custom_call.1} parent=5 // pred_region
        // Predicated region
        $region29: #{tpu_custom_call.1} parent=27 // pred_check
          %p235 = pneg %p56
        $region30: #{tpu_custom_call.1} parent=27 // pred_check_branch
          %237 = sbr.rel (%p235) target = $region32
        $region31: #{tpu_custom_call.1} parent=27 // pred_region
          %p238 = scmp.lt.s32.totalorder %s24, 1
          %s239 = scalar_select %p238, %s24, 1
          %s240 = smul.addr %s239, 2
          %s241 = smul.addr %s240, 4
          %s242 = scalar_lea.vmem %s0, %s241
        $region32: #{tpu_custom_call.1} parent=27 // pred_fallthru
          _
        // Predicated region
        $region33: #{tpu_custom_call.1} parent=27 // pred_check
          %p243 = pneg %p86
        $region34: #{tpu_custom_call.1} parent=27 // pred_check_branch
          %245 = sbr.rel (%p243) target = $region36
        $region35: #{tpu_custom_call.1} parent=27 // pred_region
          %s246 = sand.u32 %s76, 1
          %s247 = scalar_lea.sflag [#allocation5], %s246
          %s248 = sand.u32 %s76, 1
          %s249 = smul.addr %s248, 64
          %s250 = scalar_lea.vmem [#allocation4], %s249
          %s251 = smul.u32 2, %s26
          %s253 = ssub.s32 1024, 1024
          %254 = vsyncadd %s247, %s253
          %s255 = smul.addr %s25, 8
          %s256 = sadd.s32 %s251, %s255
          %s257 = smul.addr %s24, 8
          %s258 = sadd.s32 %s256, %s257
          %s259 = smul.addr %s258, 128
          %s260 = scalar_lea.hbm %s1, %s259
          %s261 = sshll.u32 %s250, 4
          %s262 = int_to_ptr.vmem [resolvable:$true] %s261
          %267 = dma.hbm_to_vmem [thread:$0]  %s260, 1024, %s262, %s247, 128, 128, 8
        $region36: #{tpu_custom_call.1} parent=27 // pred_fallthru
          _
      $region28: #{tpu_custom_call.1} parent=5 // pred_fallthru
        _
      %p268 = scmp.le.s32.totalorder 1, %s17
      %p269 = scmp.lt.s32.totalorder %s17, 3
      %p270 = pnand %p268, %p269
      %p271 = pneg %p270
      // Predicated region
      $region37: #{tpu_custom_call.1} parent=5 // pred_check
        _
      $region38: #{tpu_custom_call.1} parent=5 // pred_check_branch
        %273 = sbr.rel (%p270) target = $region40
      $region39: #{tpu_custom_call.1} parent=5 // pred_region
        %s274 = ssub.s32 %s17, 1
        %s275 = sand.u32 %s79, 1
        %s276 = scalar_lea.sflag [#allocation5], %s275
        %s277 = sand.u32 %s79, 1
        %s278 = smul.addr %s277, 64
        %s279 = scalar_lea.vmem [#allocation4], %s278
        // Predicated region
        $region41: #{tpu_custom_call.1} parent=39 // pred_check
          %p280 = pneg %p92
        $region42: #{tpu_custom_call.1} parent=39 // pred_check_branch
          %282 = sbr.rel (%p280) target = $region44
        $region43: #{tpu_custom_call.1} parent=39 // pred_region
          %283 = dma.done %s276, 1024
        $region44: #{tpu_custom_call.1} parent=39 // pred_fallthru
          _
        %p284 = scmp.lt.s32.totalorder %s27, 1
        %s285 = scalar_select %p284, %s27, 1
        %s286 = smul.addr %s285, 2
        %s287 = smul.addr %s286, 4
        %s288 = scalar_lea.vmem %s0, %s287
        %p289 = pneg %p62
        %p290 = pneg %p59
        %s291 = sand.u32 %s79, 1
        %s292 = scalar_lea.sflag [#allocation5], %s291
        %s293 = sand.u32 %s79, 1
        %s294 = smul.addr %s293, 64
        %s295 = scalar_lea.vmem [#allocation4], %s294
        %p296 = pneg %p92
        %p297 = pneg %p89
        %s298 = smul.u32 4, %s28
        %p299 = scmp.lt.s32.totalorder %s298, 3
        %s300 = scalar_select %p299, %s298, 3
        %s301 = smul.addr %s300, 8
        %s302 = scalar_lea.vmem %s2, %s301
        %p303 = pneg %p118
        %p304 = pneg %p115
        %s305 = smul.u32 4, %s28
        %p306 = scmp.lt.s32.totalorder %s305, 3
        %s307 = scalar_select %p306, %s305, 3
        %s308 = smul.addr %s307, 8
        %s309 = scalar_lea.vmem %s3, %s308
        %p310 = pneg %p144
        %p311 = pneg %p141
        %p312 = pneg %p165
        %p313 = pneg %p162
        %p314 = pneg %p195
        %p315 = pneg %p192
        %s316 = sand.u32 %s182, 1
        %s317 = scalar_lea.sflag [#allocation6], %s316
        %s318 = sand.u32 %s182, 1
        %s319 = smul.addr %s318, 32
        %s320 = scalar_lea.vmem [#allocation7], %s319
        %p321 = scmp.lt.s32.totalorder %s27, 1
        %s322 = scalar_select %p321, %s27, 1
        %s323 = smul.addr %s322, 2
        %s324 = smul.addr %s323, 4
        %s325 = scalar_lea.vmem %s0, %s324
        %s326 = smul.u32 2, %s29
        %s327 = smul.u32 4, %s28
        %p328 = scmp.lt.s32.totalorder %s327, 3
        %s329 = scalar_select %p328, %s327, 3
        %s330 = smul.addr %s329, 8
        %s331 = scalar_lea.vmem %s2, %s330
        %s332 = smul.u32 4, %s28
        %s333 = smul.u32 4, %s28
        %p334 = scmp.lt.s32.totalorder %s333, 3
        %s335 = scalar_select %p334, %s333, 3
        %s336 = smul.addr %s335, 8
        %s337 = scalar_lea.vmem %s3, %s336
        %s338 = smul.u32 4, %s28
        %p339 = scmp.eq.s32.totalorder %s29, 0
        // Predicated region
        $region45: #{tpu_custom_call.1} parent=39 // pred_check
          %p340 = pneg %p339
        $region46: #{tpu_custom_call.1} parent=39 // pred_check_branch
          %342 = sbr.rel (%p340) target = $region48
        $region47: #{tpu_custom_call.1} parent=39 // pred_region
          %v343 = vld [vmem:[%s325] sm:$0xff]
          %v344 = vld [vmem:[%s4] sm:$0xff]
          %v345 = vld [vmem:[%s4 + $0x8] sm:$0xff]
          %v346 = vlaneseq
          %v347 = vshrl.u32 %v346, 7
          %v348 = vadd.s32 %v347, 8
          %v349 = vcvt.s32.f32 %v347
          %v350 = vcvt.s32.f32 %v348
          %v351 = vld [vmem:[%s331] sm:$0xff]
          %353 = vset.pattern.permute.xlu0 0
          %354 = vperm.xlu0 %353, %v351
          %v355 = vpop.permute.xlu0 %354
          %v358 = vlaneseq
          %v359 = vshrl.u32 %v358, 7
          %v360 = vsub.s32 0, %v359
          %v361 = vrot.slane %v343, %v360
          %v362 = vlaneseq
          %v363 = vshrl.u32 %v362, 7
          %v364 = vsub.s32 4, %v363
          %v365 = vrot.slane %v343, %v364
          %v368 = vlaneseq
          %v369 = vshrl.u32 %v368, 7
          %v370 = vsub.s32 0, %v369
          %v371 = vrot.slane %v361, %v370
          %v372 = vlaneseq
          %v373 = vshrl.u32 %v372, 7
          %v374 = vsub.s32 0, %v373
          %v375 = vrot.slane %v365, %v374
          %v376 = vmul.f32 %v355, %v371
          %v377 = vmul.f32 %v355, %v375
          %378 = vset.pattern.permute.xlu0 1
          %379 = vperm.xlu0 %378, %v351
          %v380 = vpop.permute.xlu0 %379
          %v382 = vlaneseq
          %v383 = vshrl.u32 %v382, 7
          %v384 = vsub.s32 1, %v383
          %v385 = vrot.slane %v343, %v384
          %v386 = vlaneseq
          %v387 = vshrl.u32 %v386, 7
          %v388 = vsub.s32 5, %v387
          %v389 = vrot.slane %v343, %v388
          %v392 = vlaneseq
          %v393 = vshrl.u32 %v392, 7
          %v394 = vsub.s32 1, %v393
          %v395 = vrot.slane %v385, %v394
          %v396 = vlaneseq
          %v397 = vshrl.u32 %v396, 7
          %v398 = vsub.s32 1, %v397
          %v399 = vrot.slane %v389, %v398
          %v400 = vmul.f32 %v380, %v395
          %v401 = vmul.f32 %v380, %v399
          %v402 = vadd.f32 %v376, %v400
          %v403 = vadd.f32 %v377, %v401
          %404 = vset.pattern.permute.xlu0 2
          %405 = vperm.xlu0 %404, %v351
          %v406 = vpop.permute.xlu0 %405
          %v408 = vlaneseq
          %v409 = vshrl.u32 %v408, 7
          %v410 = vsub.s32 2, %v409
          %v411 = vrot.slane %v343, %v410
          %v412 = vlaneseq
          %v413 = vshrl.u32 %v412, 7
          %v414 = vsub.s32 6, %v413
          %v415 = vrot.slane %v343, %v414
          %v418 = vlaneseq
          %v419 = vshrl.u32 %v418, 7
          %v420 = vsub.s32 2, %v419
          %v421 = vrot.slane %v411, %v420
          %v422 = vlaneseq
          %v423 = vshrl.u32 %v422, 7
          %v424 = vsub.s32 2, %v423
          %v425 = vrot.slane %v415, %v424
          %v426 = vmul.f32 %v406, %v421
          %v427 = vmul.f32 %v406, %v425
          %v428 = vadd.f32 %v402, %v426
          %v429 = vadd.f32 %v403, %v427
          %430 = vset.pattern.permute.xlu0 3
          %431 = vperm.xlu0 %430, %v351
          %v432 = vpop.permute.xlu0 %431
          %v434 = vlaneseq
          %v435 = vshrl.u32 %v434, 7
          %v436 = vsub.s32 3, %v435
          %v437 = vrot.slane %v343, %v436
          %v438 = vlaneseq
          %v439 = vshrl.u32 %v438, 7
          %v440 = vsub.s32 7, %v439
          %v441 = vrot.slane %v343, %v440
          %v444 = vlaneseq
          %v445 = vshrl.u32 %v444, 7
          %v446 = vsub.s32 3, %v445
          %v447 = vrot.slane %v437, %v446
          %v448 = vlaneseq
          %v449 = vshrl.u32 %v448, 7
          %v450 = vsub.s32 3, %v449
          %v451 = vrot.slane %v441, %v450
          %v452 = vmul.f32 %v432, %v447
          %v453 = vmul.f32 %v432, %v451
          %v454 = vadd.f32 %v428, %v452
          %v455 = vadd.f32 %v429, %v453
          %v456 = vld [vmem:[%s337] sm:$0xff]
          %458 = vset.pattern.permute.xlu0 0
          %459 = vperm.xlu0 %458, %v456
          %v460 = vpop.permute.xlu0 %459
          %v462 = vadd.f32 %v454, %v460
          %v463 = vadd.f32 %v455, %v460
          %v464 = vadd.f32 %v462, %v344
          %v465 = vadd.f32 %v463, %v345
          %v466 = vmax.f32 %v464, 0.0
          %v467 = vmax.f32 %v465, 0.0
          %v468 = vmin.f32 %v466, 15.0
          %v469 = vmin.f32 %v467, 15.0
          %v472 = vrot.slane %v468, 1
          %v473 = vrot.slane %v469, 1
          %v476 = vrot.slane %v468, 2
          %v477 = vrot.slane %v469, 2
          %v480 = vrot.slane %v468, 3
          %v481 = vrot.slane %v469, 3
          %v484 = vlaneseq
          %v485 = vshrl.u32 %v484, 7
          %v486 = vsub.s32 0, %v485
          %v487 = vrot.slane %v468, %v486
          %v488 = vlaneseq
          %v489 = vshrl.u32 %v488, 7
          %v490 = vsub.s32 0, %v489
          %v491 = vrot.slane %v469, %v490
          %v492 = vlaneseq
          %v493 = vshrl.u32 %v492, 7
          %v494 = vsub.s32 0, %v493
          %v495 = vrot.slane %v472, %v494
          %v496 = vlaneseq
          %v497 = vshrl.u32 %v496, 7
          %v498 = vsub.s32 0, %v497
          %v499 = vrot.slane %v473, %v498
          %v500 = vlaneseq
          %v501 = vshrl.u32 %v500, 7
          %v502 = vsub.s32 0, %v501
          %v503 = vrot.slane %v476, %v502
          %v504 = vlaneseq
          %v505 = vshrl.u32 %v504, 7
          %v506 = vsub.s32 0, %v505
          %v507 = vrot.slane %v477, %v506
          %v508 = vlaneseq
          %v509 = vshrl.u32 %v508, 7
          %v510 = vsub.s32 0, %v509
          %v511 = vrot.slane %v480, %v510
          %v512 = vlaneseq
          %v513 = vshrl.u32 %v512, 7
          %v514 = vsub.s32 0, %v513
          %v515 = vrot.slane %v481, %v514
          %v516 = vsub.f32 %v349, %v487
          %v517 = vsub.f32 %v349, %v491
          %v518 = vsub.f32 %v349, %v495
          %v519 = vsub.f32 %v349, %v499
          %v520 = vsub.f32 %v349, %v503
          %v521 = vsub.f32 %v349, %v507
          %v522 = vsub.f32 %v349, %v511
          %v523 = vsub.f32 %v349, %v515
          %v524 = vsub.f32 %v350, %v487
          %v525 = vsub.f32 %v350, %v491
          %v526 = vsub.f32 %v350, %v495
          %v527 = vsub.f32 %v350, %v499
          %v528 = vsub.f32 %v350, %v503
          %v529 = vsub.f32 %v350, %v507
          %v530 = vsub.f32 %v350, %v511
          %v531 = vsub.f32 %v350, %v515
          %v532 = vand.u32 2147483647, %v516
          %v533 = vand.u32 2147483647, %v517
          %v534 = vand.u32 2147483647, %v518
          %v535 = vand.u32 2147483647, %v519
          %v536 = vand.u32 2147483647, %v520
          %v537 = vand.u32 2147483647, %v521
          %v538 = vand.u32 2147483647, %v522
          %v539 = vand.u32 2147483647, %v523
          %v540 = vand.u32 2147483647, %v524
          %v541 = vand.u32 2147483647, %v525
          %v542 = vand.u32 2147483647, %v526
          %v543 = vand.u32 2147483647, %v527
          %v544 = vand.u32 2147483647, %v528
          %v545 = vand.u32 2147483647, %v529
          %v546 = vand.u32 2147483647, %v530
          %v547 = vand.u32 2147483647, %v531
          %v548 = vsub.f32 1.0, %v532
          %v549 = vsub.f32 1.0, %v533
          %v550 = vsub.f32 1.0, %v534
          %v551 = vsub.f32 1.0, %v535
          %v552 = vsub.f32 1.0, %v536
          %v553 = vsub.f32 1.0, %v537
          %v554 = vsub.f32 1.0, %v538
          %v555 = vsub.f32 1.0, %v539
          %v556 = vsub.f32 1.0, %v540
          %v557 = vsub.f32 1.0, %v541
          %v558 = vsub.f32 1.0, %v542
          %v559 = vsub.f32 1.0, %v543
          %v560 = vsub.f32 1.0, %v544
          %v561 = vsub.f32 1.0, %v545
          %v562 = vsub.f32 1.0, %v546
          %v563 = vsub.f32 1.0, %v547
          %v564 = vmax.f32 %v548, 0.0
          %v565 = vmax.f32 %v549, 0.0
          %v566 = vmax.f32 %v550, 0.0
          %v567 = vmax.f32 %v551, 0.0
          %v568 = vmax.f32 %v552, 0.0
          %v569 = vmax.f32 %v553, 0.0
          %v570 = vmax.f32 %v554, 0.0
          %v571 = vmax.f32 %v555, 0.0
          %v572 = vmax.f32 %v556, 0.0
          %v573 = vmax.f32 %v557, 0.0
          %v574 = vmax.f32 %v558, 0.0
          %v575 = vmax.f32 %v559, 0.0
          %v576 = vmax.f32 %v560, 0.0
          %v577 = vmax.f32 %v561, 0.0
          %v578 = vmax.f32 %v562, 0.0
          %v579 = vmax.f32 %v563, 0.0
          %580 = vst [vmem:[#allocation2] sm:$0xff] %v564
          %581 = vst [vmem:[#allocation2 + $0x8] sm:$0xff] %v565
          %582 = vst [vmem:[#allocation2 + $0x10] sm:$0xff] %v566
          %583 = vst [vmem:[#allocation2 + $0x18] sm:$0xff] %v567
          %584 = vst [vmem:[#allocation2 + $0x20] sm:$0xff] %v568
          %585 = vst [vmem:[#allocation2 + $0x28] sm:$0xff] %v569
          %586 = vst [vmem:[#allocation2 + $0x30] sm:$0xff] %v570
          %587 = vst [vmem:[#allocation2 + $0x38] sm:$0xff] %v571
          %588 = vst [vmem:[#allocation2 + $0x40] sm:$0xff] %v572
          %589 = vst [vmem:[#allocation2 + $0x48] sm:$0xff] %v573
          %590 = vst [vmem:[#allocation2 + $0x50] sm:$0xff] %v574
          %591 = vst [vmem:[#allocation2 + $0x58] sm:$0xff] %v575
          %592 = vst [vmem:[#allocation2 + $0x60] sm:$0xff] %v576
          %593 = vst [vmem:[#allocation2 + $0x68] sm:$0xff] %v577
          %594 = vst [vmem:[#allocation2 + $0x70] sm:$0xff] %v578
          %595 = vst [vmem:[#allocation2 + $0x78] sm:$0xff] %v579
          %v596 = vlaneseq
          %v597 = vshrl.u32 %v596, 7
          %v598 = vsub.s32 4, %v597
          %v599 = vrot.slane %v468, %v598
          %v600 = vlaneseq
          %v601 = vshrl.u32 %v600, 7
          %v602 = vsub.s32 4, %v601
          %v603 = vrot.slane %v469, %v602
          %v604 = vlaneseq
          %v605 = vshrl.u32 %v604, 7
          %v606 = vsub.s32 4, %v605
          %v607 = vrot.slane %v472, %v606
          %v608 = vlaneseq
          %v609 = vshrl.u32 %v608, 7
          %v610 = vsub.s32 4, %v609
          %v611 = vrot.slane %v473, %v610
          %v612 = vlaneseq
          %v613 = vshrl.u32 %v612, 7
          %v614 = vsub.s32 4, %v613
          %v615 = vrot.slane %v476, %v614
          %v616 = vlaneseq
          %v617 = vshrl.u32 %v616, 7
          %v618 = vsub.s32 4, %v617
          %v619 = vrot.slane %v477, %v618
          %v620 = vlaneseq
          %v621 = vshrl.u32 %v620, 7
          %v622 = vsub.s32 4, %v621
          %v623 = vrot.slane %v480, %v622
          %v624 = vlaneseq
          %v625 = vshrl.u32 %v624, 7
          %v626 = vsub.s32 4, %v625
          %v627 = vrot.slane %v481, %v626
          %v628 = vsub.f32 %v349, %v599
          %v629 = vsub.f32 %v349, %v603
          %v630 = vsub.f32 %v349, %v607
          %v631 = vsub.f32 %v349, %v611
          %v632 = vsub.f32 %v349, %v615
          %v633 = vsub.f32 %v349, %v619
          %v634 = vsub.f32 %v349, %v623
          %v635 = vsub.f32 %v349, %v627
          %v636 = vsub.f32 %v350, %v599
          %v637 = vsub.f32 %v350, %v603
          %v638 = vsub.f32 %v350, %v607
          %v639 = vsub.f32 %v350, %v611
          %v640 = vsub.f32 %v350, %v615
          %v641 = vsub.f32 %v350, %v619
          %v642 = vsub.f32 %v350, %v623
          %v643 = vsub.f32 %v350, %v627
          %v644 = vand.u32 2147483647, %v628
          %v645 = vand.u32 2147483647, %v629
          %v646 = vand.u32 2147483647, %v630
          %v647 = vand.u32 2147483647, %v631
          %v648 = vand.u32 2147483647, %v632
          %v649 = vand.u32 2147483647, %v633
          %v650 = vand.u32 2147483647, %v634
          %v651 = vand.u32 2147483647, %v635
          %v652 = vand.u32 2147483647, %v636
          %v653 = vand.u32 2147483647, %v637
          %v654 = vand.u32 2147483647, %v638
          %v655 = vand.u32 2147483647, %v639
          %v656 = vand.u32 2147483647, %v640
          %v657 = vand.u32 2147483647, %v641
          %v658 = vand.u32 2147483647, %v642
          %v659 = vand.u32 2147483647, %v643
          %v660 = vsub.f32 1.0, %v644
          %v661 = vsub.f32 1.0, %v645
          %v662 = vsub.f32 1.0, %v646
          %v663 = vsub.f32 1.0, %v647
          %v664 = vsub.f32 1.0, %v648
          %v665 = vsub.f32 1.0, %v649
          %v666 = vsub.f32 1.0, %v650
          %v667 = vsub.f32 1.0, %v651
          %v668 = vsub.f32 1.0, %v652
          %v669 = vsub.f32 1.0, %v653
          %v670 = vsub.f32 1.0, %v654
          %v671 = vsub.f32 1.0, %v655
          %v672 = vsub.f32 1.0, %v656
          %v673 = vsub.f32 1.0, %v657
          %v674 = vsub.f32 1.0, %v658
          %v675 = vsub.f32 1.0, %v659
          %v676 = vmax.f32 %v660, 0.0
          %v677 = vmax.f32 %v661, 0.0
          %v678 = vmax.f32 %v662, 0.0
          %v679 = vmax.f32 %v663, 0.0
          %v680 = vmax.f32 %v664, 0.0
          %v681 = vmax.f32 %v665, 0.0
          %v682 = vmax.f32 %v666, 0.0
          %v683 = vmax.f32 %v667, 0.0
          %v684 = vmax.f32 %v668, 0.0
          %v685 = vmax.f32 %v669, 0.0
          %v686 = vmax.f32 %v670, 0.0
          %v687 = vmax.f32 %v671, 0.0
          %v688 = vmax.f32 %v672, 0.0
          %v689 = vmax.f32 %v673, 0.0
          %v690 = vmax.f32 %v674, 0.0
          %v691 = vmax.f32 %v675, 0.0
          %692 = vst [vmem:[#allocation3] sm:$0xff] %v676
          %693 = vst [vmem:[#allocation3 + $0x8] sm:$0xff] %v677
          %694 = vst [vmem:[#allocation3 + $0x10] sm:$0xff] %v678
          %695 = vst [vmem:[#allocation3 + $0x18] sm:$0xff] %v679
          %696 = vst [vmem:[#allocation3 + $0x20] sm:$0xff] %v680
          %697 = vst [vmem:[#allocation3 + $0x28] sm:$0xff] %v681
          %698 = vst [vmem:[#allocation3 + $0x30] sm:$0xff] %v682
          %699 = vst [vmem:[#allocation3 + $0x38] sm:$0xff] %v683
          %700 = vst [vmem:[#allocation3 + $0x40] sm:$0xff] %v684
          %701 = vst [vmem:[#allocation3 + $0x48] sm:$0xff] %v685
          %702 = vst [vmem:[#allocation3 + $0x50] sm:$0xff] %v686
          %703 = vst [vmem:[#allocation3 + $0x58] sm:$0xff] %v687
          %704 = vst [vmem:[#allocation3 + $0x60] sm:$0xff] %v688
          %705 = vst [vmem:[#allocation3 + $0x68] sm:$0xff] %v689
          %706 = vst [vmem:[#allocation3 + $0x70] sm:$0xff] %v690
          %707 = vst [vmem:[#allocation3 + $0x78] sm:$0xff] %v691
          %s708 = scalar_lea.vmem %s331, 8
          %v709 = vld [vmem:[%s708] sm:$0xff]
          %711 = vset.pattern.permute.xlu0 0
          %712 = vperm.xlu0 %711, %v709
          %v713 = vpop.permute.xlu0 %712
          %v715 = vmul.f32 %v713, %v371
          %v716 = vmul.f32 %v713, %v375
          %717 = vset.pattern.permute.xlu0 1
          %718 = vperm.xlu0 %717, %v709
          %v719 = vpop.permute.xlu0 %718
          %v721 = vmul.f32 %v719, %v395
          %v722 = vmul.f32 %v719, %v399
          %v723 = vadd.f32 %v715, %v721
          %v724 = vadd.f32 %v716, %v722
          %725 = vset.pattern.permute.xlu0 2
          %726 = vperm.xlu0 %725, %v709
          %v727 = vpop.permute.xlu0 %726
          %v729 = vmul.f32 %v727, %v421
          %v730 = vmul.f32 %v727, %v425
          %v731 = vadd.f32 %v723, %v729
          %v732 = vadd.f32 %v724, %v730
          %733 = vset.pattern.permute.xlu0 3
          %734 = vperm.xlu0 %733, %v709
          %v735 = vpop.permute.xlu0 %734
          %v737 = vmul.f32 %v735, %v447
          %v738 = vmul.f32 %v735, %v451
          %v739 = vadd.f32 %v731, %v737
          %v740 = vadd.f32 %v732, %v738
          %s741 = scalar_lea.vmem %s337, 8
          %v742 = vld [vmem:[%s741] sm:$0xff]
          %744 = vset.pattern.permute.xlu0 0
          %745 = vperm.xlu0 %744, %v742
          %v746 = vpop.permute.xlu0 %745
          %v748 = vadd.f32 %v739, %v746
          %v749 = vadd.f32 %v740, %v746
          %v750 = vadd.f32 %v748, %v344
          %v751 = vadd.f32 %v749, %v345
          %v752 = vmax.f32 %v750, 0.0
          %v753 = vmax.f32 %v751, 0.0
          %v754 = vmin.f32 %v752, 15.0
          %v755 = vmin.f32 %v753, 15.0
          %v758 = vrot.slane %v754, 1
          %v759 = vrot.slane %v755, 1
          %v762 = vrot.slane %v754, 2
          %v763 = vrot.slane %v755, 2
          %v766 = vrot.slane %v754, 3
          %v767 = vrot.slane %v755, 3
          %v770 = vlaneseq
          %v771 = vshrl.u32 %v770, 7
          %v772 = vsub.s32 0, %v771
          %v773 = vrot.slane %v754, %v772
          %v774 = vlaneseq
          %v775 = vshrl.u32 %v774, 7
          %v776 = vsub.s32 0, %v775
          %v777 = vrot.slane %v755, %v776
          %v778 = vlaneseq
          %v779 = vshrl.u32 %v778, 7
          %v780 = vsub.s32 0, %v779
          %v781 = vrot.slane %v758, %v780
          %v782 = vlaneseq
          %v783 = vshrl.u32 %v782, 7
          %v784 = vsub.s32 0, %v783
          %v785 = vrot.slane %v759, %v784
          %v786 = vlaneseq
          %v787 = vshrl.u32 %v786, 7
          %v788 = vsub.s32 0, %v787
          %v789 = vrot.slane %v762, %v788
          %v790 = vlaneseq
          %v791 = vshrl.u32 %v790, 7
          %v792 = vsub.s32 0, %v791
          %v793 = vrot.slane %v763, %v792
          %v794 = vlaneseq
          %v795 = vshrl.u32 %v794, 7
          %v796 = vsub.s32 0, %v795
          %v797 = vrot.slane %v766, %v796
          %v798 = vlaneseq
          %v799 = vshrl.u32 %v798, 7
          %v800 = vsub.s32 0, %v799
          %v801 = vrot.slane %v767, %v800
          %v802 = vsub.f32 %v349, %v773
          %v803 = vsub.f32 %v349, %v777
          %v804 = vsub.f32 %v349, %v781
          %v805 = vsub.f32 %v349, %v785
          %v806 = vsub.f32 %v349, %v789
          %v807 = vsub.f32 %v349, %v793
          %v808 = vsub.f32 %v349, %v797
          %v809 = vsub.f32 %v349, %v801
          %v810 = vsub.f32 %v350, %v773
          %v811 = vsub.f32 %v350, %v777
          %v812 = vsub.f32 %v350, %v781
          %v813 = vsub.f32 %v350, %v785
          %v814 = vsub.f32 %v350, %v789
          %v815 = vsub.f32 %v350, %v793
          %v816 = vsub.f32 %v350, %v797
          %v817 = vsub.f32 %v350, %v801
          %v818 = vand.u32 2147483647, %v802
          %v819 = vand.u32 2147483647, %v803
          %v820 = vand.u32 2147483647, %v804
          %v821 = vand.u32 2147483647, %v805
          %v822 = vand.u32 2147483647, %v806
          %v823 = vand.u32 2147483647, %v807
          %v824 = vand.u32 2147483647, %v808
          %v825 = vand.u32 2147483647, %v809
          %v826 = vand.u32 2147483647, %v810
          %v827 = vand.u32 2147483647, %v811
          %v828 = vand.u32 2147483647, %v812
          %v829 = vand.u32 2147483647, %v813
          %v830 = vand.u32 2147483647, %v814
          %v831 = vand.u32 2147483647, %v815
          %v832 = vand.u32 2147483647, %v816
          %v833 = vand.u32 2147483647, %v817
          %v834 = vsub.f32 1.0, %v818
          %v835 = vsub.f32 1.0, %v819
          %v836 = vsub.f32 1.0, %v820
          %v837 = vsub.f32 1.0, %v821
          %v838 = vsub.f32 1.0, %v822
          %v839 = vsub.f32 1.0, %v823
          %v840 = vsub.f32 1.0, %v824
          %v841 = vsub.f32 1.0, %v825
          %v842 = vsub.f32 1.0, %v826
          %v843 = vsub.f32 1.0, %v827
          %v844 = vsub.f32 1.0, %v828
          %v845 = vsub.f32 1.0, %v829
          %v846 = vsub.f32 1.0, %v830
          %v847 = vsub.f32 1.0, %v831
          %v848 = vsub.f32 1.0, %v832
          %v849 = vsub.f32 1.0, %v833
          %v850 = vmax.f32 %v834, 0.0
          %v851 = vmax.f32 %v835, 0.0
          %v852 = vmax.f32 %v836, 0.0
          %v853 = vmax.f32 %v837, 0.0
          %v854 = vmax.f32 %v838, 0.0
          %v855 = vmax.f32 %v839, 0.0
          %v856 = vmax.f32 %v840, 0.0
          %v857 = vmax.f32 %v841, 0.0
          %v858 = vmax.f32 %v842, 0.0
          %v859 = vmax.f32 %v843, 0.0
          %v860 = vmax.f32 %v844, 0.0
          %v861 = vmax.f32 %v845, 0.0
          %v862 = vmax.f32 %v846, 0.0
          %v863 = vmax.f32 %v847, 0.0
          %v864 = vmax.f32 %v848, 0.0
          %v865 = vmax.f32 %v849, 0.0
          %s866 = scalar_lea.vmem [#allocation2], 128
          %867 = vst [vmem:[%s866] sm:$0xff] %v850
          %868 = vst [vmem:[%s866 + $0x8] sm:$0xff] %v851
          %869 = vst [vmem:[%s866 + $0x10] sm:$0xff] %v852
          %870 = vst [vmem:[%s866 + $0x18] sm:$0xff] %v853
          %871 = vst [vmem:[%s866 + $0x20] sm:$0xff] %v854
          %872 = vst [vmem:[%s866 + $0x28] sm:$0xff] %v855
          %873 = vst [vmem:[%s866 + $0x30] sm:$0xff] %v856
          %874 = vst [vmem:[%s866 + $0x38] sm:$0xff] %v857
          %875 = vst [vmem:[%s866 + $0x40] sm:$0xff] %v858
          %876 = vst [vmem:[%s866 + $0x48] sm:$0xff] %v859
          %877 = vst [vmem:[%s866 + $0x50] sm:$0xff] %v860
          %878 = vst [vmem:[%s866 + $0x58] sm:$0xff] %v861
          %879 = vst [vmem:[%s866 + $0x60] sm:$0xff] %v862
          %880 = vst [vmem:[%s866 + $0x68] sm:$0xff] %v863
          %881 = vst [vmem:[%s866 + $0x70] sm:$0xff] %v864
          %882 = vst [vmem:[%s866 + $0x78] sm:$0xff] %v865
          %v883 = vlaneseq
          %v884 = vshrl.u32 %v883, 7
          %v885 = vsub.s32 4, %v884
          %v886 = vrot.slane %v754, %v885
          %v887 = vlaneseq
          %v888 = vshrl.u32 %v887, 7
          %v889 = vsub.s32 4, %v888
          %v890 = vrot.slane %v755, %v889
          %v891 = vlaneseq
          %v892 = vshrl.u32 %v891, 7
          %v893 = vsub.s32 4, %v892
          %v894 = vrot.slane %v758, %v893
          %v895 = vlaneseq
          %v896 = vshrl.u32 %v895, 7
          %v897 = vsub.s32 4, %v896
          %v898 = vrot.slane %v759, %v897
          %v899 = vlaneseq
          %v900 = vshrl.u32 %v899, 7
          %v901 = vsub.s32 4, %v900
          %v902 = vrot.slane %v762, %v901
          %v903 = vlaneseq
          %v904 = vshrl.u32 %v903, 7
          %v905 = vsub.s32 4, %v904
          %v906 = vrot.slane %v763, %v905
          %v907 = vlaneseq
          %v908 = vshrl.u32 %v907, 7
          %v909 = vsub.s32 4, %v908
          %v910 = vrot.slane %v766, %v909
          %v911 = vlaneseq
          %v912 = vshrl.u32 %v911, 7
          %v913 = vsub.s32 4, %v912
          %v914 = vrot.slane %v767, %v913
          %v915 = vsub.f32 %v349, %v886
          %v916 = vsub.f32 %v349, %v890
          %v917 = vsub.f32 %v349, %v894
          %v918 = vsub.f32 %v349, %v898
          %v919 = vsub.f32 %v349, %v902
          %v920 = vsub.f32 %v349, %v906
          %v921 = vsub.f32 %v349, %v910
          %v922 = vsub.f32 %v349, %v914
          %v923 = vsub.f32 %v350, %v886
          %v924 = vsub.f32 %v350, %v890
          %v925 = vsub.f32 %v350, %v894
          %v926 = vsub.f32 %v350, %v898
          %v927 = vsub.f32 %v350, %v902
          %v928 = vsub.f32 %v350, %v906
          %v929 = vsub.f32 %v350, %v910
          %v930 = vsub.f32 %v350, %v914
          %v931 = vand.u32 2147483647, %v915
          %v932 = vand.u32 2147483647, %v916
          %v933 = vand.u32 2147483647, %v917
          %v934 = vand.u32 2147483647, %v918
          %v935 = vand.u32 2147483647, %v919
          %v936 = vand.u32 2147483647, %v920
          %v937 = vand.u32 2147483647, %v921
          %v938 = vand.u32 2147483647, %v922
          %v939 = vand.u32 2147483647, %v923
          %v940 = vand.u32 2147483647, %v924
          %v941 = vand.u32 2147483647, %v925
          %v942 = vand.u32 2147483647, %v926
          %v943 = vand.u32 2147483647, %v927
          %v944 = vand.u32 2147483647, %v928
          %v945 = vand.u32 2147483647, %v929
          %v946 = vand.u32 2147483647, %v930
          %v947 = vsub.f32 1.0, %v931
          %v948 = vsub.f32 1.0, %v932
          %v949 = vsub.f32 1.0, %v933
          %v950 = vsub.f32 1.0, %v934
          %v951 = vsub.f32 1.0, %v935
          %v952 = vsub.f32 1.0, %v936
          %v953 = vsub.f32 1.0, %v937
          %v954 = vsub.f32 1.0, %v938
          %v955 = vsub.f32 1.0, %v939
          %v956 = vsub.f32 1.0, %v940
          %v957 = vsub.f32 1.0, %v941
          %v958 = vsub.f32 1.0, %v942
          %v959 = vsub.f32 1.0, %v943
          %v960 = vsub.f32 1.0, %v944
          %v961 = vsub.f32 1.0, %v945
          %v962 = vsub.f32 1.0, %v946
          %v963 = vmax.f32 %v947, 0.0
          %v964 = vmax.f32 %v948, 0.0
          %v965 = vmax.f32 %v949, 0.0
          %v966 = vmax.f32 %v950, 0.0
          %v967 = vmax.f32 %v951, 0.0
          %v968 = vmax.f32 %v952, 0.0
          %v969 = vmax.f32 %v953, 0.0
          %v970 = vmax.f32 %v954, 0.0
          %v971 = vmax.f32 %v955, 0.0
          %v972 = vmax.f32 %v956, 0.0
          %v973 = vmax.f32 %v957, 0.0
          %v974 = vmax.f32 %v958, 0.0
          %v975 = vmax.f32 %v959, 0.0
          %v976 = vmax.f32 %v960, 0.0
          %v977 = vmax.f32 %v961, 0.0
          %v978 = vmax.f32 %v962, 0.0
          %s979 = scalar_lea.vmem [#allocation3], 128
          %980 = vst [vmem:[%s979] sm:$0xff] %v963
          %981 = vst [vmem:[%s979 + $0x8] sm:$0xff] %v964
          %982 = vst [vmem:[%s979 + $0x10] sm:$0xff] %v965
          %983 = vst [vmem:[%s979 + $0x18] sm:$0xff] %v966
          %984 = vst [vmem:[%s979 + $0x20] sm:$0xff] %v967
          %985 = vst [vmem:[%s979 + $0x28] sm:$0xff] %v968
          %986 = vst [vmem:[%s979 + $0x30] sm:$0xff] %v969
          %987 = vst [vmem:[%s979 + $0x38] sm:$0xff] %v970
          %988 = vst [vmem:[%s979 + $0x40] sm:$0xff] %v971
          %989 = vst [vmem:[%s979 + $0x48] sm:$0xff] %v972
          %990 = vst [vmem:[%s979 + $0x50] sm:$0xff] %v973
          %991 = vst [vmem:[%s979 + $0x58] sm:$0xff] %v974
          %992 = vst [vmem:[%s979 + $0x60] sm:$0xff] %v975
          %993 = vst [vmem:[%s979 + $0x68] sm:$0xff] %v976
          %994 = vst [vmem:[%s979 + $0x70] sm:$0xff] %v977
          %995 = vst [vmem:[%s979 + $0x78] sm:$0xff] %v978
          %s996 = scalar_lea.vmem %s331, 16
          %v997 = vld [vmem:[%s996] sm:$0xff]
          %999 = vset.pattern.permute.xlu0 0
          %1000 = vperm.xlu0 %999, %v997
          %v1001 = vpop.permute.xlu0 %1000
          %v1003 = vmul.f32 %v1001, %v371
          %v1004 = vmul.f32 %v1001, %v375
          %1005 = vset.pattern.permute.xlu0 1
          %1006 = vperm.xlu0 %1005, %v997
          %v1007 = vpop.permute.xlu0 %1006
          %v1009 = vmul.f32 %v1007, %v395
          %v1010 = vmul.f32 %v1007, %v399
          %v1011 = vadd.f32 %v1003, %v1009
          %v1012 = vadd.f32 %v1004, %v1010
          %1013 = vset.pattern.permute.xlu0 2
          %1014 = vperm.xlu0 %1013, %v997
          %v1015 = vpop.permute.xlu0 %1014
          %v1017 = vmul.f32 %v1015, %v421
          %v1018 = vmul.f32 %v1015, %v425
          %v1019 = vadd.f32 %v1011, %v1017
          %v1020 = vadd.f32 %v1012, %v1018
          %1021 = vset.pattern.permute.xlu0 3
          %1022 = vperm.xlu0 %1021, %v997
          %v1023 = vpop.permute.xlu0 %1022
          %v1025 = vmul.f32 %v1023, %v447
          %v1026 = vmul.f32 %v1023, %v451
          %v1027 = vadd.f32 %v1019, %v1025
          %v1028 = vadd.f32 %v1020, %v1026
          %s1029 = scalar_lea.vmem %s337, 16
          %v1030 = vld [vmem:[%s1029] sm:$0xff]
          %1032 = vset.pattern.permute.xlu0 0
          %1033 = vperm.xlu0 %1032, %v1030
          %v1034 = vpop.permute.xlu0 %1033
          %v1036 = vadd.f32 %v1027, %v1034
          %v1037 = vadd.f32 %v1028, %v1034
          %v1038 = vadd.f32 %v1036, %v344
          %v1039 = vadd.f32 %v1037, %v345
          %v1040 = vmax.f32 %v1038, 0.0
          %v1041 = vmax.f32 %v1039, 0.0
          %v1042 = vmin.f32 %v1040, 15.0
          %v1043 = vmin.f32 %v1041, 15.0
          %v1046 = vrot.slane %v1042, 1
          %v1047 = vrot.slane %v1043, 1
          %v1050 = vrot.slane %v1042, 2
          %v1051 = vrot.slane %v1043, 2
          %v1054 = vrot.slane %v1042, 3
          %v1055 = vrot.slane %v1043, 3
          %v1058 = vlaneseq
          %v1059 = vshrl.u32 %v1058, 7
          %v1060 = vsub.s32 0, %v1059
          %v1061 = vrot.slane %v1042, %v1060
          %v1062 = vlaneseq
          %v1063 = vshrl.u32 %v1062, 7
          %v1064 = vsub.s32 0, %v1063
          %v1065 = vrot.slane %v1043, %v1064
          %v1066 = vlaneseq
          %v1067 = vshrl.u32 %v1066, 7
          %v1068 = vsub.s32 0, %v1067
          %v1069 = vrot.slane %v1046, %v1068
          %v1070 = vlaneseq
          %v1071 = vshrl.u32 %v1070, 7
          %v1072 = vsub.s32 0, %v1071
          %v1073 = vrot.slane %v1047, %v1072
          %v1074 = vlaneseq
          %v1075 = vshrl.u32 %v1074, 7
          %v1076 = vsub.s32 0, %v1075
          %v1077 = vrot.slane %v1050, %v1076
          %v1078 = vlaneseq
          %v1079 = vshrl.u32 %v1078, 7
          %v1080 = vsub.s32 0, %v1079
          %v1081 = vrot.slane %v1051, %v1080
          %v1082 = vlaneseq
          %v1083 = vshrl.u32 %v1082, 7
          %v1084 = vsub.s32 0, %v1083
          %v1085 = vrot.slane %v1054, %v1084
          %v1086 = vlaneseq
          %v1087 = vshrl.u32 %v1086, 7
          %v1088 = vsub.s32 0, %v1087
          %v1089 = vrot.slane %v1055, %v1088
          %v1090 = vsub.f32 %v349, %v1061
          %v1091 = vsub.f32 %v349, %v1065
          %v1092 = vsub.f32 %v349, %v1069
          %v1093 = vsub.f32 %v349, %v1073
          %v1094 = vsub.f32 %v349, %v1077
          %v1095 = vsub.f32 %v349, %v1081
          %v1096 = vsub.f32 %v349, %v1085
          %v1097 = vsub.f32 %v349, %v1089
          %v1098 = vsub.f32 %v350, %v1061
          %v1099 = vsub.f32 %v350, %v1065
          %v1100 = vsub.f32 %v350, %v1069
          %v1101 = vsub.f32 %v350, %v1073
          %v1102 = vsub.f32 %v350, %v1077
          %v1103 = vsub.f32 %v350, %v1081
          %v1104 = vsub.f32 %v350, %v1085
          %v1105 = vsub.f32 %v350, %v1089
          %v1106 = vand.u32 2147483647, %v1090
          %v1107 = vand.u32 2147483647, %v1091
          %v1108 = vand.u32 2147483647, %v1092
          %v1109 = vand.u32 2147483647, %v1093
          %v1110 = vand.u32 2147483647, %v1094
          %v1111 = vand.u32 2147483647, %v1095
          %v1112 = vand.u32 2147483647, %v1096
          %v1113 = vand.u32 2147483647, %v1097
          %v1114 = vand.u32 2147483647, %v1098
          %v1115 = vand.u32 2147483647, %v1099
          %v1116 = vand.u32 2147483647, %v1100
          %v1117 = vand.u32 2147483647, %v1101
          %v1118 = vand.u32 2147483647, %v1102
          %v1119 = vand.u32 2147483647, %v1103
          %v1120 = vand.u32 2147483647, %v1104
          %v1121 = vand.u32 2147483647, %v1105
          %v1122 = vsub.f32 1.0, %v1106
          %v1123 = vsub.f32 1.0, %v1107
          %v1124 = vsub.f32 1.0, %v1108
          %v1125 = vsub.f32 1.0, %v1109
          %v1126 = vsub.f32 1.0, %v1110
          %v1127 = vsub.f32 1.0, %v1111
          %v1128 = vsub.f32 1.0, %v1112
          %v1129 = vsub.f32 1.0, %v1113
          %v1130 = vsub.f32 1.0, %v1114
          %v1131 = vsub.f32 1.0, %v1115
          %v1132 = vsub.f32 1.0, %v1116
          %v1133 = vsub.f32 1.0, %v1117
          %v1134 = vsub.f32 1.0, %v1118
          %v1135 = vsub.f32 1.0, %v1119
          %v1136 = vsub.f32 1.0, %v1120
          %v1137 = vsub.f32 1.0, %v1121
          %v1138 = vmax.f32 %v1122, 0.0
          %v1139 = vmax.f32 %v1123, 0.0
          %v1140 = vmax.f32 %v1124, 0.0
          %v1141 = vmax.f32 %v1125, 0.0
          %v1142 = vmax.f32 %v1126, 0.0
          %v1143 = vmax.f32 %v1127, 0.0
          %v1144 = vmax.f32 %v1128, 0.0
          %v1145 = vmax.f32 %v1129, 0.0
          %v1146 = vmax.f32 %v1130, 0.0
          %v1147 = vmax.f32 %v1131, 0.0
          %v1148 = vmax.f32 %v1132, 0.0
          %v1149 = vmax.f32 %v1133, 0.0
          %v1150 = vmax.f32 %v1134, 0.0
          %v1151 = vmax.f32 %v1135, 0.0
          %v1152 = vmax.f32 %v1136, 0.0
          %v1153 = vmax.f32 %v1137, 0.0
          %s1154 = scalar_lea.vmem [#allocation2], 256
          %1155 = vst [vmem:[%s1154] sm:$0xff] %v1138
          %1156 = vst [vmem:[%s1154 + $0x8] sm:$0xff] %v1139
          %1157 = vst [vmem:[%s1154 + $0x10] sm:$0xff] %v1140
          %1158 = vst [vmem:[%s1154 + $0x18] sm:$0xff] %v1141
          %1159 = vst [vmem:[%s1154 + $0x20] sm:$0xff] %v1142
          %1160 = vst [vmem:[%s1154 + $0x28] sm:$0xff] %v1143
          %1161 = vst [vmem:[%s1154 + $0x30] sm:$0xff] %v1144
          %1162 = vst [vmem:[%s1154 + $0x38] sm:$0xff] %v1145
          %1163 = vst [vmem:[%s1154 + $0x40] sm:$0xff] %v1146
          %1164 = vst [vmem:[%s1154 + $0x48] sm:$0xff] %v1147
          %1165 = vst [vmem:[%s1154 + $0x50] sm:$0xff] %v1148
          %1166 = vst [vmem:[%s1154 + $0x58] sm:$0xff] %v1149
          %1167 = vst [vmem:[%s1154 + $0x60] sm:$0xff] %v1150
          %1168 = vst [vmem:[%s1154 + $0x68] sm:$0xff] %v1151
          %1169 = vst [vmem:[%s1154 + $0x70] sm:$0xff] %v1152
          %1170 = vst [vmem:[%s1154 + $0x78] sm:$0xff] %v1153
          %v1171 = vlaneseq
          %v1172 = vshrl.u32 %v1171, 7
          %v1173 = vsub.s32 4, %v1172
          %v1174 = vrot.slane %v1042, %v1173
          %v1175 = vlaneseq
          %v1176 = vshrl.u32 %v1175, 7
          %v1177 = vsub.s32 4, %v1176
          %v1178 = vrot.slane %v1043, %v1177
          %v1179 = vlaneseq
          %v1180 = vshrl.u32 %v1179, 7
          %v1181 = vsub.s32 4, %v1180
          %v1182 = vrot.slane %v1046, %v1181
          %v1183 = vlaneseq
          %v1184 = vshrl.u32 %v1183, 7
          %v1185 = vsub.s32 4, %v1184
          %v1186 = vrot.slane %v1047, %v1185
          %v1187 = vlaneseq
          %v1188 = vshrl.u32 %v1187, 7
          %v1189 = vsub.s32 4, %v1188
          %v1190 = vrot.slane %v1050, %v1189
          %v1191 = vlaneseq
          %v1192 = vshrl.u32 %v1191, 7
          %v1193 = vsub.s32 4, %v1192
          %v1194 = vrot.slane %v1051, %v1193
          %v1195 = vlaneseq
          %v1196 = vshrl.u32 %v1195, 7
          %v1197 = vsub.s32 4, %v1196
          %v1198 = vrot.slane %v1054, %v1197
          %v1199 = vlaneseq
          %v1200 = vshrl.u32 %v1199, 7
          %v1201 = vsub.s32 4, %v1200
          %v1202 = vrot.slane %v1055, %v1201
          %v1203 = vsub.f32 %v349, %v1174
          %v1204 = vsub.f32 %v349, %v1178
          %v1205 = vsub.f32 %v349, %v1182
          %v1206 = vsub.f32 %v349, %v1186
          %v1207 = vsub.f32 %v349, %v1190
          %v1208 = vsub.f32 %v349, %v1194
          %v1209 = vsub.f32 %v349, %v1198
          %v1210 = vsub.f32 %v349, %v1202
          %v1211 = vsub.f32 %v350, %v1174
          %v1212 = vsub.f32 %v350, %v1178
          %v1213 = vsub.f32 %v350, %v1182
          %v1214 = vsub.f32 %v350, %v1186
          %v1215 = vsub.f32 %v350, %v1190
          %v1216 = vsub.f32 %v350, %v1194
          %v1217 = vsub.f32 %v350, %v1198
          %v1218 = vsub.f32 %v350, %v1202
          %v1219 = vand.u32 2147483647, %v1203
          %v1220 = vand.u32 2147483647, %v1204
          %v1221 = vand.u32 2147483647, %v1205
          %v1222 = vand.u32 2147483647, %v1206
          %v1223 = vand.u32 2147483647, %v1207
          %v1224 = vand.u32 2147483647, %v1208
          %v1225 = vand.u32 2147483647, %v1209
          %v1226 = vand.u32 2147483647, %v1210
          %v1227 = vand.u32 2147483647, %v1211
          %v1228 = vand.u32 2147483647, %v1212
          %v1229 = vand.u32 2147483647, %v1213
          %v1230 = vand.u32 2147483647, %v1214
          %v1231 = vand.u32 2147483647, %v1215
          %v1232 = vand.u32 2147483647, %v1216
          %v1233 = vand.u32 2147483647, %v1217
          %v1234 = vand.u32 2147483647, %v1218
          %v1235 = vsub.f32 1.0, %v1219
          %v1236 = vsub.f32 1.0, %v1220
          %v1237 = vsub.f32 1.0, %v1221
          %v1238 = vsub.f32 1.0, %v1222
          %v1239 = vsub.f32 1.0, %v1223
          %v1240 = vsub.f32 1.0, %v1224
          %v1241 = vsub.f32 1.0, %v1225
          %v1242 = vsub.f32 1.0, %v1226
          %v1243 = vsub.f32 1.0, %v1227
          %v1244 = vsub.f32 1.0, %v1228
          %v1245 = vsub.f32 1.0, %v1229
          %v1246 = vsub.f32 1.0, %v1230
          %v1247 = vsub.f32 1.0, %v1231
          %v1248 = vsub.f32 1.0, %v1232
          %v1249 = vsub.f32 1.0, %v1233
          %v1250 = vsub.f32 1.0, %v1234
          %v1251 = vmax.f32 %v1235, 0.0
          %v1252 = vmax.f32 %v1236, 0.0
          %v1253 = vmax.f32 %v1237, 0.0
          %v1254 = vmax.f32 %v1238, 0.0
          %v1255 = vmax.f32 %v1239, 0.0
          %v1256 = vmax.f32 %v1240, 0.0
          %v1257 = vmax.f32 %v1241, 0.0
          %v1258 = vmax.f32 %v1242, 0.0
          %v1259 = vmax.f32 %v1243, 0.0
          %v1260 = vmax.f32 %v1244, 0.0
          %v1261 = vmax.f32 %v1245, 0.0
          %v1262 = vmax.f32 %v1246, 0.0
          %v1263 = vmax.f32 %v1247, 0.0
          %v1264 = vmax.f32 %v1248, 0.0
          %v1265 = vmax.f32 %v1249, 0.0
          %v1266 = vmax.f32 %v1250, 0.0
          %s1267 = scalar_lea.vmem [#allocation3], 256
          %1268 = vst [vmem:[%s1267] sm:$0xff] %v1251
          %1269 = vst [vmem:[%s1267 + $0x8] sm:$0xff] %v1252
          %1270 = vst [vmem:[%s1267 + $0x10] sm:$0xff] %v1253
          %1271 = vst [vmem:[%s1267 + $0x18] sm:$0xff] %v1254
          %1272 = vst [vmem:[%s1267 + $0x20] sm:$0xff] %v1255
          %1273 = vst [vmem:[%s1267 + $0x28] sm:$0xff] %v1256
          %1274 = vst [vmem:[%s1267 + $0x30] sm:$0xff] %v1257
          %1275 = vst [vmem:[%s1267 + $0x38] sm:$0xff] %v1258
          %1276 = vst [vmem:[%s1267 + $0x40] sm:$0xff] %v1259
          %1277 = vst [vmem:[%s1267 + $0x48] sm:$0xff] %v1260
          %1278 = vst [vmem:[%s1267 + $0x50] sm:$0xff] %v1261
          %1279 = vst [vmem:[%s1267 + $0x58] sm:$0xff] %v1262
          %1280 = vst [vmem:[%s1267 + $0x60] sm:$0xff] %v1263
          %1281 = vst [vmem:[%s1267 + $0x68] sm:$0xff] %v1264
          %1282 = vst [vmem:[%s1267 + $0x70] sm:$0xff] %v1265
          %1283 = vst [vmem:[%s1267 + $0x78] sm:$0xff] %v1266
          %s1284 = scalar_lea.vmem %s331, 24
          %v1285 = vld [vmem:[%s1284] sm:$0xff]
          %1287 = vset.pattern.permute.xlu0 0
          %1288 = vperm.xlu0 %1287, %v1285
          %v1289 = vpop.permute.xlu0 %1288
          %v1291 = vmul.f32 %v1289, %v371
          %v1292 = vmul.f32 %v1289, %v375
          %1293 = vset.pattern.permute.xlu0 1
          %1294 = vperm.xlu0 %1293, %v1285
          %v1295 = vpop.permute.xlu0 %1294
          %v1297 = vmul.f32 %v1295, %v395
          %v1298 = vmul.f32 %v1295, %v399
          %v1299 = vadd.f32 %v1291, %v1297
          %v1300 = vadd.f32 %v1292, %v1298
          %1301 = vset.pattern.permute.xlu0 2
          %1302 = vperm.xlu0 %1301, %v1285
          %v1303 = vpop.permute.xlu0 %1302
          %v1305 = vmul.f32 %v1303, %v421
          %v1306 = vmul.f32 %v1303, %v425
          %v1307 = vadd.f32 %v1299, %v1305
          %v1308 = vadd.f32 %v1300, %v1306
          %1309 = vset.pattern.permute.xlu0 3
          %1310 = vperm.xlu0 %1309, %v1285
          %v1311 = vpop.permute.xlu0 %1310
          %v1313 = vmul.f32 %v1311, %v447
          %v1314 = vmul.f32 %v1311, %v451
          %v1315 = vadd.f32 %v1307, %v1313
          %v1316 = vadd.f32 %v1308, %v1314
          %s1317 = scalar_lea.vmem %s337, 24
          %v1318 = vld [vmem:[%s1317] sm:$0xff]
          %1320 = vset.pattern.permute.xlu0 0
          %1321 = vperm.xlu0 %1320, %v1318
          %v1322 = vpop.permute.xlu0 %1321
          %v1324 = vadd.f32 %v1315, %v1322
          %v1325 = vadd.f32 %v1316, %v1322
          %v1326 = vadd.f32 %v1324, %v344
          %v1327 = vadd.f32 %v1325, %v345
          %v1328 = vmax.f32 %v1326, 0.0
          %v1329 = vmax.f32 %v1327, 0.0
          %v1330 = vmin.f32 %v1328, 15.0
          %v1331 = vmin.f32 %v1329, 15.0
          %v1334 = vrot.slane %v1330, 1
          %v1335 = vrot.slane %v1331, 1
          %v1338 = vrot.slane %v1330, 2
          %v1339 = vrot.slane %v1331, 2
          %v1342 = vrot.slane %v1330, 3
          %v1343 = vrot.slane %v1331, 3
          %v1346 = vlaneseq
          %v1347 = vshrl.u32 %v1346, 7
          %v1348 = vsub.s32 0, %v1347
          %v1349 = vrot.slane %v1330, %v1348
          %v1350 = vlaneseq
          %v1351 = vshrl.u32 %v1350, 7
          %v1352 = vsub.s32 0, %v1351
          %v1353 = vrot.slane %v1331, %v1352
          %v1354 = vlaneseq
          %v1355 = vshrl.u32 %v1354, 7
          %v1356 = vsub.s32 0, %v1355
          %v1357 = vrot.slane %v1334, %v1356
          %v1358 = vlaneseq
          %v1359 = vshrl.u32 %v1358, 7
          %v1360 = vsub.s32 0, %v1359
          %v1361 = vrot.slane %v1335, %v1360
          %v1362 = vlaneseq
          %v1363 = vshrl.u32 %v1362, 7
          %v1364 = vsub.s32 0, %v1363
          %v1365 = vrot.slane %v1338, %v1364
          %v1366 = vlaneseq
          %v1367 = vshrl.u32 %v1366, 7
          %v1368 = vsub.s32 0, %v1367
          %v1369 = vrot.slane %v1339, %v1368
          %v1370 = vlaneseq
          %v1371 = vshrl.u32 %v1370, 7
          %v1372 = vsub.s32 0, %v1371
          %v1373 = vrot.slane %v1342, %v1372
          %v1374 = vlaneseq
          %v1375 = vshrl.u32 %v1374, 7
          %v1376 = vsub.s32 0, %v1375
          %v1377 = vrot.slane %v1343, %v1376
          %v1378 = vsub.f32 %v349, %v1349
          %v1379 = vsub.f32 %v349, %v1353
          %v1380 = vsub.f32 %v349, %v1357
          %v1381 = vsub.f32 %v349, %v1361
          %v1382 = vsub.f32 %v349, %v1365
          %v1383 = vsub.f32 %v349, %v1369
          %v1384 = vsub.f32 %v349, %v1373
          %v1385 = vsub.f32 %v349, %v1377
          %v1386 = vsub.f32 %v350, %v1349
          %v1387 = vsub.f32 %v350, %v1353
          %v1388 = vsub.f32 %v350, %v1357
          %v1389 = vsub.f32 %v350, %v1361
          %v1390 = vsub.f32 %v350, %v1365
          %v1391 = vsub.f32 %v350, %v1369
          %v1392 = vsub.f32 %v350, %v1373
          %v1393 = vsub.f32 %v350, %v1377
          %v1394 = vand.u32 2147483647, %v1378
          %v1395 = vand.u32 2147483647, %v1379
          %v1396 = vand.u32 2147483647, %v1380
          %v1397 = vand.u32 2147483647, %v1381
          %v1398 = vand.u32 2147483647, %v1382
          %v1399 = vand.u32 2147483647, %v1383
          %v1400 = vand.u32 2147483647, %v1384
          %v1401 = vand.u32 2147483647, %v1385
          %v1402 = vand.u32 2147483647, %v1386
          %v1403 = vand.u32 2147483647, %v1387
          %v1404 = vand.u32 2147483647, %v1388
          %v1405 = vand.u32 2147483647, %v1389
          %v1406 = vand.u32 2147483647, %v1390
          %v1407 = vand.u32 2147483647, %v1391
          %v1408 = vand.u32 2147483647, %v1392
          %v1409 = vand.u32 2147483647, %v1393
          %v1410 = vsub.f32 1.0, %v1394
          %v1411 = vsub.f32 1.0, %v1395
          %v1412 = vsub.f32 1.0, %v1396
          %v1413 = vsub.f32 1.0, %v1397
          %v1414 = vsub.f32 1.0, %v1398
          %v1415 = vsub.f32 1.0, %v1399
          %v1416 = vsub.f32 1.0, %v1400
          %v1417 = vsub.f32 1.0, %v1401
          %v1418 = vsub.f32 1.0, %v1402
          %v1419 = vsub.f32 1.0, %v1403
          %v1420 = vsub.f32 1.0, %v1404
          %v1421 = vsub.f32 1.0, %v1405
          %v1422 = vsub.f32 1.0, %v1406
          %v1423 = vsub.f32 1.0, %v1407
          %v1424 = vsub.f32 1.0, %v1408
          %v1425 = vsub.f32 1.0, %v1409
          %v1426 = vmax.f32 %v1410, 0.0
          %v1427 = vmax.f32 %v1411, 0.0
          %v1428 = vmax.f32 %v1412, 0.0
          %v1429 = vmax.f32 %v1413, 0.0
          %v1430 = vmax.f32 %v1414, 0.0
          %v1431 = vmax.f32 %v1415, 0.0
          %v1432 = vmax.f32 %v1416, 0.0
          %v1433 = vmax.f32 %v1417, 0.0
          %v1434 = vmax.f32 %v1418, 0.0
          %v1435 = vmax.f32 %v1419, 0.0
          %v1436 = vmax.f32 %v1420, 0.0
          %v1437 = vmax.f32 %v1421, 0.0
          %v1438 = vmax.f32 %v1422, 0.0
          %v1439 = vmax.f32 %v1423, 0.0
          %v1440 = vmax.f32 %v1424, 0.0
          %v1441 = vmax.f32 %v1425, 0.0
          %s1442 = scalar_lea.vmem [#allocation2], 384
          %1443 = vst [vmem:[%s1442] sm:$0xff] %v1426
          %1444 = vst [vmem:[%s1442 + $0x8] sm:$0xff] %v1427
          %1445 = vst [vmem:[%s1442 + $0x10] sm:$0xff] %v1428
          %1446 = vst [vmem:[%s1442 + $0x18] sm:$0xff] %v1429
          %1447 = vst [vmem:[%s1442 + $0x20] sm:$0xff] %v1430
          %1448 = vst [vmem:[%s1442 + $0x28] sm:$0xff] %v1431
          %1449 = vst [vmem:[%s1442 + $0x30] sm:$0xff] %v1432
          %1450 = vst [vmem:[%s1442 + $0x38] sm:$0xff] %v1433
          %1451 = vst [vmem:[%s1442 + $0x40] sm:$0xff] %v1434
          %1452 = vst [vmem:[%s1442 + $0x48] sm:$0xff] %v1435
          %1453 = vst [vmem:[%s1442 + $0x50] sm:$0xff] %v1436
          %1454 = vst [vmem:[%s1442 + $0x58] sm:$0xff] %v1437
          %1455 = vst [vmem:[%s1442 + $0x60] sm:$0xff] %v1438
          %1456 = vst [vmem:[%s1442 + $0x68] sm:$0xff] %v1439
          %1457 = vst [vmem:[%s1442 + $0x70] sm:$0xff] %v1440
          %1458 = vst [vmem:[%s1442 + $0x78] sm:$0xff] %v1441
          %v1459 = vlaneseq
          %v1460 = vshrl.u32 %v1459, 7
          %v1461 = vsub.s32 4, %v1460
          %v1462 = vrot.slane %v1330, %v1461
          %v1463 = vlaneseq
          %v1464 = vshrl.u32 %v1463, 7
          %v1465 = vsub.s32 4, %v1464
          %v1466 = vrot.slane %v1331, %v1465
          %v1467 = vlaneseq
          %v1468 = vshrl.u32 %v1467, 7
          %v1469 = vsub.s32 4, %v1468
          %v1470 = vrot.slane %v1334, %v1469
          %v1471 = vlaneseq
          %v1472 = vshrl.u32 %v1471, 7
          %v1473 = vsub.s32 4, %v1472
          %v1474 = vrot.slane %v1335, %v1473
          %v1475 = vlaneseq
          %v1476 = vshrl.u32 %v1475, 7
          %v1477 = vsub.s32 4, %v1476
          %v1478 = vrot.slane %v1338, %v1477
          %v1479 = vlaneseq
          %v1480 = vshrl.u32 %v1479, 7
          %v1481 = vsub.s32 4, %v1480
          %v1482 = vrot.slane %v1339, %v1481
          %v1483 = vlaneseq
          %v1484 = vshrl.u32 %v1483, 7
          %v1485 = vsub.s32 4, %v1484
          %v1486 = vrot.slane %v1342, %v1485
          %v1487 = vlaneseq
          %v1488 = vshrl.u32 %v1487, 7
          %v1489 = vsub.s32 4, %v1488
          %v1490 = vrot.slane %v1343, %v1489
          %v1491 = vsub.f32 %v349, %v1462
          %v1492 = vsub.f32 %v349, %v1466
          %v1493 = vsub.f32 %v349, %v1470
          %v1494 = vsub.f32 %v349, %v1474
          %v1495 = vsub.f32 %v349, %v1478
          %v1496 = vsub.f32 %v349, %v1482
          %v1497 = vsub.f32 %v349, %v1486
          %v1498 = vsub.f32 %v349, %v1490
          %v1499 = vsub.f32 %v350, %v1462
          %v1500 = vsub.f32 %v350, %v1466
          %v1501 = vsub.f32 %v350, %v1470
          %v1502 = vsub.f32 %v350, %v1474
          %v1503 = vsub.f32 %v350, %v1478
          %v1504 = vsub.f32 %v350, %v1482
          %v1505 = vsub.f32 %v350, %v1486
          %v1506 = vsub.f32 %v350, %v1490
          %v1507 = vand.u32 2147483647, %v1491
          %v1508 = vand.u32 2147483647, %v1492
          %v1509 = vand.u32 2147483647, %v1493
          %v1510 = vand.u32 2147483647, %v1494
          %v1511 = vand.u32 2147483647, %v1495
          %v1512 = vand.u32 2147483647, %v1496
          %v1513 = vand.u32 2147483647, %v1497
          %v1514 = vand.u32 2147483647, %v1498
          %v1515 = vand.u32 2147483647, %v1499
          %v1516 = vand.u32 2147483647, %v1500
          %v1517 = vand.u32 2147483647, %v1501
          %v1518 = vand.u32 2147483647, %v1502
          %v1519 = vand.u32 2147483647, %v1503
          %v1520 = vand.u32 2147483647, %v1504
          %v1521 = vand.u32 2147483647, %v1505
          %v1522 = vand.u32 2147483647, %v1506
          %v1523 = vsub.f32 1.0, %v1507
          %v1524 = vsub.f32 1.0, %v1508
          %v1525 = vsub.f32 1.0, %v1509
          %v1526 = vsub.f32 1.0, %v1510
          %v1527 = vsub.f32 1.0, %v1511
          %v1528 = vsub.f32 1.0, %v1512
          %v1529 = vsub.f32 1.0, %v1513
          %v1530 = vsub.f32 1.0, %v1514
          %v1531 = vsub.f32 1.0, %v1515
          %v1532 = vsub.f32 1.0, %v1516
          %v1533 = vsub.f32 1.0, %v1517
          %v1534 = vsub.f32 1.0, %v1518
          %v1535 = vsub.f32 1.0, %v1519
          %v1536 = vsub.f32 1.0, %v1520
          %v1537 = vsub.f32 1.0, %v1521
          %v1538 = vsub.f32 1.0, %v1522
          %v1539 = vmax.f32 %v1523, 0.0
          %v1540 = vmax.f32 %v1524, 0.0
          %v1541 = vmax.f32 %v1525, 0.0
          %v1542 = vmax.f32 %v1526, 0.0
          %v1543 = vmax.f32 %v1527, 0.0
          %v1544 = vmax.f32 %v1528, 0.0
          %v1545 = vmax.f32 %v1529, 0.0
          %v1546 = vmax.f32 %v1530, 0.0
          %v1547 = vmax.f32 %v1531, 0.0
          %v1548 = vmax.f32 %v1532, 0.0
          %v1549 = vmax.f32 %v1533, 0.0
          %v1550 = vmax.f32 %v1534, 0.0
          %v1551 = vmax.f32 %v1535, 0.0
          %v1552 = vmax.f32 %v1536, 0.0
          %v1553 = vmax.f32 %v1537, 0.0
          %v1554 = vmax.f32 %v1538, 0.0
          %s1555 = scalar_lea.vmem [#allocation3], 384
          %1556 = vst [vmem:[%s1555] sm:$0xff] %v1539
          %1557 = vst [vmem:[%s1555 + $0x8] sm:$0xff] %v1540
          %1558 = vst [vmem:[%s1555 + $0x10] sm:$0xff] %v1541
          %1559 = vst [vmem:[%s1555 + $0x18] sm:$0xff] %v1542
          %1560 = vst [vmem:[%s1555 + $0x20] sm:$0xff] %v1543
          %1561 = vst [vmem:[%s1555 + $0x28] sm:$0xff] %v1544
          %1562 = vst [vmem:[%s1555 + $0x30] sm:$0xff] %v1545
          %1563 = vst [vmem:[%s1555 + $0x38] sm:$0xff] %v1546
          %1564 = vst [vmem:[%s1555 + $0x40] sm:$0xff] %v1547
          %1565 = vst [vmem:[%s1555 + $0x48] sm:$0xff] %v1548
          %1566 = vst [vmem:[%s1555 + $0x50] sm:$0xff] %v1549
          %1567 = vst [vmem:[%s1555 + $0x58] sm:$0xff] %v1550
          %1568 = vst [vmem:[%s1555 + $0x60] sm:$0xff] %v1551
          %1569 = vst [vmem:[%s1555 + $0x68] sm:$0xff] %v1552
          %1570 = vst [vmem:[%s1555 + $0x70] sm:$0xff] %v1553
          %1571 = vst [vmem:[%s1555 + $0x78] sm:$0xff] %v1554
        $region48: #{tpu_custom_call.1} parent=39 // pred_fallthru
          _
        %v1572 = vld [vmem:[%s279] sm:$0xff]
        %v1573 = vld [vmem:[%s279 + $0x8] sm:$0xff]
        %v1574 = vld [vmem:[#allocation2] sm:$0xff]
        %v1575 = vld [vmem:[#allocation2 + $0x8] sm:$0xff]
        %v1576 = vld [vmem:[#allocation2 + $0x10] sm:$0xff]
        %v1577 = vld [vmem:[#allocation2 + $0x18] sm:$0xff]
        %v1578 = vld [vmem:[#allocation2 + $0x20] sm:$0xff]
        %v1579 = vld [vmem:[#allocation2 + $0x28] sm:$0xff]
        %v1580 = vld [vmem:[#allocation2 + $0x30] sm:$0xff]
        %v1581 = vld [vmem:[#allocation2 + $0x38] sm:$0xff]
        %v1582 = vld [vmem:[#allocation2 + $0x40] sm:$0xff]
        %v1583 = vld [vmem:[#allocation2 + $0x48] sm:$0xff]
        %v1584 = vld [vmem:[#allocation2 + $0x50] sm:$0xff]
        %v1585 = vld [vmem:[#allocation2 + $0x58] sm:$0xff]
        %v1586 = vld [vmem:[#allocation2 + $0x60] sm:$0xff]
        %v1587 = vld [vmem:[#allocation2 + $0x68] sm:$0xff]
        %v1588 = vld [vmem:[#allocation2 + $0x70] sm:$0xff]
        %v1589 = vld [vmem:[#allocation2 + $0x78] sm:$0xff]
        %vm1590 = vcmask 130048
        %v1592 = vsel %vm1590, %v1572, 0
        %v1595 = vsel %vm1590, %v1573, 0
        %1597 = vmatprep.subr.mxu0 %v1575
        %1598 = vmatpush1.msra.mxu0 %v1574
        %1599 = vmatprep.subr.mxu0 %v1583
        %1600 = vmatpush1.msra.mxu0 %v1582
        %1601 = vmatprep.subr.mxu0 0.0
        %1602 = vmatpush1.msra.mxu0 0.0
        %1603 = vmatprep.subr.mxu0 0.0
        %1604 = vmatpush1.msra.mxu0 0.0
        %1605 = vmatprep.subr.mxu0 0.0
        %1606 = vmatpush1.msra.mxu0 0.0
        %1607 = vmatprep.subr.mxu0 0.0
        %1608 = vmatpush1.msra.mxu0 0.0
        %1609 = vmatprep.subr.mxu0 0.0
        %1610 = vmatpush1.msra.mxu0 0.0
        %1611 = vmatprep.subr.mxu0 0.0
        %1612 = vmatpush1.msra.mxu0 0.0
        %1613 = vmatprep.subr.mxu0 0.0
        %1614 = vmatpush1.msra.mxu0 0.0
        %1615 = vmatprep.subr.mxu0 0.0
        %1616 = vmatpush1.msra.mxu0 0.0
        %1617 = vmatprep.subr.mxu0 0.0
        %1618 = vmatpush1.msra.mxu0 0.0
        %1619 = vmatprep.subr.mxu0 0.0
        %1620 = vmatpush1.msra.mxu0 0.0
        %1621 = vmatprep.subr.mxu0 0.0
        %1622 = vmatpush1.msra.mxu0 0.0
        %1623 = vmatprep.subr.mxu0 0.0
        %1624 = vmatpush1.msra.mxu0 0.0
        %1625 = vmatprep.subr.mxu0 0.0
        %1626 = vmatpush1.msra.mxu0 0.0
        %1627 = vmatprep.subr.mxu0 0.0
        %1628 = vmatpush1.msra.mxu0 0.0
        %1629 = vmatprep.subr.mxu0 0.0
        %1630 = vmatpush1.msra.mxu0 0.0
        %1631 = vmatprep.subr.mxu0 0.0
        %1632 = vmatpush1.msra.mxu0 0.0
        %1633 = vmatprep.subr.mxu0 0.0
        %1634 = vmatpush1.msra.mxu0 0.0
        %1635 = vmatprep.subr.mxu0 0.0
        %1636 = vmatpush1.msra.mxu0 0.0
        %1637 = vmatprep.subr.mxu0 0.0
        %1638 = vmatpush1.msra.mxu0 0.0
        %1639 = vmatprep.subr.mxu0 0.0
        %1640 = vmatpush1.msra.mxu0 0.0
        %1641 = vmatprep.subr.mxu0 0.0
        %1642 = vmatpush1.msra.mxu0 0.0
        %1643 = vmatprep.subr.mxu0 0.0
        %1644 = vmatpush1.msra.mxu0 0.0
        %1645 = vmatprep.subr.mxu0 0.0
        %1646 = vmatpush1.msra.mxu0 0.0
        %1647 = vmatprep.subr.mxu0 0.0
        %1648 = vmatpush1.msra.mxu0 0.0
        %1649 = vmatprep.subr.mxu0 0.0
        %1650 = vmatpush1.msra.mxu0 0.0
        %1651 = vmatprep.subr.mxu0 0.0
        %1652 = vmatpush1.msra.mxu0 0.0
        %1653 = vmatprep.subr.mxu0 0.0
        %1654 = vmatpush1.msra.mxu0 0.0
        %1655 = vmatprep.subr.mxu0 0.0
        %1656 = vmatpush1.msra.mxu0 0.0
        %1657 = vmatprep.subr.mxu0 0.0
        %1658 = vmatpush1.msra.mxu0 0.0
        %1659 = vmatprep.subr.mxu0 0.0
        %1660 = vmatpush1.msra.mxu0 0.0
        %1661 = vmatprep.mubr.f32.mxu0 0.0
        %1662 = vmatmul.mubr.f32.gmra.mrb[0].mxu0 %v1592
        %v1663 = vpop.f32.mrb[0].mxu0
        %v1664 = vadd.f32 0.0, %v1663
        %v1665 = vpop.f32.mrb[0].mxu0
        %v1666 = vadd.f32 0.0, %v1665
        %1667 = vmatprep.mubr.f32.mxu0 0.0
        %1668 = vmatmul.mubr.f32.gmra.mrb[0].mxu0 %v1595
        %v1669 = vpop.f32.mrb[0].mxu0
        %v1670 = vadd.f32 0.0, %v1669
        %v1671 = vpop.f32.mrb[0].mxu0
        %v1672 = vadd.f32 0.0, %v1671
        %1673 = vdwg.mxu0
        %1674 = vmatprep.subr.mxu0 %v1577
        %1675 = vmatpush1.msra.mxu0 %v1576
        %1676 = vmatprep.subr.mxu0 %v1585
        %1677 = vmatpush1.msra.mxu0 %v1584
        %1678 = vmatprep.subr.mxu0 0.0
        %1679 = vmatpush1.msra.mxu0 0.0
        %1680 = vmatprep.subr.mxu0 0.0
        %1681 = vmatpush1.msra.mxu0 0.0
        %1682 = vmatprep.subr.mxu0 0.0
        %1683 = vmatpush1.msra.mxu0 0.0
        %1684 = vmatprep.subr.mxu0 0.0
        %1685 = vmatpush1.msra.mxu0 0.0
        %1686 = vmatprep.subr.mxu0 0.0
        %1687 = vmatpush1.msra.mxu0 0.0
        %1688 = vmatprep.subr.mxu0 0.0
        %1689 = vmatpush1.msra.mxu0 0.0
        %1690 = vmatprep.subr.mxu0 0.0
        %1691 = vmatpush1.msra.mxu0 0.0
        %1692 = vmatprep.subr.mxu0 0.0
        %1693 = vmatpush1.msra.mxu0 0.0
        %1694 = vmatprep.subr.mxu0 0.0
        %1695 = vmatpush1.msra.mxu0 0.0
        %1696 = vmatprep.subr.mxu0 0.0
        %1697 = vmatpush1.msra.mxu0 0.0
        %1698 = vmatprep.subr.mxu0 0.0
        %1699 = vmatpush1.msra.mxu0 0.0
        %1700 = vmatprep.subr.mxu0 0.0
        %1701 = vmatpush1.msra.mxu0 0.0
        %1702 = vmatprep.subr.mxu0 0.0
        %1703 = vmatpush1.msra.mxu0 0.0
        %1704 = vmatprep.subr.mxu0 0.0
        %1705 = vmatpush1.msra.mxu0 0.0
        %1706 = vmatprep.subr.mxu0 0.0
        %1707 = vmatpush1.msra.mxu0 0.0
        %1708 = vmatprep.subr.mxu0 0.0
        %1709 = vmatpush1.msra.mxu0 0.0
        %1710 = vmatprep.subr.mxu0 0.0
        %1711 = vmatpush1.msra.mxu0 0.0
        %1712 = vmatprep.subr.mxu0 0.0
        %1713 = vmatpush1.msra.mxu0 0.0
        %1714 = vmatprep.subr.mxu0 0.0
        %1715 = vmatpush1.msra.mxu0 0.0
        %1716 = vmatprep.subr.mxu0 0.0
        %1717 = vmatpush1.msra.mxu0 0.0
        %1718 = vmatprep.subr.mxu0 0.0
        %1719 = vmatpush1.msra.mxu0 0.0
        %1720 = vmatprep.subr.mxu0 0.0
        %1721 = vmatpush1.msra.mxu0 0.0
        %1722 = vmatprep.subr.mxu0 0.0
        %1723 = vmatpush1.msra.mxu0 0.0
        %1724 = vmatprep.subr.mxu0 0.0
        %1725 = vmatpush1.msra.mxu0 0.0
        %1726 = vmatprep.subr.mxu0 0.0
        %1727 = vmatpush1.msra.mxu0 0.0
        %1728 = vmatprep.subr.mxu0 0.0
        %1729 = vmatpush1.msra.mxu0 0.0
        %1730 = vmatprep.subr.mxu0 0.0
        %1731 = vmatpush1.msra.mxu0 0.0
        %1732 = vmatprep.subr.mxu0 0.0
        %1733 = vmatpush1.msra.mxu0 0.0
        %1734 = vmatprep.subr.mxu0 0.0
        %1735 = vmatpush1.msra.mxu0 0.0
        %1736 = vmatprep.subr.mxu0 0.0
        %1737 = vmatpush1.msra.mxu0 0.0
        %1738 = vmatprep.mubr.f32.mxu0 0.0
        %1739 = vmatmul.mubr.f32.gmra.mrb[0].mxu0 %v1592
        %v1740 = vpop.f32.mrb[0].mxu0
        %v1741 = vadd.f32 0.0, %v1740
        %v1742 = vpop.f32.mrb[0].mxu0
        %v1743 = vadd.f32 0.0, %v1742
        %1744 = vmatprep.mubr.f32.mxu0 0.0
        %1745 = vmatmul.mubr.f32.gmra.mrb[0].mxu0 %v1595
        %v1746 = vpop.f32.mrb[0].mxu0
        %v1747 = vadd.f32 0.0, %v1746
        %v1748 = vpop.f32.mrb[0].mxu0
        %v1749 = vadd.f32 0.0, %v1748
        %1750 = vdwg.mxu0
        %1751 = vmatprep.subr.mxu0 %v1579
        %1752 = vmatpush1.msra.mxu0 %v1578
        %1753 = vmatprep.subr.mxu0 %v1587
        %1754 = vmatpush1.msra.mxu0 %v1586
        %1755 = vmatprep.subr.mxu0 0.0
        %1756 = vmatpush1.msra.mxu0 0.0
        %1757 = vmatprep.subr.mxu0 0.0
        %1758 = vmatpush1.msra.mxu0 0.0
        %1759 = vmatprep.subr.mxu0 0.0
        %1760 = vmatpush1.msra.mxu0 0.0
        %1761 = vmatprep.subr.mxu0 0.0
        %1762 = vmatpush1.msra.mxu0 0.0
        %1763 = vmatprep.subr.mxu0 0.0
        %1764 = vmatpush1.msra.mxu0 0.0
        %1765 = vmatprep.subr.mxu0 0.0
        %1766 = vmatpush1.msra.mxu0 0.0
        %1767 = vmatprep.subr.mxu0 0.0
        %1768 = vmatpush1.msra.mxu0 0.0
        %1769 = vmatprep.subr.mxu0 0.0
        %1770 = vmatpush1.msra.mxu0 0.0
        %1771 = vmatprep.subr.mxu0 0.0
        %1772 = vmatpush1.msra.mxu0 0.0
        %1773 = vmatprep.subr.mxu0 0.0
        %1774 = vmatpush1.msra.mxu0 0.0
        %1775 = vmatprep.subr.mxu0 0.0
        %1776 = vmatpush1.msra.mxu0 0.0
        %1777 = vmatprep.subr.mxu0 0.0
        %1778 = vmatpush1.msra.mxu0 0.0
        %1779 = vmatprep.subr.mxu0 0.0
        %1780 = vmatpush1.msra.mxu0 0.0
        %1781 = vmatprep.subr.mxu0 0.0
        %1782 = vmatpush1.msra.mxu0 0.0
        %1783 = vmatprep.subr.mxu0 0.0
        %1784 = vmatpush1.msra.mxu0 0.0
        %1785 = vmatprep.subr.mxu0 0.0
        %1786 = vmatpush1.msra.mxu0 0.0
        %1787 = vmatprep.subr.mxu0 0.0
        %1788 = vmatpush1.msra.mxu0 0.0
        %1789 = vmatprep.subr.mxu0 0.0
        %1790 = vmatpush1.msra.mxu0 0.0
        %1791 = vmatprep.subr.mxu0 0.0
        %1792 = vmatpush1.msra.mxu0 0.0
        %1793 = vmatprep.subr.mxu0 0.0
        %1794 = vmatpush1.msra.mxu0 0.0
        %1795 = vmatprep.subr.mxu0 0.0
        %1796 = vmatpush1.msra.mxu0 0.0
        %1797 = vmatprep.subr.mxu0 0.0
        %1798 = vmatpush1.msra.mxu0 0.0
        %1799 = vmatprep.subr.mxu0 0.0
        %1800 = vmatpush1.msra.mxu0 0.0
        %1801 = vmatprep.subr.mxu0 0.0
        %1802 = vmatpush1.msra.mxu0 0.0
        %1803 = vmatprep.subr.mxu0 0.0
        %1804 = vmatpush1.msra.mxu0 0.0
        %1805 = vmatprep.subr.mxu0 0.0
        %1806 = vmatpush1.msra.mxu0 0.0
        %1807 = vmatprep.subr.mxu0 0.0
        %1808 = vmatpush1.msra.mxu0 0.0
        %1809 = vmatprep.subr.mxu0 0.0
        %1810 = vmatpush1.msra.mxu0 0.0
        %1811 = vmatprep.subr.mxu0 0.0
        %1812 = vmatpush1.msra.mxu0 0.0
        %1813 = vmatprep.subr.mxu0 0.0
        %1814 = vmatpush1.msra.mxu0 0.0
        %1815 = vmatprep.mubr.f32.mxu0 0.0
        %1816 = vmatmul.mubr.f32.gmra.mrb[0].mxu0 %v1592
        %v1817 = vpop.f32.mrb[0].mxu0
        %v1818 = vadd.f32 0.0, %v1817
        %v1819 = vpop.f32.mrb[0].mxu0
        %v1820 = vadd.f32 0.0, %v1819
        %1821 = vmatprep.mubr.f32.mxu0 0.0
        %1822 = vmatmul.mubr.f32.gmra.mrb[0].mxu0 %v1595
        %v1823 = vpop.f32.mrb[0].mxu0
        %v1824 = vadd.f32 0.0, %v1823
        %v1825 = vpop.f32.mrb[0].mxu0
        %v1826 = vadd.f32 0.0, %v1825
        %1827 = vdwg.mxu0
        %1828 = vmatprep.subr.mxu0 %v1581
        %1829 = vmatpush1.msra.mxu0 %v1580
        %1830 = vmatprep.subr.mxu0 %v1589
        %1831 = vmatpush1.msra.mxu0 %v1588
        %1832 = vmatprep.subr.mxu0 0.0
        %1833 = vmatpush1.msra.mxu0 0.0
        %1834 = vmatprep.subr.mxu0 0.0
        %1835 = vmatpush1.msra.mxu0 0.0
        %1836 = vmatprep.subr.mxu0 0.0
        %1837 = vmatpush1.msra.mxu0 0.0
        %1838 = vmatprep.subr.mxu0 0.0
        %1839 = vmatpush1.msra.mxu0 0.0
        %1840 = vmatprep.subr.mxu0 0.0
        %1841 = vmatpush1.msra.mxu0 0.0
        %1842 = vmatprep.subr.mxu0 0.0
        %1843 = vmatpush1.msra.mxu0 0.0
        %1844 = vmatprep.subr.mxu0 0.0
        %1845 = vmatpush1.msra.mxu0 0.0
        %1846 = vmatprep.subr.mxu0 0.0
        %1847 = vmatpush1.msra.mxu0 0.0
        %1848 = vmatprep.subr.mxu0 0.0
        %1849 = vmatpush1.msra.mxu0 0.0
        %1850 = vmatprep.subr.mxu0 0.0
        %1851 = vmatpush1.msra.mxu0 0.0
        %1852 = vmatprep.subr.mxu0 0.0
        %1853 = vmatpush1.msra.mxu0 0.0
        %1854 = vmatprep.subr.mxu0 0.0
        %1855 = vmatpush1.msra.mxu0 0.0
        %1856 = vmatprep.subr.mxu0 0.0
        %1857 = vmatpush1.msra.mxu0 0.0
        %1858 = vmatprep.subr.mxu0 0.0
        %1859 = vmatpush1.msra.mxu0 0.0
        %1860 = vmatprep.subr.mxu0 0.0
        %1861 = vmatpush1.msra.mxu0 0.0
        %1862 = vmatprep.subr.mxu0 0.0
        %1863 = vmatpush1.msra.mxu0 0.0
        %1864 = vmatprep.subr.mxu0 0.0
        %1865 = vmatpush1.msra.mxu0 0.0
        %1866 = vmatprep.subr.mxu0 0.0
        %1867 = vmatpush1.msra.mxu0 0.0
        %1868 = vmatprep.subr.mxu0 0.0
        %1869 = vmatpush1.msra.mxu0 0.0
        %1870 = vmatprep.subr.mxu0 0.0
        %1871 = vmatpush1.msra.mxu0 0.0
        %1872 = vmatprep.subr.mxu0 0.0
        %1873 = vmatpush1.msra.mxu0 0.0
        %1874 = vmatprep.subr.mxu0 0.0
        %1875 = vmatpush1.msra.mxu0 0.0
        %1876 = vmatprep.subr.mxu0 0.0
        %1877 = vmatpush1.msra.mxu0 0.0
        %1878 = vmatprep.subr.mxu0 0.0
        %1879 = vmatpush1.msra.mxu0 0.0
        %1880 = vmatprep.subr.mxu0 0.0
        %1881 = vmatpush1.msra.mxu0 0.0
        %1882 = vmatprep.subr.mxu0 0.0
        %1883 = vmatpush1.msra.mxu0 0.0
        %1884 = vmatprep.subr.mxu0 0.0
        %1885 = vmatpush1.msra.mxu0 0.0
        %1886 = vmatprep.subr.mxu0 0.0
        %1887 = vmatpush1.msra.mxu0 0.0
        %1888 = vmatprep.subr.mxu0 0.0
        %1889 = vmatpush1.msra.mxu0 0.0
        %1890 = vmatprep.subr.mxu0 0.0
        %1891 = vmatpush1.msra.mxu0 0.0
        %1892 = vmatprep.mubr.f32.mxu0 0.0
        %1893 = vmatmul.mubr.f32.gmra.mrb[0].mxu0 %v1592
        %v1894 = vpop.f32.mrb[0].mxu0
        %v1895 = vadd.f32 0.0, %v1894
        %v1896 = vpop.f32.mrb[0].mxu0
        %v1897 = vadd.f32 0.0, %v1896
        %1898 = vmatprep.mubr.f32.mxu0 0.0
        %1899 = vmatmul.mubr.f32.gmra.mrb[0].mxu0 %v1595
        %v1900 = vpop.f32.mrb[0].mxu0
        %v1901 = vadd.f32 0.0, %v1900
        %v1902 = vpop.f32.mrb[0].mxu0
        %v1903 = vadd.f32 0.0, %v1902
        %1904 = vdwg.mxu0
        %v1905 = vld [vmem:[#allocation3] sm:$0xff]
        %v1906 = vld [vmem:[#allocation3 + $0x8] sm:$0xff]
        %v1907 = vld [vmem:[#allocation3 + $0x10] sm:$0xff]
        %v1908 = vld [vmem:[#allocation3 + $0x18] sm:$0xff]
        %v1909 = vld [vmem:[#allocation3 + $0x20] sm:$0xff]
        %v1910 = vld [vmem:[#allocation3 + $0x28] sm:$0xff]
        %v1911 = vld [vmem:[#allocation3 + $0x30] sm:$0xff]
        %v1912 = vld [vmem:[#allocation3 + $0x38] sm:$0xff]
        %v1913 = vld [vmem:[#allocation3 + $0x40] sm:$0xff]
        %v1914 = vld [vmem:[#allocation3 + $0x48] sm:$0xff]
        %v1915 = vld [vmem:[#allocation3 + $0x50] sm:$0xff]
        %v1916 = vld [vmem:[#allocation3 + $0x58] sm:$0xff]
        %v1917 = vld [vmem:[#allocation3 + $0x60] sm:$0xff]
        %v1918 = vld [vmem:[#allocation3 + $0x68] sm:$0xff]
        %v1919 = vld [vmem:[#allocation3 + $0x70] sm:$0xff]
        %v1920 = vld [vmem:[#allocation3 + $0x78] sm:$0xff]
        %v1921 = vmul.f32 %v1664, %v1905
        %v1922 = vmul.f32 %v1666, %v1906
        %v1923 = vmul.f32 %v1741, %v1907
        %v1924 = vmul.f32 %v1743, %v1908
        %v1925 = vmul.f32 %v1818, %v1909
        %v1926 = vmul.f32 %v1820, %v1910
        %v1927 = vmul.f32 %v1895, %v1911
        %v1928 = vmul.f32 %v1897, %v1912
        %v1929 = vmul.f32 %v1670, %v1913
        %v1930 = vmul.f32 %v1672, %v1914
        %v1931 = vmul.f32 %v1747, %v1915
        %v1932 = vmul.f32 %v1749, %v1916
        %v1933 = vmul.f32 %v1824, %v1917
        %v1934 = vmul.f32 %v1826, %v1918
        %v1935 = vmul.f32 %v1901, %v1919
        %v1936 = vmul.f32 %v1903, %v1920
        %v1937 = vadd.f32 %v1921, %v1929
        %v1938 = vrot.slane %v1937, 4
        %v1939 = vadd.f32 %v1937, %v1938
        %v1940 = vrot.slane %v1939, 2
        %v1941 = vadd.f32 %v1939, %v1940
        %v1942 = vrot.slane %v1941, 1
        %v1943 = vadd.f32 %v1941, %v1942
        %v1944 = vadd.f32 %v1922, %v1930
        %v1945 = vrot.slane %v1944, 4
        %v1946 = vadd.f32 %v1944, %v1945
        %v1947 = vrot.slane %v1946, 2
        %v1948 = vadd.f32 %v1946, %v1947
        %v1949 = vrot.slane %v1948, 1
        %v1950 = vadd.f32 %v1948, %v1949
        %v1951 = vadd.f32 %v1923, %v1931
        %v1952 = vrot.slane %v1951, 4
        %v1953 = vadd.f32 %v1951, %v1952
        %v1954 = vrot.slane %v1953, 2
        %v1955 = vadd.f32 %v1953, %v1954
        %v1956 = vrot.slane %v1955, 1
        %v1957 = vadd.f32 %v1955, %v1956
        %v1958 = vadd.f32 %v1924, %v1932
        %v1959 = vrot.slane %v1958, 4
        %v1960 = vadd.f32 %v1958, %v1959
        %v1961 = vrot.slane %v1960, 2
        %v1962 = vadd.f32 %v1960, %v1961
        %v1963 = vrot.slane %v1962, 1
        %v1964 = vadd.f32 %v1962, %v1963
        %v1965 = vadd.f32 %v1925, %v1933
        %v1966 = vrot.slane %v1965, 4
        %v1967 = vadd.f32 %v1965, %v1966
        %v1968 = vrot.slane %v1967, 2
        %v1969 = vadd.f32 %v1967, %v1968
        %v1970 = vrot.slane %v1969, 1
        %v1971 = vadd.f32 %v1969, %v1970
        %v1972 = vadd.f32 %v1926, %v1934
        %v1973 = vrot.slane %v1972, 4
        %v1974 = vadd.f32 %v1972, %v1973
        %v1975 = vrot.slane %v1974, 2
        %v1976 = vadd.f32 %v1974, %v1975
        %v1977 = vrot.slane %v1976, 1
        %v1978 = vadd.f32 %v1976, %v1977
        %v1979 = vadd.f32 %v1927, %v1935
        %v1980 = vrot.slane %v1979, 4
        %v1981 = vadd.f32 %v1979, %v1980
        %v1982 = vrot.slane %v1981, 2
        %v1983 = vadd.f32 %v1981, %v1982
        %v1984 = vrot.slane %v1983, 1
        %v1985 = vadd.f32 %v1983, %v1984
        %v1986 = vadd.f32 %v1928, %v1936
        %v1987 = vrot.slane %v1986, 4
        %v1988 = vadd.f32 %v1986, %v1987
        %v1989 = vrot.slane %v1988, 2
        %v1990 = vadd.f32 %v1988, %v1989
        %v1991 = vrot.slane %v1990, 1
        %v1992 = vadd.f32 %v1990, %v1991
        %v2001 = vcombine.low %v1943, %v1950
        %v2002 = vcombine.low %v1957, %v1964
        %v2003 = vcombine.low %v1971, %v1978
        %v2004 = vcombine.low %v1985, %v1992
        %v2006 = vunpack.c.l.s4 1966171168
        %v2007 = vunpack.c.0.s8 %v2006
        %v2008 = vlaneseq
        %v2009 = vshrl.u32 %v2008, 7
        %v2010 = vsub.s32 %v2007, %v2009
        %v2011 = vrot.slane %v2001, %v2010
        %v2013 = vunpack.c.l.s4 1966171168
        %v2014 = vunpack.c.0.s8 %v2013
        %v2015 = vlaneseq
        %v2016 = vshrl.u32 %v2015, 7
        %v2017 = vsub.s32 %v2014, %v2016
        %v2018 = vrot.slane %v2002, %v2017
        %v2020 = vunpack.c.l.s4 1966171168
        %v2021 = vunpack.c.0.s8 %v2020
        %v2022 = vlaneseq
        %v2023 = vshrl.u32 %v2022, 7
        %v2024 = vsub.s32 %v2021, %v2023
        %v2025 = vrot.slane %v2003, %v2024
        %v2027 = vunpack.c.l.s4 1966171168
        %v2028 = vunpack.c.0.s8 %v2027
        %v2029 = vlaneseq
        %v2030 = vshrl.u32 %v2029, 7
        %v2031 = vsub.s32 %v2028, %v2030
        %v2032 = vrot.slane %v2004, %v2031
        %v2033 = vcombine.low %v2011, %v2018
        %v2034 = vcombine.low %v2025, %v2032
        %v2036 = vunpack.c.l.s4 1966171168
        %v2037 = vunpack.c.0.s8 %v2036
        %v2038 = vlaneseq
        %v2039 = vshrl.u32 %v2038, 7
        %v2040 = vsub.s32 %v2037, %v2039
        %v2041 = vrot.slane %v2033, %v2040
        %v2043 = vunpack.c.l.s4 1966171168
        %v2044 = vunpack.c.0.s8 %v2043
        %v2045 = vlaneseq
        %v2046 = vshrl.u32 %v2045, 7
        %v2047 = vsub.s32 %v2044, %v2046
        %v2048 = vrot.slane %v2034, %v2047
        %v2049 = vcombine.low %v2041, %v2048
        %2051 = vst [vmem:[%s320] sm:$0xff] %v2049
        %s2052 = scalar_lea.vmem %s279, 16 [#allocation4]
        %v2053 = vld [vmem:[%s2052] sm:$0xff]
        %v2054 = vld [vmem:[%s2052 + $0x8] sm:$0xff]
        %s2055 = scalar_lea.vmem [#allocation2], 128
        %v2056 = vld [vmem:[%s2055] sm:$0xff]
        %v2057 = vld [vmem:[%s2055 + $0x8] sm:$0xff]
        %v2058 = vld [vmem:[%s2055 + $0x10] sm:$0xff]
        %v2059 = vld [vmem:[%s2055 + $0x18] sm:$0xff]
        %v2060 = vld [vmem:[%s2055 + $0x20] sm:$0xff]
        %v2061 = vld [vmem:[%s2055 + $0x28] sm:$0xff]
        %v2062 = vld [vmem:[%s2055 + $0x30] sm:$0xff]
        %v2063 = vld [vmem:[%s2055 + $0x38] sm:$0xff]
        %v2064 = vld [vmem:[%s2055 + $0x40] sm:$0xff]
        %v2065 = vld [vmem:[%s2055 + $0x48] sm:$0xff]
        %v2066 = vld [vmem:[%s2055 + $0x50] sm:$0xff]
        %v2067 = vld [vmem:[%s2055 + $0x58] sm:$0xff]
        %v2068 = vld [vmem:[%s2055 + $0x60] sm:$0xff]
        %v2069 = vld [vmem:[%s2055 + $0x68] sm:$0xff]
        %v2070 = vld [vmem:[%s2055 + $0x70] sm:$0xff]
        %v2071 = vld [vmem:[%s2055 + $0x78] sm:$0xff]
        %v2073 = vsel %vm1590, %v2053, 0
        %v2076 = vsel %vm1590, %v2054, 0
        %2078 = vmatprep.subr.mxu0 %v2057
        %2079 = vmatpush1.msra.mxu0 %v2056
        %2080 = vmatprep.subr.mxu0 %v2065
        %2081 = vmatpush1.msra.mxu0 %v2064
        %2082 = vmatprep.subr.mxu0 0.0
        %2083 = vmatpush1.msra.mxu0 0.0
        %2084 = vmatprep.subr.mxu0 0.0
        %2085 = vmatpush1.msra.mxu0 0.0
        %2086 = vmatprep.subr.mxu0 0.0
        %2087 = vmatpush1.msra.mxu0 0.0
        %2088 = vmatprep.subr.mxu0 0.0
        %2089 = vmatpush1.msra.mxu0 0.0
        %2090 = vmatprep.subr.mxu0 0.0
        %2091 = vmatpush1.msra.mxu0 0.0
        %2092 = vmatprep.subr.mxu0 0.0
        %2093 = vmatpush1.msra.mxu0 0.0
        %2094 = vmatprep.subr.mxu0 0.0
        %2095 = vmatpush1.msra.mxu0 0.0
        %2096 = vmatprep.subr.mxu0 0.0
        %2097 = vmatpush1.msra.mxu0 0.0
        %2098 = vmatprep.subr.mxu0 0.0
        %2099 = vmatpush1.msra.mxu0 0.0
        %2100 = vmatprep.subr.mxu0 0.0
        %2101 = vmatpush1.msra.mxu0 0.0
        %2102 = vmatprep.subr.mxu0 0.0
        %2103 = vmatpush1.msra.mxu0 0.0
        %2104 = vmatprep.subr.mxu0 0.0
        %2105 = vmatpush1.msra.mxu0 0.0
        %2106 = vmatprep.subr.mxu0 0.0
        %2107 = vmatpush1.msra.mxu0 0.0
        %2108 = vmatprep.subr.mxu0 0.0
        %2109 = vmatpush1.msra.mxu0 0.0
        %2110 = vmatprep.subr.mxu0 0.0
        %2111 = vmatpush1.msra.mxu0 0.0
        %2112 = vmatprep.subr.mxu0 0.0
        %2113 = vmatpush1.msra.mxu0 0.0
        %2114 = vmatprep.subr.mxu0 0.0
        %2115 = vmatpush1.msra.mxu0 0.0
        %2116 = vmatprep.subr.mxu0 0.0
        %2117 = vmatpush1.msra.mxu0 0.0
        %2118 = vmatprep.subr.mxu0 0.0
        %2119 = vmatpush1.msra.mxu0 0.0
        %2120 = vmatprep.subr.mxu0 0.0
        %2121 = vmatpush1.msra.mxu0 0.0
        %2122 = vmatprep.subr.mxu0 0.0
        %2123 = vmatpush1.msra.mxu0 0.0
        %2124 = vmatprep.subr.mxu0 0.0
        %2125 = vmatpush1.msra.mxu0 0.0
        %2126 = vmatprep.subr.mxu0 0.0
        %2127 = vmatpush1.msra.mxu0 0.0
        %2128 = vmatprep.subr.mxu0 0.0
        %2129 = vmatpush1.msra.mxu0 0.0
        %2130 = vmatprep.subr.mxu0 0.0
        %2131 = vmatpush1.msra.mxu0 0.0
        %2132 = vmatprep.subr.mxu0 0.0
        %2133 = vmatpush1.msra.mxu0 0.0
        %2134 = vmatprep.subr.mxu0 0.0
        %2135 = vmatpush1.msra.mxu0 0.0
        %2136 = vmatprep.subr.mxu0 0.0
        %2137 = vmatpush1.msra.mxu0 0.0
        %2138 = vmatprep.subr.mxu0 0.0
        %2139 = vmatpush1.msra.mxu0 0.0
        %2140 = vmatprep.subr.mxu0 0.0
        %2141 = vmatpush1.msra.mxu0 0.0
        %2142 = vmatprep.mubr.f32.mxu0 0.0
        %2143 = vmatmul.mubr.f32.gmra.mrb[0].mxu0 %v2073
        %v2144 = vpop.f32.mrb[0].mxu0
        %v2145 = vadd.f32 0.0, %v2144
        %v2146 = vpop.f32.mrb[0].mxu0
        %v2147 = vadd.f32 0.0, %v2146
        %2148 = vmatprep.mubr.f32.mxu0 0.0
        %2149 = vmatmul.mubr.f32.gmra.mrb[0].mxu0 %v2076
        %v2150 = vpop.f32.mrb[0].mxu0
        %v2151 = vadd.f32 0.0, %v2150
        %v2152 = vpop.f32.mrb[0].mxu0
        %v2153 = vadd.f32 0.0, %v2152
        %2154 = vdwg.mxu0
        %2155 = vmatprep.subr.mxu0 %v2059
        %2156 = vmatpush1.msra.mxu0 %v2058
        %2157 = vmatprep.subr.mxu0 %v2067
        %2158 = vmatpush1.msra.mxu0 %v2066
        %2159 = vmatprep.subr.mxu0 0.0
        %2160 = vmatpush1.msra.mxu0 0.0
        %2161 = vmatprep.subr.mxu0 0.0
        %2162 = vmatpush1.msra.mxu0 0.0
        %2163 = vmatprep.subr.mxu0 0.0
        %2164 = vmatpush1.msra.mxu0 0.0
        %2165 = vmatprep.subr.mxu0 0.0
        %2166 = vmatpush1.msra.mxu0 0.0
        %2167 = vmatprep.subr.mxu0 0.0
        %2168 = vmatpush1.msra.mxu0 0.0
        %2169 = vmatprep.subr.mxu0 0.0
        %2170 = vmatpush1.msra.mxu0 0.0
        %2171 = vmatprep.subr.mxu0 0.0
        %2172 = vmatpush1.msra.mxu0 0.0
        %2173 = vmatprep.subr.mxu0 0.0
        %2174 = vmatpush1.msra.mxu0 0.0
        %2175 = vmatprep.subr.mxu0 0.0
        %2176 = vmatpush1.msra.mxu0 0.0
        %2177 = vmatprep.subr.mxu0 0.0
        %2178 = vmatpush1.msra.mxu0 0.0
        %2179 = vmatprep.subr.mxu0 0.0
        %2180 = vmatpush1.msra.mxu0 0.0
        %2181 = vmatprep.subr.mxu0 0.0
        %2182 = vmatpush1.msra.mxu0 0.0
        %2183 = vmatprep.subr.mxu0 0.0
        %2184 = vmatpush1.msra.mxu0 0.0
        %2185 = vmatprep.subr.mxu0 0.0
        %2186 = vmatpush1.msra.mxu0 0.0
        %2187 = vmatprep.subr.mxu0 0.0
        %2188 = vmatpush1.msra.mxu0 0.0
        %2189 = vmatprep.subr.mxu0 0.0
        %2190 = vmatpush1.msra.mxu0 0.0
        %2191 = vmatprep.subr.mxu0 0.0
        %2192 = vmatpush1.msra.mxu0 0.0
        %2193 = vmatprep.subr.mxu0 0.0
        %2194 = vmatpush1.msra.mxu0 0.0
        %2195 = vmatprep.subr.mxu0 0.0
        %2196 = vmatpush1.msra.mxu0 0.0
        %2197 = vmatprep.subr.mxu0 0.0
        %2198 = vmatpush1.msra.mxu0 0.0
        %2199 = vmatprep.subr.mxu0 0.0
        %2200 = vmatpush1.msra.mxu0 0.0
        %2201 = vmatprep.subr.mxu0 0.0
        %2202 = vmatpush1.msra.mxu0 0.0
        %2203 = vmatprep.subr.mxu0 0.0
        %2204 = vmatpush1.msra.mxu0 0.0
        %2205 = vmatprep.subr.mxu0 0.0
        %2206 = vmatpush1.msra.mxu0 0.0
        %2207 = vmatprep.subr.mxu0 0.0
        %2208 = vmatpush1.msra.mxu0 0.0
        %2209 = vmatprep.subr.mxu0 0.0
        %2210 = vmatpush1.msra.mxu0 0.0
        %2211 = vmatprep.subr.mxu0 0.0
        %2212 = vmatpush1.msra.mxu0 0.0
        %2213 = vmatprep.subr.mxu0 0.0
        %2214 = vmatpush1.msra.mxu0 0.0
        %2215 = vmatprep.subr.mxu0 0.0
        %2216 = vmatpush1.msra.mxu0 0.0
        %2217 = vmatprep.subr.mxu0 0.0
        %2218 = vmatpush1.msra.mxu0 0.0
        %2219 = vmatprep.mubr.f32.mxu0 0.0
        %2220 = vmatmul.mubr.f32.gmra.mrb[0].mxu0 %v2073
        %v2221 = vpop.f32.mrb[0].mxu0
        %v2222 = vadd.f32 0.0, %v2221
        %v2223 = vpop.f32.mrb[0].mxu0
        %v2224 = vadd.f32 0.0, %v2223
        %2225 = vmatprep.mubr.f32.mxu0 0.0
        %2226 = vmatmul.mubr.f32.gmra.mrb[0].mxu0 %v2076
        %v2227 = vpop.f32.mrb[0].mxu0
        %v2228 = vadd.f32 0.0, %v2227
        %v2229 = vpop.f32.mrb[0].mxu0
        %v2230 = vadd.f32 0.0, %v2229
        %2231 = vdwg.mxu0
        %2232 = vmatprep.subr.mxu0 %v2061
        %2233 = vmatpush1.msra.mxu0 %v2060
        %2234 = vmatprep.subr.mxu0 %v2069
        %2235 = vmatpush1.msra.mxu0 %v2068
        %2236 = vmatprep.subr.mxu0 0.0
        %2237 = vmatpush1.msra.mxu0 0.0
        %2238 = vmatprep.subr.mxu0 0.0
        %2239 = vmatpush1.msra.mxu0 0.0
        %2240 = vmatprep.subr.mxu0 0.0
        %2241 = vmatpush1.msra.mxu0 0.0
        %2242 = vmatprep.subr.mxu0 0.0
        %2243 = vmatpush1.msra.mxu0 0.0
        %2244 = vmatprep.subr.mxu0 0.0
        %2245 = vmatpush1.msra.mxu0 0.0
        %2246 = vmatprep.subr.mxu0 0.0
        %2247 = vmatpush1.msra.mxu0 0.0
        %2248 = vmatprep.subr.mxu0 0.0
        %2249 = vmatpush1.msra.mxu0 0.0
        %2250 = vmatprep.subr.mxu0 0.0
        %2251 = vmatpush1.msra.mxu0 0.0
        %2252 = vmatprep.subr.mxu0 0.0
        %2253 = vmatpush1.msra.mxu0 0.0
        %2254 = vmatprep.subr.mxu0 0.0
        %2255 = vmatpush1.msra.mxu0 0.0
        %2256 = vmatprep.subr.mxu0 0.0
        %2257 = vmatpush1.msra.mxu0 0.0
        %2258 = vmatprep.subr.mxu0 0.0
        %2259 = vmatpush1.msra.mxu0 0.0
        %2260 = vmatprep.subr.mxu0 0.0
        %2261 = vmatpush1.msra.mxu0 0.0
        %2262 = vmatprep.subr.mxu0 0.0
        %2263 = vmatpush1.msra.mxu0 0.0
        %2264 = vmatprep.subr.mxu0 0.0
        %2265 = vmatpush1.msra.mxu0 0.0
        %2266 = vmatprep.subr.mxu0 0.0
        %2267 = vmatpush1.msra.mxu0 0.0
        %2268 = vmatprep.subr.mxu0 0.0
        %2269 = vmatpush1.msra.mxu0 0.0
        %2270 = vmatprep.subr.mxu0 0.0
        %2271 = vmatpush1.msra.mxu0 0.0
        %2272 = vmatprep.subr.mxu0 0.0
        %2273 = vmatpush1.msra.mxu0 0.0
        %2274 = vmatprep.subr.mxu0 0.0
        %2275 = vmatpush1.msra.mxu0 0.0
        %2276 = vmatprep.subr.mxu0 0.0
        %2277 = vmatpush1.msra.mxu0 0.0
        %2278 = vmatprep.subr.mxu0 0.0
        %2279 = vmatpush1.msra.mxu0 0.0
        %2280 = vmatprep.subr.mxu0 0.0
        %2281 = vmatpush1.msra.mxu0 0.0
        %2282 = vmatprep.subr.mxu0 0.0
        %2283 = vmatpush1.msra.mxu0 0.0
        %2284 = vmatprep.subr.mxu0 0.0
        %2285 = vmatpush1.msra.mxu0 0.0
        %2286 = vmatprep.subr.mxu0 0.0
        %2287 = vmatpush1.msra.mxu0 0.0
        %2288 = vmatprep.subr.mxu0 0.0
        %2289 = vmatpush1.msra.mxu0 0.0
        %2290 = vmatprep.subr.mxu0 0.0
        %2291 = vmatpush1.msra.mxu0 0.0
        %2292 = vmatprep.subr.mxu0 0.0
        %2293 = vmatpush1.msra.mxu0 0.0
        %2294 = vmatprep.subr.mxu0 0.0
        %2295 = vmatpush1.msra.mxu0 0.0
        %2296 = vmatprep.mubr.f32.mxu0 0.0
        %2297 = vmatmul.mubr.f32.gmra.mrb[0].mxu0 %v2073
        %v2298 = vpop.f32.mrb[0].mxu0
        %v2299 = vadd.f32 0.0, %v2298
        %v2300 = vpop.f32.mrb[0].mxu0
        %v2301 = vadd.f32 0.0, %v2300
        %2302 = vmatprep.mubr.f32.mxu0 0.0
        %2303 = vmatmul.mubr.f32.gmra.mrb[0].mxu0 %v2076
        %v2304 = vpop.f32.mrb[0].mxu0
        %v2305 = vadd.f32 0.0, %v2304
        %v2306 = vpop.f32.mrb[0].mxu0
        %v2307 = vadd.f32 0.0, %v2306
        %2308 = vdwg.mxu0
        %2309 = vmatprep.subr.mxu0 %v2063
        %2310 = vmatpush1.msra.mxu0 %v2062
        %2311 = vmatprep.subr.mxu0 %v2071
        %2312 = vmatpush1.msra.mxu0 %v2070
        %2313 = vmatprep.subr.mxu0 0.0
        %2314 = vmatpush1.msra.mxu0 0.0
        %2315 = vmatprep.subr.mxu0 0.0
        %2316 = vmatpush1.msra.mxu0 0.0
        %2317 = vmatprep.subr.mxu0 0.0
        %2318 = vmatpush1.msra.mxu0 0.0
        %2319 = vmatprep.subr.mxu0 0.0
        %2320 = vmatpush1.msra.mxu0 0.0
        %2321 = vmatprep.subr.mxu0 0.0
        %2322 = vmatpush1.msra.mxu0 0.0
        %2323 = vmatprep.subr.mxu0 0.0
        %2324 = vmatpush1.msra.mxu0 0.0
        %2325 = vmatprep.subr.mxu0 0.0
        %2326 = vmatpush1.msra.mxu0 0.0
        %2327 = vmatprep.subr.mxu0 0.0
        %2328 = vmatpush1.msra.mxu0 0.0
        %2329 = vmatprep.subr.mxu0 0.0
        %2330 = vmatpush1.msra.mxu0 0.0
        %2331 = vmatprep.subr.mxu0 0.0
        %2332 = vmatpush1.msra.mxu0 0.0
        %2333 = vmatprep.subr.mxu0 0.0
        %2334 = vmatpush1.msra.mxu0 0.0
        %2335 = vmatprep.subr.mxu0 0.0
        %2336 = vmatpush1.msra.mxu0 0.0
        %2337 = vmatprep.subr.mxu0 0.0
        %2338 = vmatpush1.msra.mxu0 0.0
        %2339 = vmatprep.subr.mxu0 0.0
        %2340 = vmatpush1.msra.mxu0 0.0
        %2341 = vmatprep.subr.mxu0 0.0
        %2342 = vmatpush1.msra.mxu0 0.0
        %2343 = vmatprep.subr.mxu0 0.0
        %2344 = vmatpush1.msra.mxu0 0.0
        %2345 = vmatprep.subr.mxu0 0.0
        %2346 = vmatpush1.msra.mxu0 0.0
        %2347 = vmatprep.subr.mxu0 0.0
        %2348 = vmatpush1.msra.mxu0 0.0
        %2349 = vmatprep.subr.mxu0 0.0
        %2350 = vmatpush1.msra.mxu0 0.0
        %2351 = vmatprep.subr.mxu0 0.0
        %2352 = vmatpush1.msra.mxu0 0.0
        %2353 = vmatprep.subr.mxu0 0.0
        %2354 = vmatpush1.msra.mxu0 0.0
        %2355 = vmatprep.subr.mxu0 0.0
        %2356 = vmatpush1.msra.mxu0 0.0
        %2357 = vmatprep.subr.mxu0 0.0
        %2358 = vmatpush1.msra.mxu0 0.0
        %2359 = vmatprep.subr.mxu0 0.0
        %2360 = vmatpush1.msra.mxu0 0.0
        %2361 = vmatprep.subr.mxu0 0.0
        %2362 = vmatpush1.msra.mxu0 0.0
        %2363 = vmatprep.subr.mxu0 0.0
        %2364 = vmatpush1.msra.mxu0 0.0
        %2365 = vmatprep.subr.mxu0 0.0
        %2366 = vmatpush1.msra.mxu0 0.0
        %2367 = vmatprep.subr.mxu0 0.0
        %2368 = vmatpush1.msra.mxu0 0.0
        %2369 = vmatprep.subr.mxu0 0.0
        %2370 = vmatpush1.msra.mxu0 0.0
        %2371 = vmatprep.subr.mxu0 0.0
        %2372 = vmatpush1.msra.mxu0 0.0
        %2373 = vmatprep.mubr.f32.mxu0 0.0
        %2374 = vmatmul.mubr.f32.gmra.mrb[0].mxu0 %v2073
        %v2375 = vpop.f32.mrb[0].mxu0
        %v2376 = vadd.f32 0.0, %v2375
        %v2377 = vpop.f32.mrb[0].mxu0
        %v2378 = vadd.f32 0.0, %v2377
        %2379 = vmatprep.mubr.f32.mxu0 0.0
        %2380 = vmatmul.mubr.f32.gmra.mrb[0].mxu0 %v2076
        %v2381 = vpop.f32.mrb[0].mxu0
        %v2382 = vadd.f32 0.0, %v2381
        %v2383 = vpop.f32.mrb[0].mxu0
        %v2384 = vadd.f32 0.0, %v2383
        %2385 = vdwg.mxu0
        %s2386 = scalar_lea.vmem [#allocation3], 128
        %v2387 = vld [vmem:[%s2386] sm:$0xff]
        %v2388 = vld [vmem:[%s2386 + $0x8] sm:$0xff]
        %v2389 = vld [vmem:[%s2386 + $0x10] sm:$0xff]
        %v2390 = vld [vmem:[%s2386 + $0x18] sm:$0xff]
        %v2391 = vld [vmem:[%s2386 + $0x20] sm:$0xff]
        %v2392 = vld [vmem:[%s2386 + $0x28] sm:$0xff]
        %v2393 = vld [vmem:[%s2386 + $0x30] sm:$0xff]
        %v2394 = vld [vmem:[%s2386 + $0x38] sm:$0xff]
        %v2395 = vld [vmem:[%s2386 + $0x40] sm:$0xff]
        %v2396 = vld [vmem:[%s2386 + $0x48] sm:$0xff]
        %v2397 = vld [vmem:[%s2386 + $0x50] sm:$0xff]
        %v2398 = vld [vmem:[%s2386 + $0x58] sm:$0xff]
        %v2399 = vld [vmem:[%s2386 + $0x60] sm:$0xff]
        %v2400 = vld [vmem:[%s2386 + $0x68] sm:$0xff]
        %v2401 = vld [vmem:[%s2386 + $0x70] sm:$0xff]
        %v2402 = vld [vmem:[%s2386 + $0x78] sm:$0xff]
        %v2403 = vmul.f32 %v2145, %v2387
        %v2404 = vmul.f32 %v2147, %v2388
        %v2405 = vmul.f32 %v2222, %v2389
        %v2406 = vmul.f32 %v2224, %v2390
        %v2407 = vmul.f32 %v2299, %v2391
        %v2408 = vmul.f32 %v2301, %v2392
        %v2409 = vmul.f32 %v2376, %v2393
        %v2410 = vmul.f32 %v2378, %v2394
        %v2411 = vmul.f32 %v2151, %v2395
        %v2412 = vmul.f32 %v2153, %v2396
        %v2413 = vmul.f32 %v2228, %v2397
        %v2414 = vmul.f32 %v2230, %v2398
        %v2415 = vmul.f32 %v2305, %v2399
        %v2416 = vmul.f32 %v2307, %v2400
        %v2417 = vmul.f32 %v2382, %v2401
        %v2418 = vmul.f32 %v2384, %v2402
        %v2419 = vadd.f32 %v2403, %v2411
        %v2420 = vrot.slane %v2419, 4
        %v2421 = vadd.f32 %v2419, %v2420
        %v2422 = vrot.slane %v2421, 2
        %v2423 = vadd.f32 %v2421, %v2422
        %v2424 = vrot.slane %v2423, 1
        %v2425 = vadd.f32 %v2423, %v2424
        %v2426 = vadd.f32 %v2404, %v2412
        %v2427 = vrot.slane %v2426, 4
        %v2428 = vadd.f32 %v2426, %v2427
        %v2429 = vrot.slane %v2428, 2
        %v2430 = vadd.f32 %v2428, %v2429
        %v2431 = vrot.slane %v2430, 1
        %v2432 = vadd.f32 %v2430, %v2431
        %v2433 = vadd.f32 %v2405, %v2413
        %v2434 = vrot.slane %v2433, 4
        %v2435 = vadd.f32 %v2433, %v2434
        %v2436 = vrot.slane %v2435, 2
        %v2437 = vadd.f32 %v2435, %v2436
        %v2438 = vrot.slane %v2437, 1
        %v2439 = vadd.f32 %v2437, %v2438
        %v2440 = vadd.f32 %v2406, %v2414
        %v2441 = vrot.slane %v2440, 4
        %v2442 = vadd.f32 %v2440, %v2441
        %v2443 = vrot.slane %v2442, 2
        %v2444 = vadd.f32 %v2442, %v2443
        %v2445 = vrot.slane %v2444, 1
        %v2446 = vadd.f32 %v2444, %v2445
        %v2447 = vadd.f32 %v2407, %v2415
        %v2448 = vrot.slane %v2447, 4
        %v2449 = vadd.f32 %v2447, %v2448
        %v2450 = vrot.slane %v2449, 2
        %v2451 = vadd.f32 %v2449, %v2450
        %v2452 = vrot.slane %v2451, 1
        %v2453 = vadd.f32 %v2451, %v2452
        %v2454 = vadd.f32 %v2408, %v2416
        %v2455 = vrot.slane %v2454, 4
        %v2456 = vadd.f32 %v2454, %v2455
        %v2457 = vrot.slane %v2456, 2
        %v2458 = vadd.f32 %v2456, %v2457
        %v2459 = vrot.slane %v2458, 1
        %v2460 = vadd.f32 %v2458, %v2459
        %v2461 = vadd.f32 %v2409, %v2417
        %v2462 = vrot.slane %v2461, 4
        %v2463 = vadd.f32 %v2461, %v2462
        %v2464 = vrot.slane %v2463, 2
        %v2465 = vadd.f32 %v2463, %v2464
        %v2466 = vrot.slane %v2465, 1
        %v2467 = vadd.f32 %v2465, %v2466
        %v2468 = vadd.f32 %v2410, %v2418
        %v2469 = vrot.slane %v2468, 4
        %v2470 = vadd.f32 %v2468, %v2469
        %v2471 = vrot.slane %v2470, 2
        %v2472 = vadd.f32 %v2470, %v2471
        %v2473 = vrot.slane %v2472, 1
        %v2474 = vadd.f32 %v2472, %v2473
        %v2483 = vcombine.low %v2425, %v2432
        %v2484 = vcombine.low %v2439, %v2446
        %v2485 = vcombine.low %v2453, %v2460
        %v2486 = vcombine.low %v2467, %v2474
        %v2488 = vunpack.c.l.s4 1966171168
        %v2489 = vunpack.c.0.s8 %v2488
        %v2490 = vlaneseq
        %v2491 = vshrl.u32 %v2490, 7
        %v2492 = vsub.s32 %v2489, %v2491
        %v2493 = vrot.slane %v2483, %v2492
        %v2495 = vunpack.c.l.s4 1966171168
        %v2496 = vunpack.c.0.s8 %v2495
        %v2497 = vlaneseq
        %v2498 = vshrl.u32 %v2497, 7
        %v2499 = vsub.s32 %v2496, %v2498
        %v2500 = vrot.slane %v2484, %v2499
        %v2502 = vunpack.c.l.s4 1966171168
        %v2503 = vunpack.c.0.s8 %v2502
        %v2504 = vlaneseq
        %v2505 = vshrl.u32 %v2504, 7
        %v2506 = vsub.s32 %v2503, %v2505
        %v2507 = vrot.slane %v2485, %v2506
        %v2509 = vunpack.c.l.s4 1966171168
        %v2510 = vunpack.c.0.s8 %v2509
        %v2511 = vlaneseq
        %v2512 = vshrl.u32 %v2511, 7
        %v2513 = vsub.s32 %v2510, %v2512
        %v2514 = vrot.slane %v2486, %v2513
        %v2515 = vcombine.low %v2493, %v2500
        %v2516 = vcombine.low %v2507, %v2514
        %v2518 = vunpack.c.l.s4 1966171168
        %v2519 = vunpack.c.0.s8 %v2518
        %v2520 = vlaneseq
        %v2521 = vshrl.u32 %v2520, 7
        %v2522 = vsub.s32 %v2519, %v2521
        %v2523 = vrot.slane %v2515, %v2522
        %v2525 = vunpack.c.l.s4 1966171168
        %v2526 = vunpack.c.0.s8 %v2525
        %v2527 = vlaneseq
        %v2528 = vshrl.u32 %v2527, 7
        %v2529 = vsub.s32 %v2526, %v2528
        %v2530 = vrot.slane %v2516, %v2529
        %v2531 = vcombine.low %v2523, %v2530
        %s2533 = scalar_lea.vmem %s320, 8 [#allocation7]
        %2534 = vst [vmem:[%s2533] sm:$0xff] %v2531
        %s2535 = scalar_lea.vmem %s279, 32 [#allocation4]
        %v2536 = vld [vmem:[%s2535] sm:$0xff]
        %v2537 = vld [vmem:[%s2535 + $0x8] sm:$0xff]
        %s2538 = scalar_lea.vmem [#allocation2], 256
        %v2539 = vld [vmem:[%s2538] sm:$0xff]
        %v2540 = vld [vmem:[%s2538 + $0x8] sm:$0xff]
        %v2541 = vld [vmem:[%s2538 + $0x10] sm:$0xff]
        %v2542 = vld [vmem:[%s2538 + $0x18] sm:$0xff]
        %v2543 = vld [vmem:[%s2538 + $0x20] sm:$0xff]
        %v2544 = vld [vmem:[%s2538 + $0x28] sm:$0xff]
        %v2545 = vld [vmem:[%s2538 + $0x30] sm:$0xff]
        %v2546 = vld [vmem:[%s2538 + $0x38] sm:$0xff]
        %v2547 = vld [vmem:[%s2538 + $0x40] sm:$0xff]
        %v2548 = vld [vmem:[%s2538 + $0x48] sm:$0xff]
        %v2549 = vld [vmem:[%s2538 + $0x50] sm:$0xff]
        %v2550 = vld [vmem:[%s2538 + $0x58] sm:$0xff]
        %v2551 = vld [vmem:[%s2538 + $0x60] sm:$0xff]
        %v2552 = vld [vmem:[%s2538 + $0x68] sm:$0xff]
        %v2553 = vld [vmem:[%s2538 + $0x70] sm:$0xff]
        %v2554 = vld [vmem:[%s2538 + $0x78] sm:$0xff]
        %v2556 = vsel %vm1590, %v2536, 0
        %v2559 = vsel %vm1590, %v2537, 0
        %2561 = vmatprep.subr.mxu0 %v2540
        %2562 = vmatpush1.msra.mxu0 %v2539
        %2563 = vmatprep.subr.mxu0 %v2548
        %2564 = vmatpush1.msra.mxu0 %v2547
        %2565 = vmatprep.subr.mxu0 0.0
        %2566 = vmatpush1.msra.mxu0 0.0
        %2567 = vmatprep.subr.mxu0 0.0
        %2568 = vmatpush1.msra.mxu0 0.0
        %2569 = vmatprep.subr.mxu0 0.0
        %2570 = vmatpush1.msra.mxu0 0.0
        %2571 = vmatprep.subr.mxu0 0.0
        %2572 = vmatpush1.msra.mxu0 0.0
        %2573 = vmatprep.subr.mxu0 0.0
        %2574 = vmatpush1.msra.mxu0 0.0
        %2575 = vmatprep.subr.mxu0 0.0
        %2576 = vmatpush1.msra.mxu0 0.0
        %2577 = vmatprep.subr.mxu0 0.0
        %2578 = vmatpush1.msra.mxu0 0.0
        %2579 = vmatprep.subr.mxu0 0.0
        %2580 = vmatpush1.msra.mxu0 0.0
        %2581 = vmatprep.subr.mxu0 0.0
        %2582 = vmatpush1.msra.mxu0 0.0
        %2583 = vmatprep.subr.mxu0 0.0
        %2584 = vmatpush1.msra.mxu0 0.0
        %2585 = vmatprep.subr.mxu0 0.0
        %2586 = vmatpush1.msra.mxu0 0.0
        %2587 = vmatprep.subr.mxu0 0.0
        %2588 = vmatpush1.msra.mxu0 0.0
        %2589 = vmatprep.subr.mxu0 0.0
        %2590 = vmatpush1.msra.mxu0 0.0
        %2591 = vmatprep.subr.mxu0 0.0
        %2592 = vmatpush1.msra.mxu0 0.0
        %2593 = vmatprep.subr.mxu0 0.0
        %2594 = vmatpush1.msra.mxu0 0.0
        %2595 = vmatprep.subr.mxu0 0.0
        %2596 = vmatpush1.msra.mxu0 0.0
        %2597 = vmatprep.subr.mxu0 0.0
        %2598 = vmatpush1.msra.mxu0 0.0
        %2599 = vmatprep.subr.mxu0 0.0
        %2600 = vmatpush1.msra.mxu0 0.0
        %2601 = vmatprep.subr.mxu0 0.0
        %2602 = vmatpush1.msra.mxu0 0.0
        %2603 = vmatprep.subr.mxu0 0.0
        %2604 = vmatpush1.msra.mxu0 0.0
        %2605 = vmatprep.subr.mxu0 0.0
        %2606 = vmatpush1.msra.mxu0 0.0
        %2607 = vmatprep.subr.mxu0 0.0
        %2608 = vmatpush1.msra.mxu0 0.0
        %2609 = vmatprep.subr.mxu0 0.0
        %2610 = vmatpush1.msra.mxu0 0.0
        %2611 = vmatprep.subr.mxu0 0.0
        %2612 = vmatpush1.msra.mxu0 0.0
        %2613 = vmatprep.subr.mxu0 0.0
        %2614 = vmatpush1.msra.mxu0 0.0
        %2615 = vmatprep.subr.mxu0 0.0
        %2616 = vmatpush1.msra.mxu0 0.0
        %2617 = vmatprep.subr.mxu0 0.0
        %2618 = vmatpush1.msra.mxu0 0.0
        %2619 = vmatprep.subr.mxu0 0.0
        %2620 = vmatpush1.msra.mxu0 0.0
        %2621 = vmatprep.subr.mxu0 0.0
        %2622 = vmatpush1.msra.mxu0 0.0
        %2623 = vmatprep.subr.mxu0 0.0
        %2624 = vmatpush1.msra.mxu0 0.0
        %2625 = vmatprep.mubr.f32.mxu0 0.0
        %2626 = vmatmul.mubr.f32.gmra.mrb[0].mxu0 %v2556
        %v2627 = vpop.f32.mrb[0].mxu0
        %v2628 = vadd.f32 0.0, %v2627
        %v2629 = vpop.f32.mrb[0].mxu0
        %v2630 = vadd.f32 0.0, %v2629
        %2631 = vmatprep.mubr.f32.mxu0 0.0
        %2632 = vmatmul.mubr.f32.gmra.mrb[0].mxu0 %v2559
        %v2633 = vpop.f32.mrb[0].mxu0
        %v2634 = vadd.f32 0.0, %v2633
        %v2635 = vpop.f32.mrb[0].mxu0
        %v2636 = vadd.f32 0.0, %v2635
        %2637 = vdwg.mxu0
        %2638 = vmatprep.subr.mxu0 %v2542
        %2639 = vmatpush1.msra.mxu0 %v2541
        %2640 = vmatprep.subr.mxu0 %v2550
        %2641 = vmatpush1.msra.mxu0 %v2549
        %2642 = vmatprep.subr.mxu0 0.0
        %2643 = vmatpush1.msra.mxu0 0.0
        %2644 = vmatprep.subr.mxu0 0.0
        %2645 = vmatpush1.msra.mxu0 0.0
        %2646 = vmatprep.subr.mxu0 0.0
        %2647 = vmatpush1.msra.mxu0 0.0
        %2648 = vmatprep.subr.mxu0 0.0
        %2649 = vmatpush1.msra.mxu0 0.0
        %2650 = vmatprep.subr.mxu0 0.0
        %2651 = vmatpush1.msra.mxu0 0.0
        %2652 = vmatprep.subr.mxu0 0.0
        %2653 = vmatpush1.msra.mxu0 0.0
        %2654 = vmatprep.subr.mxu0 0.0
        %2655 = vmatpush1.msra.mxu0 0.0
        %2656 = vmatprep.subr.mxu0 0.0
        %2657 = vmatpush1.msra.mxu0 0.0
        %2658 = vmatprep.subr.mxu0 0.0
        %2659 = vmatpush1.msra.mxu0 0.0
        %2660 = vmatprep.subr.mxu0 0.0
        %2661 = vmatpush1.msra.mxu0 0.0
        %2662 = vmatprep.subr.mxu0 0.0
        %2663 = vmatpush1.msra.mxu0 0.0
        %2664 = vmatprep.subr.mxu0 0.0
        %2665 = vmatpush1.msra.mxu0 0.0
        %2666 = vmatprep.subr.mxu0 0.0
        %2667 = vmatpush1.msra.mxu0 0.0
        %2668 = vmatprep.subr.mxu0 0.0
        %2669 = vmatpush1.msra.mxu0 0.0
        %2670 = vmatprep.subr.mxu0 0.0
        %2671 = vmatpush1.msra.mxu0 0.0
        %2672 = vmatprep.subr.mxu0 0.0
        %2673 = vmatpush1.msra.mxu0 0.0
        %2674 = vmatprep.subr.mxu0 0.0
        %2675 = vmatpush1.msra.mxu0 0.0
        %2676 = vmatprep.subr.mxu0 0.0
        %2677 = vmatpush1.msra.mxu0 0.0
        %2678 = vmatprep.subr.mxu0 0.0
        %2679 = vmatpush1.msra.mxu0 0.0
        %2680 = vmatprep.subr.mxu0 0.0
        %2681 = vmatpush1.msra.mxu0 0.0
        %2682 = vmatprep.subr.mxu0 0.0
        %2683 = vmatpush1.msra.mxu0 0.0
        %2684 = vmatprep.subr.mxu0 0.0
        %2685 = vmatpush1.msra.mxu0 0.0
        %2686 = vmatprep.subr.mxu0 0.0
        %2687 = vmatpush1.msra.mxu0 0.0
        %2688 = vmatprep.subr.mxu0 0.0
        %2689 = vmatpush1.msra.mxu0 0.0
        %2690 = vmatprep.subr.mxu0 0.0
        %2691 = vmatpush1.msra.mxu0 0.0
        %2692 = vmatprep.subr.mxu0 0.0
        %2693 = vmatpush1.msra.mxu0 0.0
        %2694 = vmatprep.subr.mxu0 0.0
        %2695 = vmatpush1.msra.mxu0 0.0
        %2696 = vmatprep.subr.mxu0 0.0
        %2697 = vmatpush1.msra.mxu0 0.0
        %2698 = vmatprep.subr.mxu0 0.0
        %2699 = vmatpush1.msra.mxu0 0.0
        %2700 = vmatprep.subr.mxu0 0.0
        %2701 = vmatpush1.msra.mxu0 0.0
        %2702 = vmatprep.mubr.f32.mxu0 0.0
        %2703 = vmatmul.mubr.f32.gmra.mrb[0].mxu0 %v2556
        %v2704 = vpop.f32.mrb[0].mxu0
        %v2705 = vadd.f32 0.0, %v2704
        %v2706 = vpop.f32.mrb[0].mxu0
        %v2707 = vadd.f32 0.0, %v2706
        %2708 = vmatprep.mubr.f32.mxu0 0.0
        %2709 = vmatmul.mubr.f32.gmra.mrb[0].mxu0 %v2559
        %v2710 = vpop.f32.mrb[0].mxu0
        %v2711 = vadd.f32 0.0, %v2710
        %v2712 = vpop.f32.mrb[0].mxu0
        %v2713 = vadd.f32 0.0, %v2712
        %2714 = vdwg.mxu0
        %2715 = vmatprep.subr.mxu0 %v2544
        %2716 = vmatpush1.msra.mxu0 %v2543
        %2717 = vmatprep.subr.mxu0 %v2552
        %2718 = vmatpush1.msra.mxu0 %v2551
        %2719 = vmatprep.subr.mxu0 0.0
        %2720 = vmatpush1.msra.mxu0 0.0
        %2721 = vmatprep.subr.mxu0 0.0
        %2722 = vmatpush1.msra.mxu0 0.0
        %2723 = vmatprep.subr.mxu0 0.0
        %2724 = vmatpush1.msra.mxu0 0.0
        %2725 = vmatprep.subr.mxu0 0.0
        %2726 = vmatpush1.msra.mxu0 0.0
        %2727 = vmatprep.subr.mxu0 0.0
        %2728 = vmatpush1.msra.mxu0 0.0
        %2729 = vmatprep.subr.mxu0 0.0
        %2730 = vmatpush1.msra.mxu0 0.0
        %2731 = vmatprep.subr.mxu0 0.0
        %2732 = vmatpush1.msra.mxu0 0.0
        %2733 = vmatprep.subr.mxu0 0.0
        %2734 = vmatpush1.msra.mxu0 0.0
        %2735 = vmatprep.subr.mxu0 0.0
        %2736 = vmatpush1.msra.mxu0 0.0
        %2737 = vmatprep.subr.mxu0 0.0
        %2738 = vmatpush1.msra.mxu0 0.0
        %2739 = vmatprep.subr.mxu0 0.0
        %2740 = vmatpush1.msra.mxu0 0.0
        %2741 = vmatprep.subr.mxu0 0.0
        %2742 = vmatpush1.msra.mxu0 0.0
        %2743 = vmatprep.subr.mxu0 0.0
        %2744 = vmatpush1.msra.mxu0 0.0
        %2745 = vmatprep.subr.mxu0 0.0
        %2746 = vmatpush1.msra.mxu0 0.0
        %2747 = vmatprep.subr.mxu0 0.0
        %2748 = vmatpush1.msra.mxu0 0.0
        %2749 = vmatprep.subr.mxu0 0.0
        %2750 = vmatpush1.msra.mxu0 0.0
        %2751 = vmatprep.subr.mxu0 0.0
        %2752 = vmatpush1.msra.mxu0 0.0
        %2753 = vmatprep.subr.mxu0 0.0
        %2754 = vmatpush1.msra.mxu0 0.0
        %2755 = vmatprep.subr.mxu0 0.0
        %2756 = vmatpush1.msra.mxu0 0.0
        %2757 = vmatprep.subr.mxu0 0.0
        %2758 = vmatpush1.msra.mxu0 0.0
        %2759 = vmatprep.subr.mxu0 0.0
        %2760 = vmatpush1.msra.mxu0 0.0
        %2761 = vmatprep.subr.mxu0 0.0
        %2762 = vmatpush1.msra.mxu0 0.0
        %2763 = vmatprep.subr.mxu0 0.0
        %2764 = vmatpush1.msra.mxu0 0.0
        %2765 = vmatprep.subr.mxu0 0.0
        %2766 = vmatpush1.msra.mxu0 0.0
        %2767 = vmatprep.subr.mxu0 0.0
        %2768 = vmatpush1.msra.mxu0 0.0
        %2769 = vmatprep.subr.mxu0 0.0
        %2770 = vmatpush1.msra.mxu0 0.0
        %2771 = vmatprep.subr.mxu0 0.0
        %2772 = vmatpush1.msra.mxu0 0.0
        %2773 = vmatprep.subr.mxu0 0.0
        %2774 = vmatpush1.msra.mxu0 0.0
        %2775 = vmatprep.subr.mxu0 0.0
        %2776 = vmatpush1.msra.mxu0 0.0
        %2777 = vmatprep.subr.mxu0 0.0
        %2778 = vmatpush1.msra.mxu0 0.0
        %2779 = vmatprep.mubr.f32.mxu0 0.0
        %2780 = vmatmul.mubr.f32.gmra.mrb[0].mxu0 %v2556
        %v2781 = vpop.f32.mrb[0].mxu0
        %v2782 = vadd.f32 0.0, %v2781
        %v2783 = vpop.f32.mrb[0].mxu0
        %v2784 = vadd.f32 0.0, %v2783
        %2785 = vmatprep.mubr.f32.mxu0 0.0
        %2786 = vmatmul.mubr.f32.gmra.mrb[0].mxu0 %v2559
        %v2787 = vpop.f32.mrb[0].mxu0
        %v2788 = vadd.f32 0.0, %v2787
        %v2789 = vpop.f32.mrb[0].mxu0
        %v2790 = vadd.f32 0.0, %v2789
        %2791 = vdwg.mxu0
        %2792 = vmatprep.subr.mxu0 %v2546
        %2793 = vmatpush1.msra.mxu0 %v2545
        %2794 = vmatprep.subr.mxu0 %v2554
        %2795 = vmatpush1.msra.mxu0 %v2553
        %2796 = vmatprep.subr.mxu0 0.0
        %2797 = vmatpush1.msra.mxu0 0.0
        %2798 = vmatprep.subr.mxu0 0.0
        %2799 = vmatpush1.msra.mxu0 0.0
        %2800 = vmatprep.subr.mxu0 0.0
        %2801 = vmatpush1.msra.mxu0 0.0
        %2802 = vmatprep.subr.mxu0 0.0
        %2803 = vmatpush1.msra.mxu0 0.0
        %2804 = vmatprep.subr.mxu0 0.0
        %2805 = vmatpush1.msra.mxu0 0.0
        %2806 = vmatprep.subr.mxu0 0.0
        %2807 = vmatpush1.msra.mxu0 0.0
        %2808 = vmatprep.subr.mxu0 0.0
        %2809 = vmatpush1.msra.mxu0 0.0
        %2810 = vmatprep.subr.mxu0 0.0
        %2811 = vmatpush1.msra.mxu0 0.0
        %2812 = vmatprep.subr.mxu0 0.0
        %2813 = vmatpush1.msra.mxu0 0.0
        %2814 = vmatprep.subr.mxu0 0.0
        %2815 = vmatpush1.msra.mxu0 0.0
        %2816 = vmatprep.subr.mxu0 0.0
        %2817 = vmatpush1.msra.mxu0 0.0
        %2818 = vmatprep.subr.mxu0 0.0
        %2819 = vmatpush1.msra.mxu0 0.0
        %2820 = vmatprep.subr.mxu0 0.0
        %2821 = vmatpush1.msra.mxu0 0.0
        %2822 = vmatprep.subr.mxu0 0.0
        %2823 = vmatpush1.msra.mxu0 0.0
        %2824 = vmatprep.subr.mxu0 0.0
        %2825 = vmatpush1.msra.mxu0 0.0
        %2826 = vmatprep.subr.mxu0 0.0
        %2827 = vmatpush1.msra.mxu0 0.0
        %2828 = vmatprep.subr.mxu0 0.0
        %2829 = vmatpush1.msra.mxu0 0.0
        %2830 = vmatprep.subr.mxu0 0.0
        %2831 = vmatpush1.msra.mxu0 0.0
        %2832 = vmatprep.subr.mxu0 0.0
        %2833 = vmatpush1.msra.mxu0 0.0
        %2834 = vmatprep.subr.mxu0 0.0
        %2835 = vmatpush1.msra.mxu0 0.0
        %2836 = vmatprep.subr.mxu0 0.0
        %2837 = vmatpush1.msra.mxu0 0.0
        %2838 = vmatprep.subr.mxu0 0.0
        %2839 = vmatpush1.msra.mxu0 0.0
        %2840 = vmatprep.subr.mxu0 0.0
        %2841 = vmatpush1.msra.mxu0 0.0
        %2842 = vmatprep.subr.mxu0 0.0
        %2843 = vmatpush1.msra.mxu0 0.0
        %2844 = vmatprep.subr.mxu0 0.0
        %2845 = vmatpush1.msra.mxu0 0.0
        %2846 = vmatprep.subr.mxu0 0.0
        %2847 = vmatpush1.msra.mxu0 0.0
        %2848 = vmatprep.subr.mxu0 0.0
        %2849 = vmatpush1.msra.mxu0 0.0
        %2850 = vmatprep.subr.mxu0 0.0
        %2851 = vmatpush1.msra.mxu0 0.0
        %2852 = vmatprep.subr.mxu0 0.0
        %2853 = vmatpush1.msra.mxu0 0.0
        %2854 = vmatprep.subr.mxu0 0.0
        %2855 = vmatpush1.msra.mxu0 0.0
        %2856 = vmatprep.mubr.f32.mxu0 0.0
        %2857 = vmatmul.mubr.f32.gmra.mrb[0].mxu0 %v2556
        %v2858 = vpop.f32.mrb[0].mxu0
        %v2859 = vadd.f32 0.0, %v2858
        %v2860 = vpop.f32.mrb[0].mxu0
        %v2861 = vadd.f32 0.0, %v2860
        %2862 = vmatprep.mubr.f32.mxu0 0.0
        %2863 = vmatmul.mubr.f32.gmra.mrb[0].mxu0 %v2559
        %v2864 = vpop.f32.mrb[0].mxu0
        %v2865 = vadd.f32 0.0, %v2864
        %v2866 = vpop.f32.mrb[0].mxu0
        %v2867 = vadd.f32 0.0, %v2866
        %2868 = vdwg.mxu0
        %s2869 = scalar_lea.vmem [#allocation3], 256
        %v2870 = vld [vmem:[%s2869] sm:$0xff]
        %v2871 = vld [vmem:[%s2869 + $0x8] sm:$0xff]
        %v2872 = vld [vmem:[%s2869 + $0x10] sm:$0xff]
        %v2873 = vld [vmem:[%s2869 + $0x18] sm:$0xff]
        %v2874 = vld [vmem:[%s2869 + $0x20] sm:$0xff]
        %v2875 = vld [vmem:[%s2869 + $0x28] sm:$0xff]
        %v2876 = vld [vmem:[%s2869 + $0x30] sm:$0xff]
        %v2877 = vld [vmem:[%s2869 + $0x38] sm:$0xff]
        %v2878 = vld [vmem:[%s2869 + $0x40] sm:$0xff]
        %v2879 = vld [vmem:[%s2869 + $0x48] sm:$0xff]
        %v2880 = vld [vmem:[%s2869 + $0x50] sm:$0xff]
        %v2881 = vld [vmem:[%s2869 + $0x58] sm:$0xff]
        %v2882 = vld [vmem:[%s2869 + $0x60] sm:$0xff]
        %v2883 = vld [vmem:[%s2869 + $0x68] sm:$0xff]
        %v2884 = vld [vmem:[%s2869 + $0x70] sm:$0xff]
        %v2885 = vld [vmem:[%s2869 + $0x78] sm:$0xff]
        %v2886 = vmul.f32 %v2628, %v2870
        %v2887 = vmul.f32 %v2630, %v2871
        %v2888 = vmul.f32 %v2705, %v2872
        %v2889 = vmul.f32 %v2707, %v2873
        %v2890 = vmul.f32 %v2782, %v2874
        %v2891 = vmul.f32 %v2784, %v2875
        %v2892 = vmul.f32 %v2859, %v2876
        %v2893 = vmul.f32 %v2861, %v2877
        %v2894 = vmul.f32 %v2634, %v2878
        %v2895 = vmul.f32 %v2636, %v2879
        %v2896 = vmul.f32 %v2711, %v2880
        %v2897 = vmul.f32 %v2713, %v2881
        %v2898 = vmul.f32 %v2788, %v2882
        %v2899 = vmul.f32 %v2790, %v2883
        %v2900 = vmul.f32 %v2865, %v2884
        %v2901 = vmul.f32 %v2867, %v2885
        %v2902 = vadd.f32 %v2886, %v2894
        %v2903 = vrot.slane %v2902, 4
        %v2904 = vadd.f32 %v2902, %v2903
        %v2905 = vrot.slane %v2904, 2
        %v2906 = vadd.f32 %v2904, %v2905
        %v2907 = vrot.slane %v2906, 1
        %v2908 = vadd.f32 %v2906, %v2907
        %v2909 = vadd.f32 %v2887, %v2895
        %v2910 = vrot.slane %v2909, 4
        %v2911 = vadd.f32 %v2909, %v2910
        %v2912 = vrot.slane %v2911, 2
        %v2913 = vadd.f32 %v2911, %v2912
        %v2914 = vrot.slane %v2913, 1
        %v2915 = vadd.f32 %v2913, %v2914
        %v2916 = vadd.f32 %v2888, %v2896
        %v2917 = vrot.slane %v2916, 4
        %v2918 = vadd.f32 %v2916, %v2917
        %v2919 = vrot.slane %v2918, 2
        %v2920 = vadd.f32 %v2918, %v2919
        %v2921 = vrot.slane %v2920, 1
        %v2922 = vadd.f32 %v2920, %v2921
        %v2923 = vadd.f32 %v2889, %v2897
        %v2924 = vrot.slane %v2923, 4
        %v2925 = vadd.f32 %v2923, %v2924
        %v2926 = vrot.slane %v2925, 2
        %v2927 = vadd.f32 %v2925, %v2926
        %v2928 = vrot.slane %v2927, 1
        %v2929 = vadd.f32 %v2927, %v2928
        %v2930 = vadd.f32 %v2890, %v2898
        %v2931 = vrot.slane %v2930, 4
        %v2932 = vadd.f32 %v2930, %v2931
        %v2933 = vrot.slane %v2932, 2
        %v2934 = vadd.f32 %v2932, %v2933
        %v2935 = vrot.slane %v2934, 1
        %v2936 = vadd.f32 %v2934, %v2935
        %v2937 = vadd.f32 %v2891, %v2899
        %v2938 = vrot.slane %v2937, 4
        %v2939 = vadd.f32 %v2937, %v2938
        %v2940 = vrot.slane %v2939, 2
        %v2941 = vadd.f32 %v2939, %v2940
        %v2942 = vrot.slane %v2941, 1
        %v2943 = vadd.f32 %v2941, %v2942
        %v2944 = vadd.f32 %v2892, %v2900
        %v2945 = vrot.slane %v2944, 4
        %v2946 = vadd.f32 %v2944, %v2945
        %v2947 = vrot.slane %v2946, 2
        %v2948 = vadd.f32 %v2946, %v2947
        %v2949 = vrot.slane %v2948, 1
        %v2950 = vadd.f32 %v2948, %v2949
        %v2951 = vadd.f32 %v2893, %v2901
        %v2952 = vrot.slane %v2951, 4
        %v2953 = vadd.f32 %v2951, %v2952
        %v2954 = vrot.slane %v2953, 2
        %v2955 = vadd.f32 %v2953, %v2954
        %v2956 = vrot.slane %v2955, 1
        %v2957 = vadd.f32 %v2955, %v2956
        %v2966 = vcombine.low %v2908, %v2915
        %v2967 = vcombine.low %v2922, %v2929
        %v2968 = vcombine.low %v2936, %v2943
        %v2969 = vcombine.low %v2950, %v2957
        %v2971 = vunpack.c.l.s4 1966171168
        %v2972 = vunpack.c.0.s8 %v2971
        %v2973 = vlaneseq
        %v2974 = vshrl.u32 %v2973, 7
        %v2975 = vsub.s32 %v2972, %v2974
        %v2976 = vrot.slane %v2966, %v2975
        %v2978 = vunpack.c.l.s4 1966171168
        %v2979 = vunpack.c.0.s8 %v2978
        %v2980 = vlaneseq
        %v2981 = vshrl.u32 %v2980, 7
        %v2982 = vsub.s32 %v2979, %v2981
        %v2983 = vrot.slane %v2967, %v2982
        %v2985 = vunpack.c.l.s4 1966171168
        %v2986 = vunpack.c.0.s8 %v2985
        %v2987 = vlaneseq
        %v2988 = vshrl.u32 %v2987, 7
        %v2989 = vsub.s32 %v2986, %v2988
        %v2990 = vrot.slane %v2968, %v2989
        %v2992 = vunpack.c.l.s4 1966171168
        %v2993 = vunpack.c.0.s8 %v2992
        %v2994 = vlaneseq
        %v2995 = vshrl.u32 %v2994, 7
        %v2996 = vsub.s32 %v2993, %v2995
        %v2997 = vrot.slane %v2969, %v2996
        %v2998 = vcombine.low %v2976, %v2983
        %v2999 = vcombine.low %v2990, %v2997
        %v3001 = vunpack.c.l.s4 1966171168
        %v3002 = vunpack.c.0.s8 %v3001
        %v3003 = vlaneseq
        %v3004 = vshrl.u32 %v3003, 7
        %v3005 = vsub.s32 %v3002, %v3004
        %v3006 = vrot.slane %v2998, %v3005
        %v3008 = vunpack.c.l.s4 1966171168
        %v3009 = vunpack.c.0.s8 %v3008
        %v3010 = vlaneseq
        %v3011 = vshrl.u32 %v3010, 7
        %v3012 = vsub.s32 %v3009, %v3011
        %v3013 = vrot.slane %v2999, %v3012
        %v3014 = vcombine.low %v3006, %v3013
        %s3016 = scalar_lea.vmem %s320, 16 [#allocation7]
        %3017 = vst [vmem:[%s3016] sm:$0xff] %v3014
        %s3018 = scalar_lea.vmem %s279, 48 [#allocation4]
        %v3019 = vld [vmem:[%s3018] sm:$0xff]
        %v3020 = vld [vmem:[%s3018 + $0x8] sm:$0xff]
        %s3021 = scalar_lea.vmem [#allocation2], 384
        %v3022 = vld [vmem:[%s3021] sm:$0xff]
        %v3023 = vld [vmem:[%s3021 + $0x8] sm:$0xff]
        %v3024 = vld [vmem:[%s3021 + $0x10] sm:$0xff]
        %v3025 = vld [vmem:[%s3021 + $0x18] sm:$0xff]
        %v3026 = vld [vmem:[%s3021 + $0x20] sm:$0xff]
        %v3027 = vld [vmem:[%s3021 + $0x28] sm:$0xff]
        %v3028 = vld [vmem:[%s3021 + $0x30] sm:$0xff]
        %v3029 = vld [vmem:[%s3021 + $0x38] sm:$0xff]
        %v3030 = vld [vmem:[%s3021 + $0x40] sm:$0xff]
        %v3031 = vld [vmem:[%s3021 + $0x48] sm:$0xff]
        %v3032 = vld [vmem:[%s3021 + $0x50] sm:$0xff]
        %v3033 = vld [vmem:[%s3021 + $0x58] sm:$0xff]
        %v3034 = vld [vmem:[%s3021 + $0x60] sm:$0xff]
        %v3035 = vld [vmem:[%s3021 + $0x68] sm:$0xff]
        %v3036 = vld [vmem:[%s3021 + $0x70] sm:$0xff]
        %v3037 = vld [vmem:[%s3021 + $0x78] sm:$0xff]
        %v3039 = vsel %vm1590, %v3019, 0
        %v3042 = vsel %vm1590, %v3020, 0
        %3044 = vmatprep.subr.mxu0 %v3023
        %3045 = vmatpush1.msra.mxu0 %v3022
        %3046 = vmatprep.subr.mxu0 %v3031
        %3047 = vmatpush1.msra.mxu0 %v3030
        %3048 = vmatprep.subr.mxu0 0.0
        %3049 = vmatpush1.msra.mxu0 0.0
        %3050 = vmatprep.subr.mxu0 0.0
        %3051 = vmatpush1.msra.mxu0 0.0
        %3052 = vmatprep.subr.mxu0 0.0
        %3053 = vmatpush1.msra.mxu0 0.0
        %3054 = vmatprep.subr.mxu0 0.0
        %3055 = vmatpush1.msra.mxu0 0.0
        %3056 = vmatprep.subr.mxu0 0.0
        %3057 = vmatpush1.msra.mxu0 0.0
        %3058 = vmatprep.subr.mxu0 0.0
        %3059 = vmatpush1.msra.mxu0 0.0
        %3060 = vmatprep.subr.mxu0 0.0
        %3061 = vmatpush1.msra.mxu0 0.0
        %3062 = vmatprep.subr.mxu0 0.0
        %3063 = vmatpush1.msra.mxu0 0.0
        %3064 = vmatprep.subr.mxu0 0.0
        %3065 = vmatpush1.msra.mxu0 0.0
        %3066 = vmatprep.subr.mxu0 0.0
        %3067 = vmatpush1.msra.mxu0 0.0
        %3068 = vmatprep.subr.mxu0 0.0
        %3069 = vmatpush1.msra.mxu0 0.0
        %3070 = vmatprep.subr.mxu0 0.0
        %3071 = vmatpush1.msra.mxu0 0.0
        %3072 = vmatprep.subr.mxu0 0.0
        %3073 = vmatpush1.msra.mxu0 0.0
        %3074 = vmatprep.subr.mxu0 0.0
        %3075 = vmatpush1.msra.mxu0 0.0
        %3076 = vmatprep.subr.mxu0 0.0
        %3077 = vmatpush1.msra.mxu0 0.0
        %3078 = vmatprep.subr.mxu0 0.0
        %3079 = vmatpush1.msra.mxu0 0.0
        %3080 = vmatprep.subr.mxu0 0.0
        %3081 = vmatpush1.msra.mxu0 0.0
        %3082 = vmatprep.subr.mxu0 0.0
        %3083 = vmatpush1.msra.mxu0 0.0
        %3084 = vmatprep.subr.mxu0 0.0
        %3085 = vmatpush1.msra.mxu0 0.0
        %3086 = vmatprep.subr.mxu0 0.0
        %3087 = vmatpush1.msra.mxu0 0.0
        %3088 = vmatprep.subr.mxu0 0.0
        %3089 = vmatpush1.msra.mxu0 0.0
        %3090 = vmatprep.subr.mxu0 0.0
        %3091 = vmatpush1.msra.mxu0 0.0
        %3092 = vmatprep.subr.mxu0 0.0
        %3093 = vmatpush1.msra.mxu0 0.0
        %3094 = vmatprep.subr.mxu0 0.0
        %3095 = vmatpush1.msra.mxu0 0.0
        %3096 = vmatprep.subr.mxu0 0.0
        %3097 = vmatpush1.msra.mxu0 0.0
        %3098 = vmatprep.subr.mxu0 0.0
        %3099 = vmatpush1.msra.mxu0 0.0
        %3100 = vmatprep.subr.mxu0 0.0
        %3101 = vmatpush1.msra.mxu0 0.0
        %3102 = vmatprep.subr.mxu0 0.0
        %3103 = vmatpush1.msra.mxu0 0.0
        %3104 = vmatprep.subr.mxu0 0.0
        %3105 = vmatpush1.msra.mxu0 0.0
        %3106 = vmatprep.subr.mxu0 0.0
        %3107 = vmatpush1.msra.mxu0 0.0
        %3108 = vmatprep.mubr.f32.mxu0 0.0
        %3109 = vmatmul.mubr.f32.gmra.mrb[0].mxu0 %v3039
        %v3110 = vpop.f32.mrb[0].mxu0
        %v3111 = vadd.f32 0.0, %v3110
        %v3112 = vpop.f32.mrb[0].mxu0
        %v3113 = vadd.f32 0.0, %v3112
        %3114 = vmatprep.mubr.f32.mxu0 0.0
        %3115 = vmatmul.mubr.f32.gmra.mrb[0].mxu0 %v3042
        %v3116 = vpop.f32.mrb[0].mxu0
        %v3117 = vadd.f32 0.0, %v3116
        %v3118 = vpop.f32.mrb[0].mxu0
        %v3119 = vadd.f32 0.0, %v3118
        %3120 = vdwg.mxu0
        %3121 = vmatprep.subr.mxu0 %v3025
        %3122 = vmatpush1.msra.mxu0 %v3024
        %3123 = vmatprep.subr.mxu0 %v3033
        %3124 = vmatpush1.msra.mxu0 %v3032
        %3125 = vmatprep.subr.mxu0 0.0
        %3126 = vmatpush1.msra.mxu0 0.0
        %3127 = vmatprep.subr.mxu0 0.0
        %3128 = vmatpush1.msra.mxu0 0.0
        %3129 = vmatprep.subr.mxu0 0.0
        %3130 = vmatpush1.msra.mxu0 0.0
        %3131 = vmatprep.subr.mxu0 0.0
        %3132 = vmatpush1.msra.mxu0 0.0
        %3133 = vmatprep.subr.mxu0 0.0
        %3134 = vmatpush1.msra.mxu0 0.0
        %3135 = vmatprep.subr.mxu0 0.0
        %3136 = vmatpush1.msra.mxu0 0.0
        %3137 = vmatprep.subr.mxu0 0.0
        %3138 = vmatpush1.msra.mxu0 0.0
        %3139 = vmatprep.subr.mxu0 0.0
        %3140 = vmatpush1.msra.mxu0 0.0
        %3141 = vmatprep.subr.mxu0 0.0
        %3142 = vmatpush1.msra.mxu0 0.0
        %3143 = vmatprep.subr.mxu0 0.0
        %3144 = vmatpush1.msra.mxu0 0.0
        %3145 = vmatprep.subr.mxu0 0.0
        %3146 = vmatpush1.msra.mxu0 0.0
        %3147 = vmatprep.subr.mxu0 0.0
        %3148 = vmatpush1.msra.mxu0 0.0
        %3149 = vmatprep.subr.mxu0 0.0
        %3150 = vmatpush1.msra.mxu0 0.0
        %3151 = vmatprep.subr.mxu0 0.0
        %3152 = vmatpush1.msra.mxu0 0.0
        %3153 = vmatprep.subr.mxu0 0.0
        %3154 = vmatpush1.msra.mxu0 0.0
        %3155 = vmatprep.subr.mxu0 0.0
        %3156 = vmatpush1.msra.mxu0 0.0
        %3157 = vmatprep.subr.mxu0 0.0
        %3158 = vmatpush1.msra.mxu0 0.0
        %3159 = vmatprep.subr.mxu0 0.0
        %3160 = vmatpush1.msra.mxu0 0.0
        %3161 = vmatprep.subr.mxu0 0.0
        %3162 = vmatpush1.msra.mxu0 0.0
        %3163 = vmatprep.subr.mxu0 0.0
        %3164 = vmatpush1.msra.mxu0 0.0
        %3165 = vmatprep.subr.mxu0 0.0
        %3166 = vmatpush1.msra.mxu0 0.0
        %3167 = vmatprep.subr.mxu0 0.0
        %3168 = vmatpush1.msra.mxu0 0.0
        %3169 = vmatprep.subr.mxu0 0.0
        %3170 = vmatpush1.msra.mxu0 0.0
        %3171 = vmatprep.subr.mxu0 0.0
        %3172 = vmatpush1.msra.mxu0 0.0
        %3173 = vmatprep.subr.mxu0 0.0
        %3174 = vmatpush1.msra.mxu0 0.0
        %3175 = vmatprep.subr.mxu0 0.0
        %3176 = vmatpush1.msra.mxu0 0.0
        %3177 = vmatprep.subr.mxu0 0.0
        %3178 = vmatpush1.msra.mxu0 0.0
        %3179 = vmatprep.subr.mxu0 0.0
        %3180 = vmatpush1.msra.mxu0 0.0
        %3181 = vmatprep.subr.mxu0 0.0
        %3182 = vmatpush1.msra.mxu0 0.0
        %3183 = vmatprep.subr.mxu0 0.0
        %3184 = vmatpush1.msra.mxu0 0.0
        %3185 = vmatprep.mubr.f32.mxu0 0.0
        %3186 = vmatmul.mubr.f32.gmra.mrb[0].mxu0 %v3039
        %v3187 = vpop.f32.mrb[0].mxu0
        %v3188 = vadd.f32 0.0, %v3187
        %v3189 = vpop.f32.mrb[0].mxu0
        %v3190 = vadd.f32 0.0, %v3189
        %3191 = vmatprep.mubr.f32.mxu0 0.0
        %3192 = vmatmul.mubr.f32.gmra.mrb[0].mxu0 %v3042
        %v3193 = vpop.f32.mrb[0].mxu0
        %v3194 = vadd.f32 0.0, %v3193
        %v3195 = vpop.f32.mrb[0].mxu0
        %v3196 = vadd.f32 0.0, %v3195
        %3197 = vdwg.mxu0
        %3198 = vmatprep.subr.mxu0 %v3027
        %3199 = vmatpush1.msra.mxu0 %v3026
        %3200 = vmatprep.subr.mxu0 %v3035
        %3201 = vmatpush1.msra.mxu0 %v3034
        %3202 = vmatprep.subr.mxu0 0.0
        %3203 = vmatpush1.msra.mxu0 0.0
        %3204 = vmatprep.subr.mxu0 0.0
        %3205 = vmatpush1.msra.mxu0 0.0
        %3206 = vmatprep.subr.mxu0 0.0
        %3207 = vmatpush1.msra.mxu0 0.0
        %3208 = vmatprep.subr.mxu0 0.0
        %3209 = vmatpush1.msra.mxu0 0.0
        %3210 = vmatprep.subr.mxu0 0.0
        %3211 = vmatpush1.msra.mxu0 0.0
        %3212 = vmatprep.subr.mxu0 0.0
        %3213 = vmatpush1.msra.mxu0 0.0
        %3214 = vmatprep.subr.mxu0 0.0
        %3215 = vmatpush1.msra.mxu0 0.0
        %3216 = vmatprep.subr.mxu0 0.0
        %3217 = vmatpush1.msra.mxu0 0.0
        %3218 = vmatprep.subr.mxu0 0.0
        %3219 = vmatpush1.msra.mxu0 0.0
        %3220 = vmatprep.subr.mxu0 0.0
        %3221 = vmatpush1.msra.mxu0 0.0
        %3222 = vmatprep.subr.mxu0 0.0
        %3223 = vmatpush1.msra.mxu0 0.0
        %3224 = vmatprep.subr.mxu0 0.0
        %3225 = vmatpush1.msra.mxu0 0.0
        %3226 = vmatprep.subr.mxu0 0.0
        %3227 = vmatpush1.msra.mxu0 0.0
        %3228 = vmatprep.subr.mxu0 0.0
        %3229 = vmatpush1.msra.mxu0 0.0
        %3230 = vmatprep.subr.mxu0 0.0
        %3231 = vmatpush1.msra.mxu0 0.0
        %3232 = vmatprep.subr.mxu0 0.0
        %3233 = vmatpush1.msra.mxu0 0.0
        %3234 = vmatprep.subr.mxu0 0.0
        %3235 = vmatpush1.msra.mxu0 0.0
        %3236 = vmatprep.subr.mxu0 0.0
        %3237 = vmatpush1.msra.mxu0 0.0
        %3238 = vmatprep.subr.mxu0 0.0
        %3239 = vmatpush1.msra.mxu0 0.0
        %3240 = vmatprep.subr.mxu0 0.0
        %3241 = vmatpush1.msra.mxu0 0.0
        %3242 = vmatprep.subr.mxu0 0.0
        %3243 = vmatpush1.msra.mxu0 0.0
        %3244 = vmatprep.subr.mxu0 0.0
        %3245 = vmatpush1.msra.mxu0 0.0
        %3246 = vmatprep.subr.mxu0 0.0
        %3247 = vmatpush1.msra.mxu0 0.0
        %3248 = vmatprep.subr.mxu0 0.0
        %3249 = vmatpush1.msra.mxu0 0.0
        %3250 = vmatprep.subr.mxu0 0.0
        %3251 = vmatpush1.msra.mxu0 0.0
        %3252 = vmatprep.subr.mxu0 0.0
        %3253 = vmatpush1.msra.mxu0 0.0
        %3254 = vmatprep.subr.mxu0 0.0
        %3255 = vmatpush1.msra.mxu0 0.0
        %3256 = vmatprep.subr.mxu0 0.0
        %3257 = vmatpush1.msra.mxu0 0.0
        %3258 = vmatprep.subr.mxu0 0.0
        %3259 = vmatpush1.msra.mxu0 0.0
        %3260 = vmatprep.subr.mxu0 0.0
        %3261 = vmatpush1.msra.mxu0 0.0
        %3262 = vmatprep.mubr.f32.mxu0 0.0
        %3263 = vmatmul.mubr.f32.gmra.mrb[0].mxu0 %v3039
        %v3264 = vpop.f32.mrb[0].mxu0
        %v3265 = vadd.f32 0.0, %v3264
        %v3266 = vpop.f32.mrb[0].mxu0
        %v3267 = vadd.f32 0.0, %v3266
        %3268 = vmatprep.mubr.f32.mxu0 0.0
        %3269 = vmatmul.mubr.f32.gmra.mrb[0].mxu0 %v3042
        %v3270 = vpop.f32.mrb[0].mxu0
        %v3271 = vadd.f32 0.0, %v3270
        %v3272 = vpop.f32.mrb[0].mxu0
        %v3273 = vadd.f32 0.0, %v3272
        %3274 = vdwg.mxu0
        %3275 = vmatprep.subr.mxu0 %v3029
        %3276 = vmatpush1.msra.mxu0 %v3028
        %3277 = vmatprep.subr.mxu0 %v3037
        %3278 = vmatpush1.msra.mxu0 %v3036
        %3279 = vmatprep.subr.mxu0 0.0
        %3280 = vmatpush1.msra.mxu0 0.0
        %3281 = vmatprep.subr.mxu0 0.0
        %3282 = vmatpush1.msra.mxu0 0.0
        %3283 = vmatprep.subr.mxu0 0.0
        %3284 = vmatpush1.msra.mxu0 0.0
        %3285 = vmatprep.subr.mxu0 0.0
        %3286 = vmatpush1.msra.mxu0 0.0
        %3287 = vmatprep.subr.mxu0 0.0
        %3288 = vmatpush1.msra.mxu0 0.0
        %3289 = vmatprep.subr.mxu0 0.0
        %3290 = vmatpush1.msra.mxu0 0.0
        %3291 = vmatprep.subr.mxu0 0.0
        %3292 = vmatpush1.msra.mxu0 0.0
        %3293 = vmatprep.subr.mxu0 0.0
        %3294 = vmatpush1.msra.mxu0 0.0
        %3295 = vmatprep.subr.mxu0 0.0
        %3296 = vmatpush1.msra.mxu0 0.0
        %3297 = vmatprep.subr.mxu0 0.0
        %3298 = vmatpush1.msra.mxu0 0.0
        %3299 = vmatprep.subr.mxu0 0.0
        %3300 = vmatpush1.msra.mxu0 0.0
        %3301 = vmatprep.subr.mxu0 0.0
        %3302 = vmatpush1.msra.mxu0 0.0
        %3303 = vmatprep.subr.mxu0 0.0
        %3304 = vmatpush1.msra.mxu0 0.0
        %3305 = vmatprep.subr.mxu0 0.0
        %3306 = vmatpush1.msra.mxu0 0.0
        %3307 = vmatprep.subr.mxu0 0.0
        %3308 = vmatpush1.msra.mxu0 0.0
        %3309 = vmatprep.subr.mxu0 0.0
        %3310 = vmatpush1.msra.mxu0 0.0
        %3311 = vmatprep.subr.mxu0 0.0
        %3312 = vmatpush1.msra.mxu0 0.0
        %3313 = vmatprep.subr.mxu0 0.0
        %3314 = vmatpush1.msra.mxu0 0.0
        %3315 = vmatprep.subr.mxu0 0.0
        %3316 = vmatpush1.msra.mxu0 0.0
        %3317 = vmatprep.subr.mxu0 0.0
        %3318 = vmatpush1.msra.mxu0 0.0
        %3319 = vmatprep.subr.mxu0 0.0
        %3320 = vmatpush1.msra.mxu0 0.0
        %3321 = vmatprep.subr.mxu0 0.0
        %3322 = vmatpush1.msra.mxu0 0.0
        %3323 = vmatprep.subr.mxu0 0.0
        %3324 = vmatpush1.msra.mxu0 0.0
        %3325 = vmatprep.subr.mxu0 0.0
        %3326 = vmatpush1.msra.mxu0 0.0
        %3327 = vmatprep.subr.mxu0 0.0
        %3328 = vmatpush1.msra.mxu0 0.0
        %3329 = vmatprep.subr.mxu0 0.0
        %3330 = vmatpush1.msra.mxu0 0.0
        %3331 = vmatprep.subr.mxu0 0.0
        %3332 = vmatpush1.msra.mxu0 0.0
        %3333 = vmatprep.subr.mxu0 0.0
        %3334 = vmatpush1.msra.mxu0 0.0
        %3335 = vmatprep.subr.mxu0 0.0
        %3336 = vmatpush1.msra.mxu0 0.0
        %3337 = vmatprep.subr.mxu0 0.0
        %3338 = vmatpush1.msra.mxu0 0.0
        %3339 = vmatprep.mubr.f32.mxu0 0.0
        %3340 = vmatmul.mubr.f32.gmra.mrb[0].mxu0 %v3039
        %v3341 = vpop.f32.mrb[0].mxu0
        %v3342 = vadd.f32 0.0, %v3341
        %v3343 = vpop.f32.mrb[0].mxu0
        %v3344 = vadd.f32 0.0, %v3343
        %3345 = vmatprep.mubr.f32.mxu0 0.0
        %3346 = vmatmul.mubr.f32.gmra.mrb[0].mxu0 %v3042
        %v3347 = vpop.f32.mrb[0].mxu0
        %v3348 = vadd.f32 0.0, %v3347
        %v3349 = vpop.f32.mrb[0].mxu0
        %v3350 = vadd.f32 0.0, %v3349
        %3351 = vdwg.mxu0
        %s3352 = scalar_lea.vmem [#allocation3], 384
        %v3353 = vld [vmem:[%s3352] sm:$0xff]
        %v3354 = vld [vmem:[%s3352 + $0x8] sm:$0xff]
        %v3355 = vld [vmem:[%s3352 + $0x10] sm:$0xff]
        %v3356 = vld [vmem:[%s3352 + $0x18] sm:$0xff]
        %v3357 = vld [vmem:[%s3352 + $0x20] sm:$0xff]
        %v3358 = vld [vmem:[%s3352 + $0x28] sm:$0xff]
        %v3359 = vld [vmem:[%s3352 + $0x30] sm:$0xff]
        %v3360 = vld [vmem:[%s3352 + $0x38] sm:$0xff]
        %v3361 = vld [vmem:[%s3352 + $0x40] sm:$0xff]
        %v3362 = vld [vmem:[%s3352 + $0x48] sm:$0xff]
        %v3363 = vld [vmem:[%s3352 + $0x50] sm:$0xff]
        %v3364 = vld [vmem:[%s3352 + $0x58] sm:$0xff]
        %v3365 = vld [vmem:[%s3352 + $0x60] sm:$0xff]
        %v3366 = vld [vmem:[%s3352 + $0x68] sm:$0xff]
        %v3367 = vld [vmem:[%s3352 + $0x70] sm:$0xff]
        %v3368 = vld [vmem:[%s3352 + $0x78] sm:$0xff]
        %v3369 = vmul.f32 %v3111, %v3353
        %v3370 = vmul.f32 %v3113, %v3354
        %v3371 = vmul.f32 %v3188, %v3355
        %v3372 = vmul.f32 %v3190, %v3356
        %v3373 = vmul.f32 %v3265, %v3357
        %v3374 = vmul.f32 %v3267, %v3358
        %v3375 = vmul.f32 %v3342, %v3359
        %v3376 = vmul.f32 %v3344, %v3360
        %v3377 = vmul.f32 %v3117, %v3361
        %v3378 = vmul.f32 %v3119, %v3362
        %v3379 = vmul.f32 %v3194, %v3363
        %v3380 = vmul.f32 %v3196, %v3364
        %v3381 = vmul.f32 %v3271, %v3365
        %v3382 = vmul.f32 %v3273, %v3366
        %v3383 = vmul.f32 %v3348, %v3367
        %v3384 = vmul.f32 %v3350, %v3368
        %v3385 = vadd.f32 %v3369, %v3377
        %v3386 = vrot.slane %v3385, 4
        %v3387 = vadd.f32 %v3385, %v3386
        %v3388 = vrot.slane %v3387, 2
        %v3389 = vadd.f32 %v3387, %v3388
        %v3390 = vrot.slane %v3389, 1
        %v3391 = vadd.f32 %v3389, %v3390
        %v3392 = vadd.f32 %v3370, %v3378
        %v3393 = vrot.slane %v3392, 4
        %v3394 = vadd.f32 %v3392, %v3393
        %v3395 = vrot.slane %v3394, 2
        %v3396 = vadd.f32 %v3394, %v3395
        %v3397 = vrot.slane %v3396, 1
        %v3398 = vadd.f32 %v3396, %v3397
        %v3399 = vadd.f32 %v3371, %v3379
        %v3400 = vrot.slane %v3399, 4
        %v3401 = vadd.f32 %v3399, %v3400
        %v3402 = vrot.slane %v3401, 2
        %v3403 = vadd.f32 %v3401, %v3402
        %v3404 = vrot.slane %v3403, 1
        %v3405 = vadd.f32 %v3403, %v3404
        %v3406 = vadd.f32 %v3372, %v3380
        %v3407 = vrot.slane %v3406, 4
        %v3408 = vadd.f32 %v3406, %v3407
        %v3409 = vrot.slane %v3408, 2
        %v3410 = vadd.f32 %v3408, %v3409
        %v3411 = vrot.slane %v3410, 1
        %v3412 = vadd.f32 %v3410, %v3411
        %v3413 = vadd.f32 %v3373, %v3381
        %v3414 = vrot.slane %v3413, 4
        %v3415 = vadd.f32 %v3413, %v3414
        %v3416 = vrot.slane %v3415, 2
        %v3417 = vadd.f32 %v3415, %v3416
        %v3418 = vrot.slane %v3417, 1
        %v3419 = vadd.f32 %v3417, %v3418
        %v3420 = vadd.f32 %v3374, %v3382
        %v3421 = vrot.slane %v3420, 4
        %v3422 = vadd.f32 %v3420, %v3421
        %v3423 = vrot.slane %v3422, 2
        %v3424 = vadd.f32 %v3422, %v3423
        %v3425 = vrot.slane %v3424, 1
        %v3426 = vadd.f32 %v3424, %v3425
        %v3427 = vadd.f32 %v3375, %v3383
        %v3428 = vrot.slane %v3427, 4
        %v3429 = vadd.f32 %v3427, %v3428
        %v3430 = vrot.slane %v3429, 2
        %v3431 = vadd.f32 %v3429, %v3430
        %v3432 = vrot.slane %v3431, 1
        %v3433 = vadd.f32 %v3431, %v3432
        %v3434 = vadd.f32 %v3376, %v3384
        %v3435 = vrot.slane %v3434, 4
        %v3436 = vadd.f32 %v3434, %v3435
        %v3437 = vrot.slane %v3436, 2
        %v3438 = vadd.f32 %v3436, %v3437
        %v3439 = vrot.slane %v3438, 1
        %v3440 = vadd.f32 %v3438, %v3439
        %v3449 = vcombine.low %v3391, %v3398
        %v3450 = vcombine.low %v3405, %v3412
        %v3451 = vcombine.low %v3419, %v3426
        %v3452 = vcombine.low %v3433, %v3440
        %v3454 = vunpack.c.l.s4 1966171168
        %v3455 = vunpack.c.0.s8 %v3454
        %v3456 = vlaneseq
        %v3457 = vshrl.u32 %v3456, 7
        %v3458 = vsub.s32 %v3455, %v3457
        %v3459 = vrot.slane %v3449, %v3458
        %v3461 = vunpack.c.l.s4 1966171168
        %v3462 = vunpack.c.0.s8 %v3461
        %v3463 = vlaneseq
        %v3464 = vshrl.u32 %v3463, 7
        %v3465 = vsub.s32 %v3462, %v3464
        %v3466 = vrot.slane %v3450, %v3465
        %v3468 = vunpack.c.l.s4 1966171168
        %v3469 = vunpack.c.0.s8 %v3468
        %v3470 = vlaneseq
        %v3471 = vshrl.u32 %v3470, 7
        %v3472 = vsub.s32 %v3469, %v3471
        %v3473 = vrot.slane %v3451, %v3472
        %v3475 = vunpack.c.l.s4 1966171168
        %v3476 = vunpack.c.0.s8 %v3475
        %v3477 = vlaneseq
        %v3478 = vshrl.u32 %v3477, 7
        %v3479 = vsub.s32 %v3476, %v3478
        %v3480 = vrot.slane %v3452, %v3479
        %v3481 = vcombine.low %v3459, %v3466
        %v3482 = vcombine.low %v3473, %v3480
        %v3484 = vunpack.c.l.s4 1966171168
        %v3485 = vunpack.c.0.s8 %v3484
        %v3486 = vlaneseq
        %v3487 = vshrl.u32 %v3486, 7
        %v3488 = vsub.s32 %v3485, %v3487
        %v3489 = vrot.slane %v3481, %v3488
        %v3491 = vunpack.c.l.s4 1966171168
        %v3492 = vunpack.c.0.s8 %v3491
        %v3493 = vlaneseq
        %v3494 = vshrl.u32 %v3493, 7
        %v3495 = vsub.s32 %v3492, %v3494
        %v3496 = vrot.slane %v3482, %v3495
        %v3497 = vcombine.low %v3489, %v3496
        %s3499 = scalar_lea.vmem %s320, 24 [#allocation7]
        %3500 = vst [vmem:[%s3499] sm:$0xff] %v3497
        %s3501 = sand.u32 %s182, 1
        %s3502 = scalar_lea.sflag [#allocation6], %s3501
        %s3503 = sand.u32 %s182, 1
        %s3504 = smul.addr %s3503, 32
        %s3505 = scalar_lea.vmem [#allocation7], %s3504
        // Predicated region
        $region49: #{tpu_custom_call.1} parent=39 // pred_check
          %p3506 = pneg %p192
        $region50: #{tpu_custom_call.1} parent=39 // pred_check_branch
          %3508 = sbr.rel (%p3506) target = $region52
        $region51: #{tpu_custom_call.1} parent=39 // pred_region
          %s3510 = ssub.s32 512, 512
          %3511 = vsyncadd %s3502, %s3510
          %s3512 = smul.addr %s29, 8
          %s3513 = smul.addr %s28, 32
          %s3514 = sadd.s32 %s3512, %s3513
          %s3515 = smul.addr %s27, 32
          %s3516 = sadd.s32 %s3514, %s3515
          %s3517 = smul.addr %s3516, 16
          %s3518 = scalar_lea.hbm %s5, %s3517
          %s3519 = sshll.u32 %s3505, 4
          %s3520 = int_to_ptr.vmem [resolvable:$true] %s3519
          %3525 = dma.vmem_to_hbm [thread:$0]  %s3520, 512, %s3518, %s3502, 128, 128, 8
        $region52: #{tpu_custom_call.1} parent=39 // pred_fallthru
          _
      $region40: #{tpu_custom_call.1} parent=5 // pred_fallthru
        _
      %p3526 = scmp.le.s32.totalorder 2, %s17
      // Predicated region
      $region53: #{tpu_custom_call.1} parent=5 // pred_check
        %p3527 = pneg %p3526
      $region54: #{tpu_custom_call.1} parent=5 // pred_check_branch
        %3529 = sbr.rel (%p3527) target = $region56
      $region55: #{tpu_custom_call.1} parent=5 // pred_region
        %s3530 = ssub.s32 %s17, 2
        // Predicated region
        $region57: #{tpu_custom_call.1} parent=55 // pred_check
          %p3531 = pneg %p198
        $region58: #{tpu_custom_call.1} parent=55 // pred_check_branch
          %3533 = sbr.rel (%p3531) target = $region60
        $region59: #{tpu_custom_call.1} parent=55 // pred_region
          %s3534 = sand.u32 %s183, 1
          %s3535 = scalar_lea.sflag [#allocation6], %s3534
          %s3536 = sand.u32 %s183, 1
          %s3537 = smul.addr %s3536, 32
          %s3538 = scalar_lea.vmem [#allocation7], %s3537
          %3539 = dma.done %s3535, 512
        $region60: #{tpu_custom_call.1} parent=55 // pred_fallthru
          _
      $region56: #{tpu_custom_call.1} parent=5 // pred_fallthru
        _
    $region6: #{tpu_custom_call.1} parent=1 // loop_footer
      %s21 = sadd.s32 1, %s17
    $region7: #{tpu_custom_call.1} parent=1 // loop_footer_branch
      %16 = sbr.rel target = $region3
    $region8: #{tpu_custom_call.1} parent=1 // loop_exit
      _
    %3540 = vsyncpa [#allocation5], 1
    %s3541 = scalar_lea.sflag [#allocation5], 1
    %3542 = vsyncpa %s3541, 1
    %3543 = vsyncpa [#allocation6], 1
    %s3544 = scalar_lea.sflag [#allocation6], 1
    %3545 = vsyncpa %s3544, 1

</llo_original>
